<compile_context>
chip_gen: v6e
topology: v6e:2x2x1
jax: 0.10.0
libtpu: 0.0.40
codegen_flags: <defaults>
</compile_context>

<pallas_src>
import jax
import jax.numpy as jnp
import numpy as np
from jax import lax
from jax.experimental import pallas as pl
from jax.experimental.pallas import tpu as pltpu

EPS = 1e-31          # matches the `eps` global used by the summarizer code
NEG_INF = -1e30
TILE_N = 128         # ext-vocab tile width (multiple of 128)

# Layout of the packed lane-dense "stats" output of kernel A.
_COL_M = 0           # online-softmax running max
_COL_L = 1           # online-softmax running sum(exp)
_COL_P = 2           # pointer probability
_H_OFF = 8           # h_new at [8 : 8+H], enc_attn at [8+H : 8+H+S]


def _round_up(x, m):
  return ((x + m - 1) // m) * m


# --------------------------------------------------------------------------
# Kernel A: decoder state (GRU + attentions + pointer gate) at grid step 0,
# then one TILE_N-wide slab of the vocab projection per grid step with an
# online softmax reduction into VMEM scratch.
# --------------------------------------------------------------------------
def decoder_project_kernel(
    embedded_ref, hidden_ref, enc_h_ref, dec_s_ref, cover_ref,
    w_i_ref, b_i_ref, w_h_ref, b_h_ref,
    w_enc_bi_ref, w_dec_bi_ref,
    wp_h_ref, wp_e_ref, wp_d_ref,
    w1_ref, w2_ref, w3_ref, bias_ref,
    scal_ref,
    logits_ref, stats_ref,
    h_sc, e_sc, d_sc, m_sc, l_sc):
  f32 = jnp.float32
  j = pl.program_id(0)
  H = hidden_ref.shape[1]

  @pl.when(j == 0)
  def _compute_decoder_state():
    x = embedded_ref[...]                       # (B, E)
    h = hidden_ref[...]                         # (B, H)
    Hp = w_i_ref.shape[1] // 3                  # 128-aligned gate block width

    # GRU cell: two fused matmuls, 128-aligned gate slices (no lane shuffles).
    gi = jnp.dot(x, w_i_ref[...], preferred_element_type=f32) + b_i_ref[...]
    gh = jnp.dot(h, w_h_ref[...], preferred_element_type=f32) + b_h_ref[...]
    r = jax.nn.sigmoid(gi[:, 0:H] + gh[:, 0:H])
    z = jax.nn.sigmoid(gi[:, Hp:Hp + H] + gh[:, Hp:Hp + H])
    n = jnp.tanh(gi[:, 2 * Hp:2 * Hp + H] + r * gh[:, 2 * Hp:2 * Hp + H])
    h_new = (1.0 - z) * n + z * h               # (B, H)

    def softmax_lanes(s):
      s = s - jnp.max(s, axis=1, keepdims=True)
      e = jnp.exp(s)
      return e * pl.reciprocal(jnp.sum(e, axis=1, keepdims=True), approx=True)

    b_enc = scal_ref[0:1, 0:1]
    b_dec = scal_ref[0:1, 1:2]
    cover_w = scal_ref[0:1, 2:3]
    b_ptr = scal_ref[0:1, 3:4]

    # Encoder bilinear attention (batch-major, MXU batched contractions).
    enc_h = enc_h_ref[...]                                          # (B, S, Ee)
    hw = jnp.dot(h_new, w_enc_bi_ref[...], preferred_element_type=f32)
    scores = jnp.einsum('bqe,bse->bqs', hw[:, None, :], enc_h,
                        preferred_element_type=f32)[:, 0, :] + b_enc
    scores = scores + cover_w * jnp.log(cover_ref[...] + EPS)
    enc_attn = softmax_lanes(scores)                                # (B, S)
    enc_ctx = jnp.einsum('bqs,bse->bqe', enc_attn[:, None, :], enc_h,
                         preferred_element_type=f32)[:, 0, :]       # (B, Ee)

    # Decoder (intra) bilinear attention.
    dec_s = dec_s_ref[...]                                          # (B, T, H)
    hwd = jnp.dot(h_new, w_dec_bi_ref[...], preferred_element_type=f32)
    dscores = jnp.einsum('bqh,bth->bqt', hwd[:, None, :], dec_s,
                         preferred_element_type=f32)[:, 0, :] + b_dec
    dec_attn = softmax_lanes(dscores)                               # (B, T)
    dec_ctx = jnp.einsum('bqt,bth->bqh', dec_attn[:, None, :], dec_s,
                         preferred_element_type=f32)[:, 0, :]       # (B, H)

    # Pointer gate: tiny f32 dot (no full-vocab column extraction).
    ptr_logit = (jnp.sum(h_new * wp_h_ref[...], axis=1, keepdims=True)
                 + jnp.sum(enc_ctx * wp_e_ref[...], axis=1, keepdims=True)
                 + jnp.sum(dec_ctx * wp_d_ref[...], axis=1, keepdims=True)
                 + b_ptr)
    prob_ptr = jax.nn.sigmoid(ptr_logit)                            # (B, 1)

    h_sc[...] = h_new
    e_sc[...] = enc_ctx
    d_sc[...] = dec_ctx
    m_sc[...] = jnp.full_like(m_sc, NEG_INF)
    l_sc[...] = jnp.zeros_like(l_sc)

    S = enc_attn.shape[1]
    stats_ref[...] = jnp.zeros_like(stats_ref)
    stats_ref[:, _COL_P:_COL_P + 1] = prob_ptr
    stats_ref[:, _H_OFF:_H_OFF + H] = h_new
    stats_ref[:, _H_OFF + H:_H_OFF + H + S] = enc_attn

  # Every grid step: one TILE_N-wide slab of the fused vocab projection
  # (three accumulating bf16 matmuls instead of a lane-axis concat).
  hb = h_sc[...].astype(jnp.bfloat16)
  eb = e_sc[...].astype(jnp.bfloat16)
  db = d_sc[...].astype(jnp.bfloat16)
  logits = (jnp.dot(hb, w1_ref[...], preferred_element_type=f32)
            + jnp.dot(eb, w2_ref[...], preferred_element_type=f32)
            + jnp.dot(db, w3_ref[...], preferred_element_type=f32)
            + bias_ref[...])                      # pad cols carry NEG_INF bias
  logits_ref[...] = logits

  # Online softmax statistics across vocab tiles.
  t_max = jnp.max(logits, axis=1, keepdims=True)
  m_new = jnp.maximum(m_sc[...], t_max)
  l_sc[...] = (l_sc[...] * jnp.exp(m_sc[...] - m_new)
               + jnp.sum(jnp.exp(logits - m_new), axis=1, keepdims=True))
  m_sc[...] = m_new

  @pl.when(j == pl.num_programs(0) - 1)
  def _finalize_stats():
    stats_ref[:, _COL_M:_COL_M + 1] = m_sc[...]
    stats_ref[:, _COL_L:_COL_L + 1] = l_sc[...]


# --------------------------------------------------------------------------
# Kernel B: normalize, mix with pointer distribution (tile-local scatter),
# and emit log-probs as lane-dense tiles.  Independent per tile -> "parallel".
# --------------------------------------------------------------------------
def vocab_output_kernel(stats_ref, idx_ref, ptrw_ref, logits_ref, out_ref):
  logits = logits_ref[...]                       # (B, TN)
  B, TN = logits.shape
  m = stats_ref[:, _COL_M:_COL_M + 1]
  l = stats_ref[:, _COL_L:_COL_L + 1]
  p = stats_ref[:, _COL_P:_COL_P + 1]

  # Exact reciprocal for the vocab distribution (approx is kept only for the
  # attention softmaxes, per the review's correctness note).
  gen = jnp.exp(logits - m) * (1.0 / l)
  base = (1.0 - p) * gen                         # padded cols are exactly 0

  tile_start = pl.program_id(0) * TN
  col = tile_start + lax.broadcasted_iota(jnp.int32, (B, TN), 1)

  S = idx_ref.shape[0]

  def body(s, acc):
    idx_s = idx_ref[s]                           # (B, 1) direct row read
    w_s = ptrw_ref[s]                            # (B, 1)
    return acc + jnp.where(col == idx_s, w_s, 0.0)

  # TODO(synk): at production S, replace the dense compare with a chunked MXU
  # one-hot dot_general so the scatter rides the matmul slot instead of VALU.
  out = lax.fori_loop(0, S, body, base, unroll=S <= 16)

  out_ref[...] = jnp.log(out + EPS)


# --------------------------------------------------------------------------
# Wrapper: layout plumbing + the two pallas_calls.
# --------------------------------------------------------------------------
def decoder_rnn_forward(prepared, embedded, hidden, enc_hidden_bm,
                        decoder_states, coverage_vector, enc_word_idx_sb,
                        *, ext_vocab_size):
  """One decoder step.

  enc_hidden_bm: (B, S, Ee) batch-major encoder states and enc_word_idx_sb:
  (S, B, 1) int32 are loop-invariant across decode steps and must be prepared
  once per sequence (hoisted out of the per-token path).
  """
  B = embedded.shape[0]
  H = prepared["hidden_size"]
  Ee = prepared["enc_hidden_size"]
  S = enc_hidden_bm.shape[1]
  P = prepared["proj_width"]
  TN = prepared["tile_n"]
  num_tiles = P // TN
  stats_w = _round_up(_H_OFF + H + S, 128)

  h0 = hidden.reshape(B, H)
  dec_s_bm = jnp.transpose(decoder_states, (1, 0, 2))       # (B, T, H) small

  def full_spec(a):
    nd = a.ndim
    return pl.BlockSpec(a.shape, lambda j, nd=nd: (0,) * nd)

  small_inputs = (embedded, h0, enc_hidden_bm, dec_s_bm, coverage_vector,
                  prepared["w_i"], prepared["b_i"], prepared["w_h"],
                  prepared["b_h"], prepared["w_enc_bi"], prepared["w_dec_bi"],
                  prepared["wp_h"], prepared["wp_e"], prepared["wp_d"])
  tiled_inputs = (prepared["w1"], prepared["w2"], prepared["w3"],
                  prepared["b_fused"])

  in_specs = ([full_spec(a) for a in small_inputs] + [
      pl.BlockSpec((H, TN), lambda j: (0, j)),
      pl.BlockSpec((Ee, TN), lambda j: (0, j)),
      pl.BlockSpec((H, TN), lambda j: (0, j)),
      pl.BlockSpec((1, TN), lambda j: (0, j)),
      full_spec(prepared["scalars"]),
  ])

  logits, stats = pl.pallas_call(
      decoder_project_kernel,
      grid=(num_tiles,),
      in_specs=in_specs,
      out_specs=(pl.BlockSpec((B, TN), lambda j: (0, j)),
                 pl.BlockSpec((B, stats_w), lambda j: (0, 0))),
      out_shape=(jax.ShapeDtypeStruct((B, P), jnp.float32),
                 jax.ShapeDtypeStruct((B, stats_w), jnp.float32)),
      scratch_shapes=[pltpu.VMEM((B, H), jnp.float32),
                      pltpu.VMEM((B, Ee), jnp.float32),
                      pltpu.VMEM((B, H), jnp.float32),
                      pltpu.VMEM((B, 1), jnp.float32),
                      pltpu.VMEM((B, 1), jnp.float32)],
      compiler_params=pltpu.CompilerParams(
          dimension_semantics=("arbitrary",),
          vmem_limit_bytes=64 * 1024 * 1024),
  )(*small_inputs, *tiled_inputs, prepared["scalars"])

  prob_ptr = stats[:, _COL_P:_COL_P + 1]
  h_new = stats[:, _H_OFF:_H_OFF + H]
  enc_attn = stats[:, _H_OFF + H:_H_OFF + H + S]
  # TODO(synk): fold this tiny transpose into kernel A by also emitting an
  # (S, B, 1) copy of prob_ptr * enc_attn from the first grid step.
  ptrw_sb = jnp.transpose(prob_ptr * enc_attn)[:, :, None]   # (S, B, 1)

  out_log = pl.pallas_call(
      vocab_output_kernel,
      grid=(num_tiles,),
      in_specs=[pl.BlockSpec((B, stats_w), lambda j: (0, 0)),
                pl.BlockSpec((S, B, 1), lambda j: (0, 0, 0)),
                pl.BlockSpec((S, B, 1), lambda j: (0, 0, 0)),
                pl.BlockSpec((B, TN), lambda j: (0, j))],
      out_specs=pl.BlockSpec((B, TN), lambda j: (0, j)),
      out_shape=jax.ShapeDtypeStruct((B, P), jnp.float32),
      compiler_params=pltpu.CompilerParams(
          dimension_semantics=("parallel",),
          vmem_limit_bytes=64 * 1024 * 1024),
  )(stats, enc_word_idx_sb, ptrw_sb, logits)

  return (out_log[:, :ext_vocab_size], h_new.reshape(1, B, H),
          enc_attn, prob_ptr)


# --------------------------------------------------------------------------
# Parameter construction (PyTorch layout) and kernel-friendly preparation.
# --------------------------------------------------------------------------
def init_raw_params(key, vocab_size, embed_size, hidden_size, enc_hidden_size):
  H, E, Ee, V = hidden_size, embed_size, enc_hidden_size, vocab_size
  C = H + Ee + H
  ks = jax.random.split(key, 13)

  def w(k, shape, scale=0.1):
    return jax.random.normal(k, shape, jnp.float32) * scale

  return dict(
      gru_w_ih=w(ks[0], (3 * H, E)),        # rows ordered (r, z, n)
      gru_w_hh=w(ks[1], (3 * H, H)),
      gru_b_ih=w(ks[2], (3 * H,), 0.05),
      gru_b_hh=w(ks[3], (3 * H,), 0.05),
      w_enc_bi=w(ks[4], (H, Ee)),           # nn.Bilinear(H, Ee, 1).weight[0]
      b_enc_bi=w(ks[5], (1,), 0.05),
      cover_weight=jax.random.uniform(ks[6], (1,), jnp.float32),
      w_dec_bi=w(ks[7], (H, H)),            # nn.Bilinear(H, H, 1).weight[0]
      b_dec_bi=w(ks[8], (1,), 0.05),
      w_ptr=w(ks[9], (1, C)),               # nn.Linear(C, 1)
      b_ptr=w(ks[10], (1,), 0.05),
      w_out=w(ks[11], (V, C)),              # nn.Linear(C, V)
      b_out=w(ks[12], (V,), 0.05),
  )


def prepare_params(raw, ext_vocab_size, tile_n=TILE_N):
  w_ih, w_hh = raw["gru_w_ih"], raw["gru_w_hh"]
  H = w_hh.shape[1]
  Hp = _round_up(H, 128)        # 128-aligned gate blocks: [r|pad|z|pad|n|pad]

  def pad_gate_w(w):
    x = w.shape[1]
    out = jnp.zeros((x, 3 * Hp), jnp.float32)
    for g in range(3):
      out = out.at[:, g * Hp:g * Hp + H].set(w[g * H:(g + 1) * H].T)
    return out

  def pad_gate_b(b):
    out = jnp.zeros((1, 3 * Hp), jnp.float32)
    for g in range(3):
      out = out.at[0, g * Hp:g * Hp + H].set(b[g * H:(g + 1) * H])
    return out

  w_out, b_out = raw["w_out"], raw["b_out"]
  V, C = w_out.shape
  Ee = C - 2 * H
  P = _round_up(max(ext_vocab_size, V), tile_n)

  # Vocab projection split into row blocks (no lane concat in-kernel), bf16.
  # TODO(synk): int8 (v5e/v6e) / fp8 (v7x) quantization with per-column scales.
  w1 = jnp.zeros((H, P), jnp.float32).at[:, :V].set(w_out[:, :H].T)
  w2 = jnp.zeros((Ee, P), jnp.float32).at[:, :V].set(w_out[:, H:H + Ee].T)
  w3 = jnp.zeros((H, P), jnp.float32).at[:, :V].set(w_out[:, H + Ee:].T)
  # NEG_INF baked into the padded bias columns -> no in-kernel vocab mask.
  b_fused = jnp.full((1, P), NEG_INF, jnp.float32).at[0, :V].set(b_out)

  w_ptr = raw["w_ptr"][0]
  scalars = jnp.array([[raw["b_enc_bi"][0], raw["b_dec_bi"][0],
                        raw["cover_weight"][0], raw["b_ptr"][0]]], jnp.float32)

  return dict(
      hidden_size=H, enc_hidden_size=Ee, tile_n=tile_n, proj_width=P,
      w_i=pad_gate_w(w_ih), b_i=pad_gate_b(raw["gru_b_ih"]),
      w_h=pad_gate_w(w_hh), b_h=pad_gate_b(raw["gru_b_hh"]),
      w_enc_bi=raw["w_enc_bi"], w_dec_bi=raw["w_dec_bi"],
      wp_h=w_ptr[:H].reshape(1, H), wp_e=w_ptr[H:H + Ee].reshape(1, Ee),
      wp_d=w_ptr[H + Ee:].reshape(1, H),
      w1=w1.astype(jnp.bfloat16), w2=w2.astype(jnp.bfloat16),
      w3=w3.astype(jnp.bfloat16),
      b_fused=b_fused, scalars=scalars)


# --------------------------------------------------------------------------
# Pure-JAX reference (mirrors the PyTorch forward; precision-matched on the
# bf16 vocab projection) for the correctness check.
# --------------------------------------------------------------------------
def reference_forward(raw, embedded, hidden, encoder_hidden, decoder_states,
                      coverage_vector, encoder_word_idx, *, ext_vocab_size):
  w_ir, w_iz, w_in = jnp.split(raw["gru_w_ih"], 3, axis=0)
  w_hr, w_hz, w_hn = jnp.split(raw["gru_w_hh"], 3, axis=0)
  b_ir, b_iz, b_in = jnp.split(raw["gru_b_ih"], 3)
  b_hr, b_hz, b_hn = jnp.split(raw["gru_b_hh"], 3)

  h = hidden[0]
  r = jax.nn.sigmoid(embedded @ w_ir.T + b_ir + h @ w_hr.T + b_hr)
  z = jax.nn.sigmoid(embedded @ w_iz.T + b_iz + h @ w_hz.T + b_hz)
  n = jnp.tanh(embedded @ w_in.T + b_in + r * (h @ w_hn.T + b_hn))
  h_new = (1 - z) * n + z * h

  scores = jnp.einsum("bi,ij,sbj->sb", h_new, raw["w_enc_bi"],
                      encoder_hidden) + raw["b_enc_bi"][0]
  scores = scores + raw["cover_weight"][0] * jnp.log(coverage_vector.T + EPS)
  attn = jax.nn.softmax(scores, axis=0)
  enc_attn = attn.T
  enc_ctx = jnp.einsum("sbe,sb->be", encoder_hidden, attn)

  dscores = jnp.einsum("bi,ij,tbj->tb", h_new, raw["w_dec_bi"],
                       decoder_states) + raw["b_dec_bi"][0]
  dattn = jax.nn.softmax(dscores, axis=0)
  dec_ctx = jnp.einsum("tbh,tb->bh", decoder_states, dattn)

  combined = jnp.concatenate([h_new, enc_ctx, dec_ctx], axis=-1)
  # Precision-matched to the kernel: bf16 weights/activations (f32 accumulate)
  # for the big vocab projection; f32 for the tiny pointer gate.
  c_bf = combined.astype(jnp.bfloat16)
  logits = jnp.dot(c_bf, raw["w_out"].T.astype(jnp.bfloat16),
                   preferred_element_type=jnp.float32) + raw["b_out"]
  ptr_logit = combined @ raw["w_ptr"].T + raw["b_ptr"]
  prob_ptr = jax.nn.sigmoid(ptr_logit)
  gen = jax.nn.softmax(logits, axis=1)
  out = (1 - prob_ptr) * gen
  out = jnp.pad(out, ((0, 0), (0, ext_vocab_size - logits.shape[1])))
  ptr_w = prob_ptr * enc_attn
  out = jax.vmap(lambda o, i, v: o.at[i].add(v))(out, encoder_word_idx, ptr_w)
  out = jnp.log(out + EPS)
  return out, h_new[None], enc_attn, prob_ptr


if __name__ == "__main__":
  # NOTE: dropout layers (in_drop / rnn_drop / out_drop) are inference no-ops.
  vocab_size, embed_size, hidden_size = 200, 16, 32
  enc_hidden_size = hidden_size
  B, S, T = 2, 8, 4
  ext_vocab_size = 240        # -> proj_width 256 = two 128-wide vocab tiles

  key = jax.random.PRNGKey(0)
  kp, kd = jax.random.split(key)
  raw = init_raw_params(kp, vocab_size, embed_size, hidden_size,
                        enc_hidden_size)
  prepared = prepare_params(raw, ext_vocab_size)

  ks = jax.random.split(kd, 6)
  embedded = jax.random.normal(ks[0], (B, embed_size), jnp.float32)
  hidden = jax.random.normal(ks[1], (1, B, hidden_size), jnp.float32)
  encoder_hidden = jax.random.normal(ks[2], (S, B, enc_hidden_size),
                                     jnp.float32)
  decoder_states = jax.random.normal(ks[3], (T, B, hidden_size), jnp.float32)
  coverage_vector = jax.random.uniform(ks[4], (B, S), jnp.float32, 0.05, 1.0)
  encoder_word_idx = jax.random.randint(ks[5], (B, S), 0, ext_vocab_size,
                                        jnp.int32)

  # Hoisted per-sequence layout prep (loop-invariant across decode steps).
  enc_hidden_bm = jnp.transpose(encoder_hidden, (1, 0, 2))        # (B, S, Ee)
  enc_word_idx_sb = jnp.transpose(encoder_word_idx)[:, :, None]   # (S, B, 1)

  out_log, h_new, enc_attn, prob_ptr = decoder_rnn_forward(
      prepared, embedded, hidden, enc_hidden_bm, decoder_states,
      coverage_vector, enc_word_idx_sb, ext_vocab_size=ext_vocab_size)
  jax.block_until_ready((out_log, h_new, enc_attn, prob_ptr))

  with jax.default_matmul_precision("float32"):
    ref = reference_forward(
        raw, embedded, hidden, encoder_hidden, decoder_states,
        coverage_vector, encoder_word_idx, ext_vocab_size=ext_vocab_size)
  ref = jax.block_until_ready(ref)

  for got, want in zip((out_log, h_new, enc_attn, prob_ptr), ref):
    np.testing.assert_allclose(np.asarray(got), np.asarray(want),
                               rtol=3e-3, atol=3e-3)

  print("KERNEL_OK")
</pallas_src>

<mosaic_0001>
module attributes {stable_mosaic.version = 11 : i64} {
  func.func @decoder_project_kernel(%arg0: i32, %arg1: memref<2x16xf32, #tpu.memory_space<vmem>>, %arg2: memref<2x32xf32, #tpu.memory_space<vmem>>, %arg3: memref<2x8x32xf32, #tpu.memory_space<vmem>>, %arg4: memref<2x4x32xf32, #tpu.memory_space<vmem>>, %arg5: memref<2x8xf32, #tpu.memory_space<vmem>>, %arg6: memref<16x384xf32, #tpu.memory_space<vmem>>, %arg7: memref<1x384xf32, #tpu.memory_space<vmem>>, %arg8: memref<32x384xf32, #tpu.memory_space<vmem>>, %arg9: memref<1x384xf32, #tpu.memory_space<vmem>>, %arg10: memref<32x32xf32, #tpu.memory_space<vmem>>, %arg11: memref<32x32xf32, #tpu.memory_space<vmem>>, %arg12: memref<1x32xf32, #tpu.memory_space<vmem>>, %arg13: memref<1x32xf32, #tpu.memory_space<vmem>>, %arg14: memref<1x32xf32, #tpu.memory_space<vmem>>, %arg15: memref<32x128xbf16, #tpu.memory_space<vmem>>, %arg16: memref<32x128xbf16, #tpu.memory_space<vmem>>, %arg17: memref<32x128xbf16, #tpu.memory_space<vmem>>, %arg18: memref<1x128xf32, #tpu.memory_space<vmem>>, %arg19: memref<1x4xf32, #tpu.memory_space<vmem>>, %arg20: memref<2x128xf32, #tpu.memory_space<vmem>>, %arg21: memref<2x128xf32, #tpu.memory_space<vmem>>, %arg22: memref<2x32xf32, #tpu.memory_space<vmem>>, %arg23: memref<2x32xf32, #tpu.memory_space<vmem>>, %arg24: memref<2x32xf32, #tpu.memory_space<vmem>>, %arg25: memref<2x1xf32, #tpu.memory_space<vmem>>, %arg26: memref<2x1xf32, #tpu.memory_space<vmem>>) attributes {dimension_semantics = [#tpu.dimension_semantics<arbitrary>], iteration_bounds = array<i64: 2>, scalar_prefetch = 0 : i64, scratch_operands = 5 : i64, tpu.core_type = #tpu.core_type<tc>, window_params = [{pipeline_mode = #tpu.pipeline_mode<synchronous>, transform_indices = @transform_0, window_bounds = array<i64: 2, 16>}, {pipeline_mode = #tpu.pipeline_mode<synchronous>, transform_indices = @transform_1, window_bounds = array<i64: 2, 32>}, {pipeline_mode = #tpu.pipeline_mode<synchronous>, transform_indices = @transform_2, window_bounds = array<i64: 2, 8, 32>}, {pipeline_mode = #tpu.pipeline_mode<synchronous>, transform_indices = @transform_3, window_bounds = array<i64: 2, 4, 32>}, {pipeline_mode = #tpu.pipeline_mode<synchronous>, transform_indices = @transform_4, window_bounds = array<i64: 2, 8>}, {pipeline_mode = #tpu.pipeline_mode<synchronous>, transform_indices = @transform_5, window_bounds = array<i64: 16, 384>}, {pipeline_mode = #tpu.pipeline_mode<synchronous>, transform_indices = @transform_6, window_bounds = array<i64: 1, 384>}, {pipeline_mode = #tpu.pipeline_mode<synchronous>, transform_indices = @transform_7, window_bounds = array<i64: 32, 384>}, {pipeline_mode = #tpu.pipeline_mode<synchronous>, transform_indices = @transform_8, window_bounds = array<i64: 1, 384>}, {pipeline_mode = #tpu.pipeline_mode<synchronous>, transform_indices = @transform_9, window_bounds = array<i64: 32, 32>}, {pipeline_mode = #tpu.pipeline_mode<synchronous>, transform_indices = @transform_10, window_bounds = array<i64: 32, 32>}, {pipeline_mode = #tpu.pipeline_mode<synchronous>, transform_indices = @transform_11, window_bounds = array<i64: 1, 32>}, {pipeline_mode = #tpu.pipeline_mode<synchronous>, transform_indices = @transform_12, window_bounds = array<i64: 1, 32>}, {pipeline_mode = #tpu.pipeline_mode<synchronous>, transform_indices = @transform_13, window_bounds = array<i64: 1, 32>}, {transform_indices = @transform_14, window_bounds = array<i64: 32, 128>}, {transform_indices = @transform_15, window_bounds = array<i64: 32, 128>}, {transform_indices = @transform_16, window_bounds = array<i64: 32, 128>}, {transform_indices = @transform_17, window_bounds = array<i64: 1, 128>}, {pipeline_mode = #tpu.pipeline_mode<synchronous>, transform_indices = @transform_18, window_bounds = array<i64: 1, 4>}, {transform_indices = @transform_19, window_bounds = array<i64: 2, 128>}, {pipeline_mode = #tpu.pipeline_mode<synchronous>, transform_indices = @transform_20, window_bounds = array<i64: 2, 128>}]} {
    %c0_i32 = arith.constant 0 : i32
    %0 = arith.cmpi eq, %arg0, %c0_i32 : i32
    %1 = arith.extui %0 : i1 to i32
    %c0_i32_0 = arith.constant 0 : i32
    %2 = arith.cmpi ne, %1, %c0_i32_0 : i32
    scf.if %2 {
      %c0_31 = arith.constant 0 : index
      %c0_32 = arith.constant 0 : index
      %41 = vector.load %arg1[%c0_31, %c0_32] : memref<2x16xf32, #tpu.memory_space<vmem>>, vector<2x16xf32>
      %c0_33 = arith.constant 0 : index
      %c0_34 = arith.constant 0 : index
      %42 = vector.load %arg2[%c0_33, %c0_34] : memref<2x32xf32, #tpu.memory_space<vmem>>, vector<2x32xf32>
      %c0_35 = arith.constant 0 : index
      %c0_36 = arith.constant 0 : index
      %43 = vector.load %arg6[%c0_35, %c0_36] : memref<16x384xf32, #tpu.memory_space<vmem>>, vector<16x384xf32>
      %cst_37 = arith.constant dense<0.000000e+00> : vector<2x384xf32>
      %44 = tpu.matmul %41, %43, %cst_37 {dimension_numbers = #tpu.dot_dimension_numbers<[1], [0], [0], [1], [0, 0, 1, 1], [], []>} : vector<2x16xf32>, vector<16x384xf32>, vector<2x384xf32> -> vector<2x384xf32>
      %c0_38 = arith.constant 0 : index
      %c0_39 = arith.constant 0 : index
      %45 = vector.load %arg7[%c0_38, %c0_39] : memref<1x384xf32, #tpu.memory_space<vmem>>, vector<1x384xf32>
      %46 = vector.broadcast %45 : vector<1x384xf32> to vector<2x384xf32>
      %47 = arith.addf %44, %46 : vector<2x384xf32>
      %c0_40 = arith.constant 0 : index
      %c0_41 = arith.constant 0 : index
      %48 = vector.load %arg8[%c0_40, %c0_41] : memref<32x384xf32, #tpu.memory_space<vmem>>, vector<32x384xf32>
      %cst_42 = arith.constant dense<0.000000e+00> : vector<2x384xf32>
      %49 = tpu.matmul %42, %48, %cst_42 {dimension_numbers = #tpu.dot_dimension_numbers<[1], [0], [0], [1], [0, 0, 1, 1], [], []>} : vector<2x32xf32>, vector<32x384xf32>, vector<2x384xf32> -> vector<2x384xf32>
      %c0_43 = arith.constant 0 : index
      %c0_44 = arith.constant 0 : index
      %50 = vector.load %arg9[%c0_43, %c0_44] : memref<1x384xf32, #tpu.memory_space<vmem>>, vector<1x384xf32>
      %51 = vector.broadcast %50 : vector<1x384xf32> to vector<2x384xf32>
      %52 = arith.addf %49, %51 : vector<2x384xf32>
      %53 = vector.extract_strided_slice %47 {offsets = [0, 0], sizes = [2, 32], strides = [1, 1]} : vector<2x384xf32> to vector<2x32xf32>
      %54 = vector.extract_strided_slice %52 {offsets = [0, 0], sizes = [2, 32], strides = [1, 1]} : vector<2x384xf32> to vector<2x32xf32>
      %55 = arith.addf %53, %54 : vector<2x32xf32>
      %56 = arith.negf %55 : vector<2x32xf32>
      %57 = math.exp %56 : vector<2x32xf32>
      %cst_45 = arith.constant 1.000000e+00 : f32
      %58 = vector.broadcast %cst_45 : f32 to vector<2x32xf32>
      %59 = arith.addf %58, %57 : vector<2x32xf32>
      %60 = arith.divf %58, %59 : vector<2x32xf32>
      %61 = vector.extract_strided_slice %47 {offsets = [0, 128], sizes = [2, 32], strides = [1, 1]} : vector<2x384xf32> to vector<2x32xf32>
      %62 = vector.extract_strided_slice %52 {offsets = [0, 128], sizes = [2, 32], strides = [1, 1]} : vector<2x384xf32> to vector<2x32xf32>
      %63 = arith.addf %61, %62 : vector<2x32xf32>
      %64 = arith.negf %63 : vector<2x32xf32>
      %65 = math.exp %64 : vector<2x32xf32>
      %cst_46 = arith.constant 1.000000e+00 : f32
      %66 = vector.broadcast %cst_46 : f32 to vector<2x32xf32>
      %67 = arith.addf %66, %65 : vector<2x32xf32>
      %68 = arith.divf %66, %67 : vector<2x32xf32>
      %69 = vector.extract_strided_slice %47 {offsets = [0, 256], sizes = [2, 32], strides = [1, 1]} : vector<2x384xf32> to vector<2x32xf32>
      %70 = vector.extract_strided_slice %52 {offsets = [0, 256], sizes = [2, 32], strides = [1, 1]} : vector<2x384xf32> to vector<2x32xf32>
      %71 = arith.mulf %60, %70 : vector<2x32xf32>
      %72 = arith.addf %69, %71 : vector<2x32xf32>
      %73 = math.tanh %72 : vector<2x32xf32>
      %cst_47 = arith.constant 1.000000e+00 : f32
      %74 = vector.broadcast %cst_47 : f32 to vector<2x32xf32>
      %75 = arith.subf %74, %68 : vector<2x32xf32>
      %76 = arith.mulf %75, %73 : vector<2x32xf32>
      %77 = arith.mulf %68, %42 : vector<2x32xf32>
      %78 = arith.addf %76, %77 : vector<2x32xf32>
      %c0_48 = arith.constant 0 : index
      %c0_49 = arith.constant 0 : index
      %79 = vector.load %arg19[%c0_48, %c0_49] : memref<1x4xf32, #tpu.memory_space<vmem>>, vector<1x1xf32>
      %c0_50 = arith.constant 0 : index
      %c1 = arith.constant 1 : index
      %80 = vector.load %arg19[%c0_50, %c1] : memref<1x4xf32, #tpu.memory_space<vmem>>, vector<1x1xf32>
      %c0_51 = arith.constant 0 : index
      %c2 = arith.constant 2 : index
      %81 = vector.load %arg19[%c0_51, %c2] : memref<1x4xf32, #tpu.memory_space<vmem>>, vector<1x1xf32>
      %c0_52 = arith.constant 0 : index
      %c3 = arith.constant 3 : index
      %82 = vector.load %arg19[%c0_52, %c3] : memref<1x4xf32, #tpu.memory_space<vmem>>, vector<1x1xf32>
      %c0_53 = arith.constant 0 : index
      %c0_54 = arith.constant 0 : index
      %c0_55 = arith.constant 0 : index
      %83 = vector.load %arg3[%c0_53, %c0_54, %c0_55] : memref<2x8x32xf32, #tpu.memory_space<vmem>>, vector<2x8x32xf32>
      %c0_56 = arith.constant 0 : index
      %c0_57 = arith.constant 0 : index
      %84 = vector.load %arg10[%c0_56, %c0_57] : memref<32x32xf32, #tpu.memory_space<vmem>>, vector<32x32xf32>
      %cst_58 = arith.constant dense<0.000000e+00> : vector<2x32xf32>
      %85 = tpu.matmul %78, %84, %cst_58 {dimension_numbers = #tpu.dot_dimension_numbers<[1], [0], [0], [1], [0, 0, 1, 1], [], []>} : vector<2x32xf32>, vector<32x32xf32>, vector<2x32xf32> -> vector<2x32xf32>
      %86 = vector.shape_cast %85 : vector<2x32xf32> to vector<2x1x32xf32>
      "tpu.trace_start"() <{level = 10 : i32, message = "bqe,bse->bqs"}> : () -> ()
      %cst_59 = arith.constant dense<0.000000e+00> : vector<2x1x8xf32>
      %87 = tpu.matmul %86, %83, %cst_59 {dimension_numbers = #tpu.dot_dimension_numbers<[2], [2], [1], [1], [0, 0, 0, 1, 1, 1], [0], [0]>} : vector<2x1x32xf32>, vector<2x8x32xf32>, vector<2x1x8xf32> -> vector<2x1x8xf32>
      "tpu.trace_stop"() : () -> ()
      %88 = vector.shape_cast %87 : vector<2x1x8xf32> to vector<2x8xf32>
      %89 = vector.broadcast %79 : vector<1x1xf32> to vector<2x8xf32>
      %90 = arith.addf %88, %89 : vector<2x8xf32>
      %c0_60 = arith.constant 0 : index
      %c0_61 = arith.constant 0 : index
      %91 = vector.load %arg5[%c0_60, %c0_61] : memref<2x8xf32, #tpu.memory_space<vmem>>, vector<2x8xf32>
      %cst_62 = arith.constant 9.99999979E-32 : f32
      %92 = vector.broadcast %cst_62 : f32 to vector<2x8xf32>
      %93 = arith.addf %91, %92 : vector<2x8xf32>
      %94 = math.log %93 : vector<2x8xf32>
      %95 = vector.broadcast %81 : vector<1x1xf32> to vector<2x8xf32>
      %96 = arith.mulf %95, %94 : vector<2x8xf32>
      %97 = arith.addf %90, %96 : vector<2x8xf32>
      %cst_63 = arith.constant dense<0xFF800000> : vector<2xf32>
      %98 = vector.multi_reduction <maximumf>, %97, %cst_63 [1] : vector<2x8xf32> to vector<2xf32>
      %99 = vector.shape_cast %98 : vector<2xf32> to vector<2x1xf32>
      %100 = vector.broadcast %99 : vector<2x1xf32> to vector<2x8xf32>
      %101 = arith.subf %97, %100 : vector<2x8xf32>
      %102 = math.exp %101 : vector<2x8xf32>
      %cst_64 = arith.constant dense<0.000000e+00> : vector<2xf32>
      %103 = vector.multi_reduction <add>, %102, %cst_64 [1] : vector<2x8xf32> to vector<2xf32>
      %104 = vector.shape_cast %103 : vector<2xf32> to vector<2x1xf32>
      %105 = tpu.reciprocal %104 {approx = true} : vector<2x1xf32> -> vector<2x1xf32>
      %106 = vector.broadcast %105 : vector<2x1xf32> to vector<2x8xf32>
      %107 = arith.mulf %102, %106 : vector<2x8xf32>
      %108 = vector.shape_cast %107 : vector<2x8xf32> to vector<2x1x8xf32>
      "tpu.trace_start"() <{level = 10 : i32, message = "bqs,bse->bqe"}> : () -> ()
      %cst_65 = arith.constant dense<0.000000e+00> : vector<2x1x32xf32>
      %109 = tpu.matmul %108, %83, %cst_65 {dimension_numbers = #tpu.dot_dimension_numbers<[2], [1], [1], [2], [0, 0, 0, 1, 1, 2], [0], [0]>} : vector<2x1x8xf32>, vector<2x8x32xf32>, vector<2x1x32xf32> -> vector<2x1x32xf32>
      "tpu.trace_stop"() : () -> ()
      %110 = vector.shape_cast %109 : vector<2x1x32xf32> to vector<2x32xf32>
      %c0_66 = arith.constant 0 : index
      %c0_67 = arith.constant 0 : index
      %c0_68 = arith.constant 0 : index
      %111 = vector.load %arg4[%c0_66, %c0_67, %c0_68] : memref<2x4x32xf32, #tpu.memory_space<vmem>>, vector<2x4x32xf32>
      %c0_69 = arith.constant 0 : index
      %c0_70 = arith.constant 0 : index
      %112 = vector.load %arg11[%c0_69, %c0_70] : memref<32x32xf32, #tpu.memory_space<vmem>>, vector<32x32xf32>
      %cst_71 = arith.constant dense<0.000000e+00> : vector<2x32xf32>
      %113 = tpu.matmul %78, %112, %cst_71 {dimension_numbers = #tpu.dot_dimension_numbers<[1], [0], [0], [1], [0, 0, 1, 1], [], []>} : vector<2x32xf32>, vector<32x32xf32>, vector<2x32xf32> -> vector<2x32xf32>
      %114 = vector.shape_cast %113 : vector<2x32xf32> to vector<2x1x32xf32>
      "tpu.trace_start"() <{level = 10 : i32, message = "bqh,bth->bqt"}> : () -> ()
      %cst_72 = arith.constant dense<0.000000e+00> : vector<2x1x4xf32>
      %115 = tpu.matmul %114, %111, %cst_72 {dimension_numbers = #tpu.dot_dimension_numbers<[2], [2], [1], [1], [0, 0, 0, 1, 1, 1], [0], [0]>} : vector<2x1x32xf32>, vector<2x4x32xf32>, vector<2x1x4xf32> -> vector<2x1x4xf32>
      "tpu.trace_stop"() : () -> ()
      %116 = vector.shape_cast %115 : vector<2x1x4xf32> to vector<2x4xf32>
      %117 = vector.broadcast %80 : vector<1x1xf32> to vector<2x4xf32>
      %118 = arith.addf %116, %117 : vector<2x4xf32>
      %cst_73 = arith.constant dense<0xFF800000> : vector<2xf32>
      %119 = vector.multi_reduction <maximumf>, %118, %cst_73 [1] : vector<2x4xf32> to vector<2xf32>
      %120 = vector.shape_cast %119 : vector<2xf32> to vector<2x1xf32>
      %121 = vector.broadcast %120 : vector<2x1xf32> to vector<2x4xf32>
      %122 = arith.subf %118, %121 : vector<2x4xf32>
      %123 = math.exp %122 : vector<2x4xf32>
      %cst_74 = arith.constant dense<0.000000e+00> : vector<2xf32>
      %124 = vector.multi_reduction <add>, %123, %cst_74 [1] : vector<2x4xf32> to vector<2xf32>
      %125 = vector.shape_cast %124 : vector<2xf32> to vector<2x1xf32>
      %126 = tpu.reciprocal %125 {approx = true} : vector<2x1xf32> -> vector<2x1xf32>
      %127 = vector.broadcast %126 : vector<2x1xf32> to vector<2x4xf32>
      %128 = arith.mulf %123, %127 : vector<2x4xf32>
      %129 = vector.shape_cast %128 : vector<2x4xf32> to vector<2x1x4xf32>
      "tpu.trace_start"() <{level = 10 : i32, message = "bqt,bth->bqh"}> : () -> ()
      %cst_75 = arith.constant dense<0.000000e+00> : vector<2x1x32xf32>
      %130 = tpu.matmul %129, %111, %cst_75 {dimension_numbers = #tpu.dot_dimension_numbers<[2], [1], [1], [2], [0, 0, 0, 1, 1, 2], [0], [0]>} : vector<2x1x4xf32>, vector<2x4x32xf32>, vector<2x1x32xf32> -> vector<2x1x32xf32>
      "tpu.trace_stop"() : () -> ()
      %131 = vector.shape_cast %130 : vector<2x1x32xf32> to vector<2x32xf32>
      %c0_76 = arith.constant 0 : index
      %c0_77 = arith.constant 0 : index
      %132 = vector.load %arg12[%c0_76, %c0_77] : memref<1x32xf32, #tpu.memory_space<vmem>>, vector<1x32xf32>
      %133 = vector.broadcast %132 : vector<1x32xf32> to vector<2x32xf32>
      %134 = arith.mulf %78, %133 : vector<2x32xf32>
      %cst_78 = arith.constant dense<0.000000e+00> : vector<2xf32>
      %135 = vector.multi_reduction <add>, %134, %cst_78 [1] : vector<2x32xf32> to vector<2xf32>
      %136 = vector.shape_cast %135 : vector<2xf32> to vector<2x1xf32>
      %c0_79 = arith.constant 0 : index
      %c0_80 = arith.constant 0 : index
      %137 = vector.load %arg13[%c0_79, %c0_80] : memref<1x32xf32, #tpu.memory_space<vmem>>, vector<1x32xf32>
      %138 = vector.broadcast %137 : vector<1x32xf32> to vector<2x32xf32>
      %139 = arith.mulf %110, %138 : vector<2x32xf32>
      %cst_81 = arith.constant dense<0.000000e+00> : vector<2xf32>
      %140 = vector.multi_reduction <add>, %139, %cst_81 [1] : vector<2x32xf32> to vector<2xf32>
      %141 = vector.shape_cast %140 : vector<2xf32> to vector<2x1xf32>
      %142 = arith.addf %136, %141 : vector<2x1xf32>
      %c0_82 = arith.constant 0 : index
      %c0_83 = arith.constant 0 : index
      %143 = vector.load %arg14[%c0_82, %c0_83] : memref<1x32xf32, #tpu.memory_space<vmem>>, vector<1x32xf32>
      %144 = vector.broadcast %143 : vector<1x32xf32> to vector<2x32xf32>
      %145 = arith.mulf %131, %144 : vector<2x32xf32>
      %cst_84 = arith.constant dense<0.000000e+00> : vector<2xf32>
      %146 = vector.multi_reduction <add>, %145, %cst_84 [1] : vector<2x32xf32> to vector<2xf32>
      %147 = vector.shape_cast %146 : vector<2xf32> to vector<2x1xf32>
      %148 = arith.addf %142, %147 : vector<2x1xf32>
      %149 = vector.broadcast %82 : vector<1x1xf32> to vector<2x1xf32>
      %150 = arith.addf %148, %149 : vector<2x1xf32>
      %151 = arith.negf %150 : vector<2x1xf32>
      %152 = math.exp %151 : vector<2x1xf32>
      %cst_85 = arith.constant 1.000000e+00 : f32
      %153 = vector.broadcast %cst_85 : f32 to vector<2x1xf32>
      %154 = arith.addf %153, %152 : vector<2x1xf32>
      %155 = arith.divf %153, %154 : vector<2x1xf32>
      %c0_86 = arith.constant 0 : index
      %c0_87 = arith.constant 0 : index
      %156 = vector.load %arg22[%c0_86, %c0_87] : memref<2x32xf32, #tpu.memory_space<vmem>>, vector<2x32xf32>
      tpu.vector_store %arg22[%c0_86, %c0_87], %78 {strides = array<i32>} : memref<2x32xf32, #tpu.memory_space<vmem>>, vector<2x32xf32>,
      %c0_88 = arith.constant 0 : index
      %c0_89 = arith.constant 0 : index
      %157 = vector.load %arg23[%c0_88, %c0_89] : memref<2x32xf32, #tpu.memory_space<vmem>>, vector<2x32xf32>
      tpu.vector_store %arg23[%c0_88, %c0_89], %110 {strides = array<i32>} : memref<2x32xf32, #tpu.memory_space<vmem>>, vector<2x32xf32>,
      %c0_90 = arith.constant 0 : index
      %c0_91 = arith.constant 0 : index
      %158 = vector.load %arg24[%c0_90, %c0_91] : memref<2x32xf32, #tpu.memory_space<vmem>>, vector<2x32xf32>
      tpu.vector_store %arg24[%c0_90, %c0_91], %131 {strides = array<i32>} : memref<2x32xf32, #tpu.memory_space<vmem>>, vector<2x32xf32>,
      %cst_92 = arith.constant -1.000000e+30 : f32
      %159 = vector.broadcast %cst_92 : f32 to vector<2x1xf32>
      %c0_93 = arith.constant 0 : index
      %c0_94 = arith.constant 0 : index
      %160 = vector.load %arg25[%c0_93, %c0_94] : memref<2x1xf32, #tpu.memory_space<vmem>>, vector<2x1xf32>
      tpu.vector_store %arg25[%c0_93, %c0_94], %159 {strides = array<i32>} : memref<2x1xf32, #tpu.memory_space<vmem>>, vector<2x1xf32>,
      %cst_95 = arith.constant 0.000000e+00 : f32
      %161 = vector.broadcast %cst_95 : f32 to vector<2x1xf32>
      %c0_96 = arith.constant 0 : index
      %c0_97 = arith.constant 0 : index
      %162 = vector.load %arg26[%c0_96, %c0_97] : memref<2x1xf32, #tpu.memory_space<vmem>>, vector<2x1xf32>
      tpu.vector_store %arg26[%c0_96, %c0_97], %161 {strides = array<i32>} : memref<2x1xf32, #tpu.memory_space<vmem>>, vector<2x1xf32>,
      %cst_98 = arith.constant 0.000000e+00 : f32
      %163 = vector.broadcast %cst_98 : f32 to vector<2x128xf32>
      %c0_99 = arith.constant 0 : index
      %c0_100 = arith.constant 0 : index
      %164 = vector.load %arg21[%c0_99, %c0_100] : memref<2x128xf32, #tpu.memory_space<vmem>>, vector<2x128xf32>
      tpu.vector_store %arg21[%c0_99, %c0_100], %163 {strides = array<i32>} : memref<2x128xf32, #tpu.memory_space<vmem>>, vector<2x128xf32>,
      %c0_101 = arith.constant 0 : index
      %c2_102 = arith.constant 2 : index
      %165 = vector.load %arg21[%c0_101, %c2_102] : memref<2x128xf32, #tpu.memory_space<vmem>>, vector<2x1xf32>
      tpu.vector_store %arg21[%c0_101, %c2_102], %155 {strides = array<i32>} : memref<2x128xf32, #tpu.memory_space<vmem>>, vector<2x1xf32>,
      %c0_103 = arith.constant 0 : index
      %c8 = arith.constant 8 : index
      %166 = vector.load %arg21[%c0_103, %c8] : memref<2x128xf32, #tpu.memory_space<vmem>>, vector<2x32xf32>
      tpu.vector_store %arg21[%c0_103, %c8], %78 {strides = array<i32>} : memref<2x128xf32, #tpu.memory_space<vmem>>, vector<2x32xf32>,
      %c0_104 = arith.constant 0 : index
      %c40 = arith.constant 40 : index
      %167 = vector.load %arg21[%c0_104, %c40] : memref<2x128xf32, #tpu.memory_space<vmem>>, vector<2x8xf32>
      tpu.vector_store %arg21[%c0_104, %c40], %107 {strides = array<i32>} : memref<2x128xf32, #tpu.memory_space<vmem>>, vector<2x8xf32>,
    } else {
    }
    %c0 = arith.constant 0 : index
    %c0_1 = arith.constant 0 : index
    %3 = vector.load %arg22[%c0, %c0_1] : memref<2x32xf32, #tpu.memory_space<vmem>>, vector<2x32xf32>
    %4 = arith.truncf %3 : vector<2x32xf32> to vector<2x32xbf16>
    %c0_2 = arith.constant 0 : index
    %c0_3 = arith.constant 0 : index
    %5 = vector.load %arg23[%c0_2, %c0_3] : memref<2x32xf32, #tpu.memory_space<vmem>>, vector<2x32xf32>
    %6 = arith.truncf %5 : vector<2x32xf32> to vector<2x32xbf16>
    %c0_4 = arith.constant 0 : index
    %c0_5 = arith.constant 0 : index
    %7 = vector.load %arg24[%c0_4, %c0_5] : memref<2x32xf32, #tpu.memory_space<vmem>>, vector<2x32xf32>
    %8 = arith.truncf %7 : vector<2x32xf32> to vector<2x32xbf16>
    %c0_6 = arith.constant 0 : index
    %c0_7 = arith.constant 0 : index
    %9 = vector.load %arg15[%c0_6, %c0_7] : memref<32x128xbf16, #tpu.memory_space<vmem>>, vector<32x128xbf16>
    %cst = arith.constant dense<0.000000e+00> : vector<2x128xf32>
    %10 = tpu.matmul %4, %9, %cst {dimension_numbers = #tpu.dot_dimension_numbers<[1], [0], [0], [1], [0, 0, 1, 1], [], []>} : vector<2x32xbf16>, vector<32x128xbf16>, vector<2x128xf32> -> vector<2x128xf32>
    %c0_8 = arith.constant 0 : index
    %c0_9 = arith.constant 0 : index
    %11 = vector.load %arg16[%c0_8, %c0_9] : memref<32x128xbf16, #tpu.memory_space<vmem>>, vector<32x128xbf16>
    %cst_10 = arith.constant dense<0.000000e+00> : vector<2x128xf32>
    %12 = tpu.matmul %6, %11, %cst_10 {dimension_numbers = #tpu.dot_dimension_numbers<[1], [0], [0], [1], [0, 0, 1, 1], [], []>} : vector<2x32xbf16>, vector<32x128xbf16>, vector<2x128xf32> -> vector<2x128xf32>
    %13 = arith.addf %10, %12 : vector<2x128xf32>
    %c0_11 = arith.constant 0 : index
    %c0_12 = arith.constant 0 : index
    %14 = vector.load %arg17[%c0_11, %c0_12] : memref<32x128xbf16, #tpu.memory_space<vmem>>, vector<32x128xbf16>
    %cst_13 = arith.constant dense<0.000000e+00> : vector<2x128xf32>
    %15 = tpu.matmul %8, %14, %cst_13 {dimension_numbers = #tpu.dot_dimension_numbers<[1], [0], [0], [1], [0, 0, 1, 1], [], []>} : vector<2x32xbf16>, vector<32x128xbf16>, vector<2x128xf32> -> vector<2x128xf32>
    %16 = arith.addf %13, %15 : vector<2x128xf32>
    %c0_14 = arith.constant 0 : index
    %c0_15 = arith.constant 0 : index
    %17 = vector.load %arg18[%c0_14, %c0_15] : memref<1x128xf32, #tpu.memory_space<vmem>>, vector<1x128xf32>
    %18 = vector.broadcast %17 : vector<1x128xf32> to vector<2x128xf32>
    %19 = arith.addf %16, %18 : vector<2x128xf32>
    %c0_16 = arith.constant 0 : index
    %c0_17 = arith.constant 0 : index
    %20 = vector.load %arg20[%c0_16, %c0_17] : memref<2x128xf32, #tpu.memory_space<vmem>>, vector<2x128xf32>
    tpu.vector_store %arg20[%c0_16, %c0_17], %19 {strides = array<i32>} : memref<2x128xf32, #tpu.memory_space<vmem>>, vector<2x128xf32>,
    %cst_18 = arith.constant dense<0xFF800000> : vector<2xf32>
    %21 = vector.multi_reduction <maximumf>, %19, %cst_18 [1] : vector<2x128xf32> to vector<2xf32>
    %22 = vector.shape_cast %21 : vector<2xf32> to vector<2x1xf32>
    %c0_19 = arith.constant 0 : index
    %c0_20 = arith.constant 0 : index
    %23 = vector.load %arg25[%c0_19, %c0_20] : memref<2x1xf32, #tpu.memory_space<vmem>>, vector<2x1xf32>
    %24 = arith.maximumf %23, %22 : vector<2x1xf32>
    %c0_21 = arith.constant 0 : index
    %c0_22 = arith.constant 0 : index
    %25 = vector.load %arg26[%c0_21, %c0_22] : memref<2x1xf32, #tpu.memory_space<vmem>>, vector<2x1xf32>
    %c0_23 = arith.constant 0 : index
    %c0_24 = arith.constant 0 : index
    %26 = vector.load %arg25[%c0_23, %c0_24] : memref<2x1xf32, #tpu.memory_space<vmem>>, vector<2x1xf32>
    %27 = arith.subf %26, %24 : vector<2x1xf32>
    %28 = math.exp %27 : vector<2x1xf32>
    %29 = arith.mulf %25, %28 : vector<2x1xf32>
    %30 = vector.broadcast %24 : vector<2x1xf32> to vector<2x128xf32>
    %31 = arith.subf %19, %30 : vector<2x128xf32>
    %32 = math.exp %31 : vector<2x128xf32>
    %cst_25 = arith.constant dense<0.000000e+00> : vector<2xf32>
    %33 = vector.multi_reduction <add>, %32, %cst_25 [1] : vector<2x128xf32> to vector<2xf32>
    %34 = vector.shape_cast %33 : vector<2xf32> to vector<2x1xf32>
    %35 = arith.addf %29, %34 : vector<2x1xf32>
    %c0_26 = arith.constant 0 : index
    %c0_27 = arith.constant 0 : index
    %36 = vector.load %arg26[%c0_26, %c0_27] : memref<2x1xf32, #tpu.memory_space<vmem>>, vector<2x1xf32>
    tpu.vector_store %arg26[%c0_26, %c0_27], %35 {strides = array<i32>} : memref<2x1xf32, #tpu.memory_space<vmem>>, vector<2x1xf32>,
    %c0_28 = arith.constant 0 : index
    %c0_29 = arith.constant 0 : index
    %37 = vector.load %arg25[%c0_28, %c0_29] : memref<2x1xf32, #tpu.memory_space<vmem>>, vector<2x1xf32>
    tpu.vector_store %arg25[%c0_28, %c0_29], %24 {strides = array<i32>} : memref<2x1xf32, #tpu.memory_space<vmem>>, vector<2x1xf32>,
    %c1_i32 = arith.constant 1 : i32
    %38 = arith.cmpi eq, %arg0, %c1_i32 : i32
    %39 = arith.extui %38 : i1 to i32
    %c0_i32_30 = arith.constant 0 : i32
    %40 = arith.cmpi ne, %39, %c0_i32_30 : i32
    scf.if %40 {
      %c0_31 = arith.constant 0 : index
      %c0_32 = arith.constant 0 : index
      %41 = vector.load %arg25[%c0_31, %c0_32] : memref<2x1xf32, #tpu.memory_space<vmem>>, vector<2x1xf32>
      %c0_33 = arith.constant 0 : index
      %c0_34 = arith.constant 0 : index
      %42 = vector.load %arg21[%c0_33, %c0_34] : memref<2x128xf32, #tpu.memory_space<vmem>>, vector<2x1xf32>
      tpu.vector_store %arg21[%c0_33, %c0_34], %41 {strides = array<i32>} : memref<2x128xf32, #tpu.memory_space<vmem>>, vector<2x1xf32>,
      %c0_35 = arith.constant 0 : index
      %c0_36 = arith.constant 0 : index
      %43 = vector.load %arg26[%c0_35, %c0_36] : memref<2x1xf32, #tpu.memory_space<vmem>>, vector<2x1xf32>
      %c0_37 = arith.constant 0 : index
      %c1 = arith.constant 1 : index
      %44 = vector.load %arg21[%c0_37, %c1] : memref<2x128xf32, #tpu.memory_space<vmem>>, vector<2x1xf32>
      tpu.vector_store %arg21[%c0_37, %c1], %43 {strides = array<i32>} : memref<2x128xf32, #tpu.memory_space<vmem>>, vector<2x1xf32>,
    } else {
    }
    return
  }
  func.func @transform_0(%arg0: i32) -> (i32, i32) {
    %c0_i32 = arith.constant 0 : i32
    %c0_i32_0 = arith.constant 0 : i32
    %c0_i32_1 = arith.constant 0 : i32
    return %c0_i32, %c0_i32_0 : i32, i32
  }
  func.func @transform_1(%arg0: i32) -> (i32, i32) {
    %c0_i32 = arith.constant 0 : i32
    %c0_i32_0 = arith.constant 0 : i32
    %c0_i32_1 = arith.constant 0 : i32
    return %c0_i32, %c0_i32_0 : i32, i32
  }
  func.func @transform_2(%arg0: i32) -> (i32, i32, i32) {
    %c0_i32 = arith.constant 0 : i32
    %c0_i32_0 = arith.constant 0 : i32
    %c0_i32_1 = arith.constant 0 : i32
    %c0_i32_2 = arith.constant 0 : i32
    return %c0_i32, %c0_i32_0, %c0_i32_1 : i32, i32, i32
  }
  func.func @transform_3(%arg0: i32) -> (i32, i32, i32) {
    %c0_i32 = arith.constant 0 : i32
    %c0_i32_0 = arith.constant 0 : i32
    %c0_i32_1 = arith.constant 0 : i32
    %c0_i32_2 = arith.constant 0 : i32
    return %c0_i32, %c0_i32_0, %c0_i32_1 : i32, i32, i32
  }
  func.func @transform_4(%arg0: i32) -> (i32, i32) {
    %c0_i32 = arith.constant 0 : i32
    %c0_i32_0 = arith.constant 0 : i32
    %c0_i32_1 = arith.constant 0 : i32
    return %c0_i32, %c0_i32_0 : i32, i32
  }
  func.func @transform_5(%arg0: i32) -> (i32, i32) {
    %c0_i32 = arith.constant 0 : i32
    %c0_i32_0 = arith.constant 0 : i32
    %c0_i32_1 = arith.constant 0 : i32
    return %c0_i32, %c0_i32_0 : i32, i32
  }
  func.func @transform_6(%arg0: i32) -> (i32, i32) {
    %c0_i32 = arith.constant 0 : i32
    %c0_i32_0 = arith.constant 0 : i32
    %c0_i32_1 = arith.constant 0 : i32
    return %c0_i32, %c0_i32_0 : i32, i32
  }
  func.func @transform_7(%arg0: i32) -> (i32, i32) {
    %c0_i32 = arith.constant 0 : i32
    %c0_i32_0 = arith.constant 0 : i32
    %c0_i32_1 = arith.constant 0 : i32
    return %c0_i32, %c0_i32_0 : i32, i32
  }
  func.func @transform_8(%arg0: i32) -> (i32, i32) {
    %c0_i32 = arith.constant 0 : i32
    %c0_i32_0 = arith.constant 0 : i32
    %c0_i32_1 = arith.constant 0 : i32
    return %c0_i32, %c0_i32_0 : i32, i32
  }
  func.func @transform_9(%arg0: i32) -> (i32, i32) {
    %c0_i32 = arith.constant 0 : i32
    %c0_i32_0 = arith.constant 0 : i32
    %c0_i32_1 = arith.constant 0 : i32
    return %c0_i32, %c0_i32_0 : i32, i32
  }
  func.func @transform_10(%arg0: i32) -> (i32, i32) {
    %c0_i32 = arith.constant 0 : i32
    %c0_i32_0 = arith.constant 0 : i32
    %c0_i32_1 = arith.constant 0 : i32
    return %c0_i32, %c0_i32_0 : i32, i32
  }
  func.func @transform_11(%arg0: i32) -> (i32, i32) {
    %c0_i32 = arith.constant 0 : i32
    %c0_i32_0 = arith.constant 0 : i32
    %c0_i32_1 = arith.constant 0 : i32
    return %c0_i32, %c0_i32_0 : i32, i32
  }
  func.func @transform_12(%arg0: i32) -> (i32, i32) {
    %c0_i32 = arith.constant 0 : i32
    %c0_i32_0 = arith.constant 0 : i32
    %c0_i32_1 = arith.constant 0 : i32
    return %c0_i32, %c0_i32_0 : i32, i32
  }
  func.func @transform_13(%arg0: i32) -> (i32, i32) {
    %c0_i32 = arith.constant 0 : i32
    %c0_i32_0 = arith.constant 0 : i32
    %c0_i32_1 = arith.constant 0 : i32
    return %c0_i32, %c0_i32_0 : i32, i32
  }
  func.func @transform_14(%arg0: i32) -> (i32, i32) {
    %c0_i32 = arith.constant 0 : i32
    %c0_i32_0 = arith.constant 0 : i32
    return %c0_i32, %arg0 : i32, i32
  }
  func.func @transform_15(%arg0: i32) -> (i32, i32) {
    %c0_i32 = arith.constant 0 : i32
    %c0_i32_0 = arith.constant 0 : i32
    return %c0_i32, %arg0 : i32, i32
  }
  func.func @transform_16(%arg0: i32) -> (i32, i32) {
    %c0_i32 = arith.constant 0 : i32
    %c0_i32_0 = arith.constant 0 : i32
    return %c0_i32, %arg0 : i32, i32
  }
  func.func @transform_17(%arg0: i32) -> (i32, i32) {
    %c0_i32 = arith.constant 0 : i32
    %c0_i32_0 = arith.constant 0 : i32
    return %c0_i32, %arg0 : i32, i32
  }
  func.func @transform_18(%arg0: i32) -> (i32, i32) {
    %c0_i32 = arith.constant 0 : i32
    %c0_i32_0 = arith.constant 0 : i32
    %c0_i32_1 = arith.constant 0 : i32
    return %c0_i32, %c0_i32_0 : i32, i32
  }
  func.func @transform_19(%arg0: i32) -> (i32, i32) {
    %c0_i32 = arith.constant 0 : i32
    %c0_i32_0 = arith.constant 0 : i32
    return %c0_i32, %arg0 : i32, i32
  }
  func.func @transform_20(%arg0: i32) -> (i32, i32) {
    %c0_i32 = arith.constant 0 : i32
    %c0_i32_0 = arith.constant 0 : i32
    %c0_i32_1 = arith.constant 0 : i32
    return %c0_i32, %c0_i32_0 : i32, i32
  }
}

</mosaic_0001>

<llo_original>
// kernel: tpu_custom_call.1
$region0: #{tpu_custom_call.1}
  #allocation0 [shape = 'u32[]', space=smem, size = 0x4, offset = 0x4, fixed_abs, tag = 'smem constant byte address 0x4 - core index']
  #allocation1 [shape = 'u32[144,128]{1,0:T(1,128)}', space=vmem, size = 0x12000, scoped, tag = 'internal scratch']
  #allocation2 [shape = 'f32[2,32]{1,0:T(2,128)}', space=vmem, size = 0x400, scoped, tag = 'scratch operand']
  #allocation3 [shape = 'f32[2,32]{1,0:T(2,128)}', space=vmem, size = 0x400, scoped, tag = 'scratch operand']
  #allocation4 [shape = 'f32[2,32]{1,0:T(2,128)}', space=vmem, size = 0x400, scoped, tag = 'scratch operand']
  #allocation5 [shape = 'f32[2,1]{1,0:T(2,128)}', space=vmem, size = 0x400, scoped, tag = 'scratch operand']
  #allocation6 [shape = 'f32[2,1]{1,0:T(2,128)}', space=vmem, size = 0x400, scoped, tag = 'scratch operand']
  %s0 = inlined_call_operand.hbm [shape: f32[2,16], index: 0, kind: input, shape index: {}]
  %s1 = inlined_call_operand.hbm [shape: f32[2,32], index: 1, kind: input, shape index: {}]
  %s2 = inlined_call_operand.hbm [shape: f32[2,8,32], index: 2, kind: input, shape index: {}]
  %s3 = inlined_call_operand.hbm [shape: f32[2,4,32], index: 3, kind: input, shape index: {}]
  %s4 = inlined_call_operand.hbm [shape: f32[2,8], index: 4, kind: input, shape index: {}]
  %s5 = inlined_call_operand.hbm [shape: f32[16,384], index: 5, kind: input, shape index: {}]
  %s6 = inlined_call_operand.vmem [shape: f32[1,384], index: 6, kind: input, shape index: {}]
  %s7 = inlined_call_operand.hbm [shape: f32[32,384], index: 7, kind: input, shape index: {}]
  %s8 = inlined_call_operand.vmem [shape: f32[1,384], index: 8, kind: input, shape index: {}]
  %s9 = inlined_call_operand.hbm [shape: f32[32,32], index: 9, kind: input, shape index: {}]
  %s10 = inlined_call_operand.hbm [shape: f32[32,32], index: 10, kind: input, shape index: {}]
  %s11 = inlined_call_operand.vmem [shape: f32[1,32], index: 11, kind: input, shape index: {}]
  %s12 = inlined_call_operand.vmem [shape: f32[1,32], index: 12, kind: input, shape index: {}]
  %s13 = inlined_call_operand.vmem [shape: f32[1,32], index: 13, kind: input, shape index: {}]
  %s14 = inlined_call_operand.hbm [shape: bf16[32,256], index: 14, kind: input, shape index: {}]
  %s15 = inlined_call_operand.hbm [shape: bf16[32,256], index: 15, kind: input, shape index: {}]
  %s16 = inlined_call_operand.hbm [shape: bf16[32,256], index: 16, kind: input, shape index: {}]
  %s17 = inlined_call_operand.vmem [shape: f32[1,256], index: 17, kind: input, shape index: {}]
  %s18 = inlined_call_operand.vmem [shape: f32[1,4], index: 18, kind: input, shape index: {}]
  %s19 = inlined_call_operand.hbm [shape: f32[2,256], index: 19, kind: output, shape index: {0}]
  %s20 = inlined_call_operand.hbm [shape: f32[2,128], index: 20, kind: output, shape index: {1}]
  %21 = xla_tuple %s19, %s20
  %s22 = sld [smem:[#allocation0]]
  $region173: #{tpu_custom_call.1} parent=0
    _
  %s24 = ssub.s32 1, %s22
  %s25 = scalar_select 0, %s24, %s22
  $region1: #{tpu_custom_call.1} parent=0
    #allocation7 [shape = 'u8[1024]{0}', space=vmem, size = 0x400, scoped, tag = 'input window, operand 0, single buffered']
    #allocation8 [shape = 's32[2]{0}', space=sflag, size = 0x8, scoped, tag = 'scoped memory for tpu_custom_call.1']
    #allocation9 [shape = 's32[2]{0}', space=sflag, size = 0x8, scoped, tag = 'scoped memory for tpu_custom_call.1']
    #allocation10 [shape = 'u8[1024]{0}', space=vmem, size = 0x400, scoped, tag = 'input window, operand 1, single buffered']
    #allocation11 [shape = 's32[1]{0}', space=sflag, size = 0x4, scoped, tag = 'scoped memory for tpu_custom_call.1']
    #allocation12 [shape = 'u8[8192]{0}', space=vmem, size = 0x2000, scoped, tag = 'input window, operand 2, single buffered']
    #allocation13 [shape = 'u8[4096]{0}', space=vmem, size = 0x1000, scoped, tag = 'input window, operand 3, single buffered']
    #allocation14 [shape = 's32[1]{0}', space=sflag, size = 0x4, scoped, tag = 'scoped memory for tpu_custom_call.1']
    #allocation15 [shape = 'u8[1024]{0}', space=vmem, size = 0x400, scoped, tag = 'input window, operand 4, single buffered']
    #allocation16 [shape = 'u8[24576]{0}', space=vmem, size = 0x6000, scoped, tag = 'input window, operand 5, single buffered']
    #allocation17 [shape = 's32[1]{0}', space=sflag, size = 0x4, scoped, tag = 'scoped memory for tpu_custom_call.1']
    #allocation18 [shape = 'u8[49152]{0}', space=vmem, size = 0xc000, scoped, tag = 'input window, operand 7, single buffered']
    #allocation19 [shape = 'u8[16384]{0}', space=vmem, size = 0x4000, scoped, tag = 'input window, operand 9, single buffered']
    #allocation20 [shape = 's32[1]{0}', space=sflag, size = 0x4, scoped, tag = 'scoped memory for tpu_custom_call.1']
    #allocation21 [shape = 'u8[16384]{0}', space=vmem, size = 0x4000, scoped, tag = 'input window, operand 10, single buffered']
    #allocation22 [shape = 'u8[16384]{0}', space=vmem, size = 0x4000, scoped, tag = 'input window, operand 14']
    #allocation23 [shape = 's32[2]{0}', space=sflag, size = 0x8, scoped, tag = 'scoped memory for tpu_custom_call.1']
    #allocation24 [shape = 'u8[16384]{0}', space=vmem, size = 0x4000, scoped, tag = 'input window, operand 15']
    #allocation25 [shape = 'u8[16384]{0}', space=vmem, size = 0x4000, scoped, tag = 'input window, operand 16']
    #allocation26 [shape = 's32[2]{0}', space=sflag, size = 0x8, scoped, tag = 'scoped memory for tpu_custom_call.1']
    #allocation27 [shape = 'u8[2048]{0}', space=vmem, size = 0x800, scoped, tag = 'output window, operand 0']
    #allocation28 [shape = 'u8[1024]{0}', space=vmem, size = 0x400, scoped, tag = 'output window, operand 1, single buffered']
    #allocation29 [shape = 's32[1]{0}', space=sflag, size = 0x4, scoped, tag = 'scoped memory for tpu_custom_call.1']
    %26 = vsyncpa [#allocation8], 0
    %27 = vsyncpa [#allocation11], 0
    %28 = vsyncpa [#allocation14], 0
    %29 = vsyncpa [#allocation17], 0
    %30 = vsyncpa [#allocation20], 0
    %31 = vsyncpa [#allocation23], 0
    %s32 = scalar_lea.sflag [#allocation23], 1
    %33 = vsyncpa %s32, 0
    %34 = vsyncpa [#allocation26], 0
    %s35 = scalar_lea.sflag [#allocation26], 1
    %36 = vsyncpa %s35, 0
    %37 = vsyncpa [#allocation9], 0
    %s38 = scalar_lea.sflag [#allocation9], 1
    %39 = vsyncpa %s38, 0
    %40 = vsyncpa [#allocation29], 0
    loop: start=0, step=1, limit=4
    $region2: #{tpu_custom_call.1} parent=1 // loop_pre_header
      _
    $region3: #{tpu_custom_call.1} parent=1 // loop_header
      %s42 = sphi 0, %s46
      %p43 = scmp.ge.s32.totalorder %s42, 4
      %s50 = sphi 0, %s50
      %s52 = sphi 0, %s50
      %s53 = sphi 0, %s52
      %s67 = sphi 0, %s53
      %s71 = sphi 0, %s71
      %s73 = sphi 0, %s71
      %s74 = sphi 0, %s73
      %s88 = sphi 0, %s74
      %s92 = sphi 0, %s92
      %s94 = sphi 0, %s92
      %s95 = sphi 0, %s94
      %s109 = sphi 0, %s95
      %s113 = sphi 0, %s113
      %s115 = sphi 0, %s113
      %s116 = sphi 0, %s115
      %s130 = sphi 0, %s116
      %s134 = sphi 0, %s134
      %s136 = sphi 0, %s134
      %s137 = sphi 0, %s136
      %s151 = sphi 0, %s137
      %s155 = sphi 0, %s155
      %s157 = sphi 0, %s155
      %s158 = sphi 0, %s157
      %s172 = sphi 0, %s158
      %s176 = sphi 0, %s176
      %s178 = sphi 0, %s176
      %s179 = sphi 0, %s178
      %s193 = sphi 0, %s179
      %s197 = sphi 0, %s197
      %s199 = sphi 0, %s197
      %s200 = sphi 0, %s199
      %s214 = sphi 0, %s200
      %s218 = sphi 0, %s218
      %s220 = sphi 0, %s218
      %s221 = sphi 0, %s220
      %s235 = sphi 0, %s221
      %s239 = sphi 0, %s239
      %s241 = sphi 0, %s239
      %s242 = sphi 0, %s241
      %s256 = sphi 0, %s242
      %s260 = sphi 0, %s260
      %s262 = sphi 0, %s260
      %s263 = sphi 0, %s262
      %s277 = sphi 0, %s263
      %s281 = sphi 0, %s281
      %s283 = sphi 0, %s281
      %s284 = sphi 0, %s283
      %s298 = sphi 0, %s284
      %s302 = sphi 0, %s302
      %s304 = sphi 0, %s302
      %s305 = sphi 0, %s304
      %s319 = sphi 0, %s305
      %s323 = sphi 0, %s323
      %s325 = sphi 0, %s323
      %s326 = sphi 0, %s325
      %s340 = sphi 0, %s326
      %s346 = sphi 0, %s348
      %s349 = sphi 0, %s346
      %s350 = sphi 0, %s349
      %s366 = sphi 0, %s350
      %s372 = sphi 0, %s374
      %s375 = sphi 0, %s372
      %s376 = sphi 0, %s375
      %s392 = sphi 0, %s376
      %s398 = sphi 0, %s400
      %s401 = sphi 0, %s398
      %s402 = sphi 0, %s401
      %s418 = sphi 0, %s402
      %s424 = sphi 0, %s426
      %s427 = sphi 0, %s424
      %s428 = sphi 0, %s427
      %s444 = sphi 0, %s428
      %s448 = sphi 0, %s448
      %s450 = sphi 0, %s448
      %s451 = sphi 0, %s450
      %s465 = sphi 0, %s451
      %s471 = sphi 0, %s473
      %s474 = sphi 0, %s471
      %s475 = sphi 0, %s474
      %s491 = sphi 0, %s475
      %s495 = sphi 0, %s495
      %s497 = sphi 0, %s495
      %s498 = sphi 0, %s497
      %s512 = sphi 0, %s498
    $region4: #{tpu_custom_call.1} parent=1 // loop_header_branch
      %45 = sbr.rel (%p43) target = $region8
    $region5: #{tpu_custom_call.1} parent=1 // loop_body
      %s47 = ssub.s32 %s42, 1
      %s48 = ssub.s32 %s42, 2
      %s49 = sadd.s32 %s42, 1
      %s51 = sadd.s32 %s50, 1
      %p54 = scmp.eq.s32.totalorder %s42, 1
      %p55 = scmp.ne.s32.totalorder %s50, %s52
      %p56 = scmp.eq.s32.totalorder %s42, 0
      %p57 = por %p55, %p56
      %p58 = scmp.ne.s32.totalorder %s50, %s52
      %p59 = scmp.eq.s32.totalorder %s47, 1
      %p60 = por %p58, %p59
      %p61 = scmp.ne.s32.totalorder %s52, %s53
      %p62 = scmp.eq.s32.totalorder %s47, 0
      %p63 = por %p61, %p62
      %p64 = scmp.ne.s32.totalorder %s52, %s53
      %p65 = scmp.eq.s32.totalorder %s48, 1
      %p66 = por %p64, %p65
      %p68 = scmp.ne.s32.totalorder %s53, %s67
      %p69 = scmp.eq.s32.totalorder %s48, 0
      %p70 = por %p68, %p69
      %s72 = sadd.s32 %s71, 1
      %p75 = scmp.eq.s32.totalorder %s42, 1
      %p76 = scmp.ne.s32.totalorder %s71, %s73
      %p77 = scmp.eq.s32.totalorder %s42, 0
      %p78 = por %p76, %p77
      %p79 = scmp.ne.s32.totalorder %s71, %s73
      %p80 = scmp.eq.s32.totalorder %s47, 1
      %p81 = por %p79, %p80
      %p82 = scmp.ne.s32.totalorder %s73, %s74
      %p83 = scmp.eq.s32.totalorder %s47, 0
      %p84 = por %p82, %p83
      %p85 = scmp.ne.s32.totalorder %s73, %s74
      %p86 = scmp.eq.s32.totalorder %s48, 1
      %p87 = por %p85, %p86
      %p89 = scmp.ne.s32.totalorder %s74, %s88
      %p90 = scmp.eq.s32.totalorder %s48, 0
      %p91 = por %p89, %p90
      %s93 = sadd.s32 %s92, 1
      %p96 = scmp.eq.s32.totalorder %s42, 1
      %p97 = scmp.ne.s32.totalorder %s92, %s94
      %p98 = scmp.eq.s32.totalorder %s42, 0
      %p99 = por %p97, %p98
      %p100 = scmp.ne.s32.totalorder %s92, %s94
      %p101 = scmp.eq.s32.totalorder %s47, 1
      %p102 = por %p100, %p101
      %p103 = scmp.ne.s32.totalorder %s94, %s95
      %p104 = scmp.eq.s32.totalorder %s47, 0
      %p105 = por %p103, %p104
      %p106 = scmp.ne.s32.totalorder %s94, %s95
      %p107 = scmp.eq.s32.totalorder %s48, 1
      %p108 = por %p106, %p107
      %p110 = scmp.ne.s32.totalorder %s95, %s109
      %p111 = scmp.eq.s32.totalorder %s48, 0
      %p112 = por %p110, %p111
      %s114 = sadd.s32 %s113, 1
      %p117 = scmp.eq.s32.totalorder %s42, 1
      %p118 = scmp.ne.s32.totalorder %s113, %s115
      %p119 = scmp.eq.s32.totalorder %s42, 0
      %p120 = por %p118, %p119
      %p121 = scmp.ne.s32.totalorder %s113, %s115
      %p122 = scmp.eq.s32.totalorder %s47, 1
      %p123 = por %p121, %p122
      %p124 = scmp.ne.s32.totalorder %s115, %s116
      %p125 = scmp.eq.s32.totalorder %s47, 0
      %p126 = por %p124, %p125
      %p127 = scmp.ne.s32.totalorder %s115, %s116
      %p128 = scmp.eq.s32.totalorder %s48, 1
      %p129 = por %p127, %p128
      %p131 = scmp.ne.s32.totalorder %s116, %s130
      %p132 = scmp.eq.s32.totalorder %s48, 0
      %p133 = por %p131, %p132
      %s135 = sadd.s32 %s134, 1
      %p138 = scmp.eq.s32.totalorder %s42, 1
      %p139 = scmp.ne.s32.totalorder %s134, %s136
      %p140 = scmp.eq.s32.totalorder %s42, 0
      %p141 = por %p139, %p140
      %p142 = scmp.ne.s32.totalorder %s134, %s136
      %p143 = scmp.eq.s32.totalorder %s47, 1
      %p144 = por %p142, %p143
      %p145 = scmp.ne.s32.totalorder %s136, %s137
      %p146 = scmp.eq.s32.totalorder %s47, 0
      %p147 = por %p145, %p146
      %p148 = scmp.ne.s32.totalorder %s136, %s137
      %p149 = scmp.eq.s32.totalorder %s48, 1
      %p150 = por %p148, %p149
      %p152 = scmp.ne.s32.totalorder %s137, %s151
      %p153 = scmp.eq.s32.totalorder %s48, 0
      %p154 = por %p152, %p153
      %s156 = sadd.s32 %s155, 1
      %p159 = scmp.eq.s32.totalorder %s42, 1
      %p160 = scmp.ne.s32.totalorder %s155, %s157
      %p161 = scmp.eq.s32.totalorder %s42, 0
      %p162 = por %p160, %p161
      %p163 = scmp.ne.s32.totalorder %s155, %s157
      %p164 = scmp.eq.s32.totalorder %s47, 1
      %p165 = por %p163, %p164
      %p166 = scmp.ne.s32.totalorder %s157, %s158
      %p167 = scmp.eq.s32.totalorder %s47, 0
      %p168 = por %p166, %p167
      %p169 = scmp.ne.s32.totalorder %s157, %s158
      %p170 = scmp.eq.s32.totalorder %s48, 1
      %p171 = por %p169, %p170
      %p173 = scmp.ne.s32.totalorder %s158, %s172
      %p174 = scmp.eq.s32.totalorder %s48, 0
      %p175 = por %p173, %p174
      %s177 = sadd.s32 %s176, 1
      %p180 = scmp.eq.s32.totalorder %s42, 1
      %p181 = scmp.ne.s32.totalorder %s176, %s178
      %p182 = scmp.eq.s32.totalorder %s42, 0
      %p183 = por %p181, %p182
      %p184 = scmp.ne.s32.totalorder %s176, %s178
      %p185 = scmp.eq.s32.totalorder %s47, 1
      %p186 = por %p184, %p185
      %p187 = scmp.ne.s32.totalorder %s178, %s179
      %p188 = scmp.eq.s32.totalorder %s47, 0
      %p189 = por %p187, %p188
      %p190 = scmp.ne.s32.totalorder %s178, %s179
      %p191 = scmp.eq.s32.totalorder %s48, 1
      %p192 = por %p190, %p191
      %p194 = scmp.ne.s32.totalorder %s179, %s193
      %p195 = scmp.eq.s32.totalorder %s48, 0
      %p196 = por %p194, %p195
      %s198 = sadd.s32 %s197, 1
      %p201 = scmp.eq.s32.totalorder %s42, 1
      %p202 = scmp.ne.s32.totalorder %s197, %s199
      %p203 = scmp.eq.s32.totalorder %s42, 0
      %p204 = por %p202, %p203
      %p205 = scmp.ne.s32.totalorder %s197, %s199
      %p206 = scmp.eq.s32.totalorder %s47, 1
      %p207 = por %p205, %p206
      %p208 = scmp.ne.s32.totalorder %s199, %s200
      %p209 = scmp.eq.s32.totalorder %s47, 0
      %p210 = por %p208, %p209
      %p211 = scmp.ne.s32.totalorder %s199, %s200
      %p212 = scmp.eq.s32.totalorder %s48, 1
      %p213 = por %p211, %p212
      %p215 = scmp.ne.s32.totalorder %s200, %s214
      %p216 = scmp.eq.s32.totalorder %s48, 0
      %p217 = por %p215, %p216
      %s219 = sadd.s32 %s218, 1
      %p222 = scmp.eq.s32.totalorder %s42, 1
      %p223 = scmp.ne.s32.totalorder %s218, %s220
      %p224 = scmp.eq.s32.totalorder %s42, 0
      %p225 = por %p223, %p224
      %p226 = scmp.ne.s32.totalorder %s218, %s220
      %p227 = scmp.eq.s32.totalorder %s47, 1
      %p228 = por %p226, %p227
      %p229 = scmp.ne.s32.totalorder %s220, %s221
      %p230 = scmp.eq.s32.totalorder %s47, 0
      %p231 = por %p229, %p230
      %p232 = scmp.ne.s32.totalorder %s220, %s221
      %p233 = scmp.eq.s32.totalorder %s48, 1
      %p234 = por %p232, %p233
      %p236 = scmp.ne.s32.totalorder %s221, %s235
      %p237 = scmp.eq.s32.totalorder %s48, 0
      %p238 = por %p236, %p237
      %s240 = sadd.s32 %s239, 1
      %p243 = scmp.eq.s32.totalorder %s42, 1
      %p244 = scmp.ne.s32.totalorder %s239, %s241
      %p245 = scmp.eq.s32.totalorder %s42, 0
      %p246 = por %p244, %p245
      %p247 = scmp.ne.s32.totalorder %s239, %s241
      %p248 = scmp.eq.s32.totalorder %s47, 1
      %p249 = por %p247, %p248
      %p250 = scmp.ne.s32.totalorder %s241, %s242
      %p251 = scmp.eq.s32.totalorder %s47, 0
      %p252 = por %p250, %p251
      %p253 = scmp.ne.s32.totalorder %s241, %s242
      %p254 = scmp.eq.s32.totalorder %s48, 1
      %p255 = por %p253, %p254
      %p257 = scmp.ne.s32.totalorder %s242, %s256
      %p258 = scmp.eq.s32.totalorder %s48, 0
      %p259 = por %p257, %p258
      %s261 = sadd.s32 %s260, 1
      %p264 = scmp.eq.s32.totalorder %s42, 1
      %p265 = scmp.ne.s32.totalorder %s260, %s262
      %p266 = scmp.eq.s32.totalorder %s42, 0
      %p267 = por %p265, %p266
      %p268 = scmp.ne.s32.totalorder %s260, %s262
      %p269 = scmp.eq.s32.totalorder %s47, 1
      %p270 = por %p268, %p269
      %p271 = scmp.ne.s32.totalorder %s262, %s263
      %p272 = scmp.eq.s32.totalorder %s47, 0
      %p273 = por %p271, %p272
      %p274 = scmp.ne.s32.totalorder %s262, %s263
      %p275 = scmp.eq.s32.totalorder %s48, 1
      %p276 = por %p274, %p275
      %p278 = scmp.ne.s32.totalorder %s263, %s277
      %p279 = scmp.eq.s32.totalorder %s48, 0
      %p280 = por %p278, %p279
      %s282 = sadd.s32 %s281, 1
      %p285 = scmp.eq.s32.totalorder %s42, 1
      %p286 = scmp.ne.s32.totalorder %s281, %s283
      %p287 = scmp.eq.s32.totalorder %s42, 0
      %p288 = por %p286, %p287
      %p289 = scmp.ne.s32.totalorder %s281, %s283
      %p290 = scmp.eq.s32.totalorder %s47, 1
      %p291 = por %p289, %p290
      %p292 = scmp.ne.s32.totalorder %s283, %s284
      %p293 = scmp.eq.s32.totalorder %s47, 0
      %p294 = por %p292, %p293
      %p295 = scmp.ne.s32.totalorder %s283, %s284
      %p296 = scmp.eq.s32.totalorder %s48, 1
      %p297 = por %p295, %p296
      %p299 = scmp.ne.s32.totalorder %s284, %s298
      %p300 = scmp.eq.s32.totalorder %s48, 0
      %p301 = por %p299, %p300
      %s303 = sadd.s32 %s302, 1
      %p306 = scmp.eq.s32.totalorder %s42, 1
      %p307 = scmp.ne.s32.totalorder %s302, %s304
      %p308 = scmp.eq.s32.totalorder %s42, 0
      %p309 = por %p307, %p308
      %p310 = scmp.ne.s32.totalorder %s302, %s304
      %p311 = scmp.eq.s32.totalorder %s47, 1
      %p312 = por %p310, %p311
      %p313 = scmp.ne.s32.totalorder %s304, %s305
      %p314 = scmp.eq.s32.totalorder %s47, 0
      %p315 = por %p313, %p314
      %p316 = scmp.ne.s32.totalorder %s304, %s305
      %p317 = scmp.eq.s32.totalorder %s48, 1
      %p318 = por %p316, %p317
      %p320 = scmp.ne.s32.totalorder %s305, %s319
      %p321 = scmp.eq.s32.totalorder %s48, 0
      %p322 = por %p320, %p321
      %s324 = sadd.s32 %s323, 1
      %p327 = scmp.eq.s32.totalorder %s42, 1
      %p328 = scmp.ne.s32.totalorder %s323, %s325
      %p329 = scmp.eq.s32.totalorder %s42, 0
      %p330 = por %p328, %p329
      %p331 = scmp.ne.s32.totalorder %s323, %s325
      %p332 = scmp.eq.s32.totalorder %s47, 1
      %p333 = por %p331, %p332
      %p334 = scmp.ne.s32.totalorder %s325, %s326
      %p335 = scmp.eq.s32.totalorder %s47, 0
      %p336 = por %p334, %p335
      %p337 = scmp.ne.s32.totalorder %s325, %s326
      %p338 = scmp.eq.s32.totalorder %s48, 1
      %p339 = por %p337, %p338
      %p341 = scmp.ne.s32.totalorder %s326, %s340
      %p342 = scmp.eq.s32.totalorder %s48, 0
      %p343 = por %p341, %p342
      %s344 = ssub.s32 %s42, %s49
      %p345 = scmp.eq.s32.totalorder %s344, 0
      %s347 = sadd.s32 %s346, 1
      %s348 = scalar_select %p345, %s346, %s347
      %p351 = pneg %p345
      %p352 = scmp.eq.s32.totalorder %s42, 1
      %p353 = por %p351, %p352
      %p354 = scmp.ne.s32.totalorder %s346, %s349
      %p355 = scmp.eq.s32.totalorder %s42, 0
      %p356 = por %p354, %p355
      %p357 = scmp.ne.s32.totalorder %s346, %s349
      %p358 = scmp.eq.s32.totalorder %s47, 1
      %p359 = por %p357, %p358
      %p360 = scmp.ne.s32.totalorder %s349, %s350
      %p361 = scmp.eq.s32.totalorder %s47, 0
      %p362 = por %p360, %p361
      %p363 = scmp.ne.s32.totalorder %s349, %s350
      %p364 = scmp.eq.s32.totalorder %s48, 1
      %p365 = por %p363, %p364
      %p367 = scmp.ne.s32.totalorder %s350, %s366
      %p368 = scmp.eq.s32.totalorder %s48, 0
      %p369 = por %p367, %p368
      %s370 = ssub.s32 %s42, %s49
      %p371 = scmp.eq.s32.totalorder %s370, 0
      %s373 = sadd.s32 %s372, 1
      %s374 = scalar_select %p371, %s372, %s373
      %p377 = pneg %p371
      %p378 = scmp.eq.s32.totalorder %s42, 1
      %p379 = por %p377, %p378
      %p380 = scmp.ne.s32.totalorder %s372, %s375
      %p381 = scmp.eq.s32.totalorder %s42, 0
      %p382 = por %p380, %p381
      %p383 = scmp.ne.s32.totalorder %s372, %s375
      %p384 = scmp.eq.s32.totalorder %s47, 1
      %p385 = por %p383, %p384
      %p386 = scmp.ne.s32.totalorder %s375, %s376
      %p387 = scmp.eq.s32.totalorder %s47, 0
      %p388 = por %p386, %p387
      %p389 = scmp.ne.s32.totalorder %s375, %s376
      %p390 = scmp.eq.s32.totalorder %s48, 1
      %p391 = por %p389, %p390
      %p393 = scmp.ne.s32.totalorder %s376, %s392
      %p394 = scmp.eq.s32.totalorder %s48, 0
      %p395 = por %p393, %p394
      %s396 = ssub.s32 %s42, %s49
      %p397 = scmp.eq.s32.totalorder %s396, 0
      %s399 = sadd.s32 %s398, 1
      %s400 = scalar_select %p397, %s398, %s399
      %p403 = pneg %p397
      %p404 = scmp.eq.s32.totalorder %s42, 1
      %p405 = por %p403, %p404
      %p406 = scmp.ne.s32.totalorder %s398, %s401
      %p407 = scmp.eq.s32.totalorder %s42, 0
      %p408 = por %p406, %p407
      %p409 = scmp.ne.s32.totalorder %s398, %s401
      %p410 = scmp.eq.s32.totalorder %s47, 1
      %p411 = por %p409, %p410
      %p412 = scmp.ne.s32.totalorder %s401, %s402
      %p413 = scmp.eq.s32.totalorder %s47, 0
      %p414 = por %p412, %p413
      %p415 = scmp.ne.s32.totalorder %s401, %s402
      %p416 = scmp.eq.s32.totalorder %s48, 1
      %p417 = por %p415, %p416
      %p419 = scmp.ne.s32.totalorder %s402, %s418
      %p420 = scmp.eq.s32.totalorder %s48, 0
      %p421 = por %p419, %p420
      %s422 = ssub.s32 %s42, %s49
      %p423 = scmp.eq.s32.totalorder %s422, 0
      %s425 = sadd.s32 %s424, 1
      %s426 = scalar_select %p423, %s424, %s425
      %p429 = pneg %p423
      %p430 = scmp.eq.s32.totalorder %s42, 1
      %p431 = por %p429, %p430
      %p432 = scmp.ne.s32.totalorder %s424, %s427
      %p433 = scmp.eq.s32.totalorder %s42, 0
      %p434 = por %p432, %p433
      %p435 = scmp.ne.s32.totalorder %s424, %s427
      %p436 = scmp.eq.s32.totalorder %s47, 1
      %p437 = por %p435, %p436
      %p438 = scmp.ne.s32.totalorder %s427, %s428
      %p439 = scmp.eq.s32.totalorder %s47, 0
      %p440 = por %p438, %p439
      %p441 = scmp.ne.s32.totalorder %s427, %s428
      %p442 = scmp.eq.s32.totalorder %s48, 1
      %p443 = por %p441, %p442
      %p445 = scmp.ne.s32.totalorder %s428, %s444
      %p446 = scmp.eq.s32.totalorder %s48, 0
      %p447 = por %p445, %p446
      %s449 = sadd.s32 %s448, 1
      %p452 = scmp.eq.s32.totalorder %s42, 1
      %p453 = scmp.ne.s32.totalorder %s448, %s450
      %p454 = scmp.eq.s32.totalorder %s42, 0
      %p455 = por %p453, %p454
      %p456 = scmp.ne.s32.totalorder %s448, %s450
      %p457 = scmp.eq.s32.totalorder %s47, 1
      %p458 = por %p456, %p457
      %p459 = scmp.ne.s32.totalorder %s450, %s451
      %p460 = scmp.eq.s32.totalorder %s47, 0
      %p461 = por %p459, %p460
      %p462 = scmp.ne.s32.totalorder %s450, %s451
      %p463 = scmp.eq.s32.totalorder %s48, 1
      %p464 = por %p462, %p463
      %p466 = scmp.ne.s32.totalorder %s451, %s465
      %p467 = scmp.eq.s32.totalorder %s48, 0
      %p468 = por %p466, %p467
      %s469 = ssub.s32 %s42, %s49
      %p470 = scmp.eq.s32.totalorder %s469, 0
      %s472 = sadd.s32 %s471, 1
      %s473 = scalar_select %p470, %s471, %s472
      %p476 = pneg %p470
      %p477 = scmp.eq.s32.totalorder %s42, 1
      %p478 = por %p476, %p477
      %p479 = scmp.ne.s32.totalorder %s471, %s474
      %p480 = scmp.eq.s32.totalorder %s42, 0
      %p481 = por %p479, %p480
      %p482 = scmp.ne.s32.totalorder %s471, %s474
      %p483 = scmp.eq.s32.totalorder %s47, 1
      %p484 = por %p482, %p483
      %p485 = scmp.ne.s32.totalorder %s474, %s475
      %p486 = scmp.eq.s32.totalorder %s47, 0
      %p487 = por %p485, %p486
      %p488 = scmp.ne.s32.totalorder %s474, %s475
      %p489 = scmp.eq.s32.totalorder %s48, 1
      %p490 = por %p488, %p489
      %p492 = scmp.ne.s32.totalorder %s475, %s491
      %p493 = scmp.eq.s32.totalorder %s48, 0
      %p494 = por %p492, %p493
      %s496 = sadd.s32 %s495, 1
      %p499 = scmp.eq.s32.totalorder %s42, 1
      %p500 = scmp.ne.s32.totalorder %s495, %s497
      %p501 = scmp.eq.s32.totalorder %s42, 0
      %p502 = por %p500, %p501
      %p503 = scmp.ne.s32.totalorder %s495, %s497
      %p504 = scmp.eq.s32.totalorder %s47, 1
      %p505 = por %p503, %p504
      %p506 = scmp.ne.s32.totalorder %s497, %s498
      %p507 = scmp.eq.s32.totalorder %s47, 0
      %p508 = por %p506, %p507
      %p509 = scmp.ne.s32.totalorder %s497, %s498
      %p510 = scmp.eq.s32.totalorder %s48, 1
      %p511 = por %p509, %p510
      %p513 = scmp.ne.s32.totalorder %s498, %s512
      %p514 = scmp.eq.s32.totalorder %s48, 0
      %p515 = por %p513, %p514
      %p516 = scmp.le.s32.totalorder 1, %s42
      %p517 = scmp.lt.s32.totalorder %s42, 3
      %p518 = pnand %p516, %p517
      %p519 = pneg %p518
      // Predicated region
      $region9: #{tpu_custom_call.1} parent=5 // pred_check
        _
      $region10: #{tpu_custom_call.1} parent=5 // pred_check_branch
        %521 = sbr.rel (%p518) target = $region12
      $region11: #{tpu_custom_call.1} parent=5 // pred_region
        %s522 = ssub.s32 %s42, 1
        // Predicated region
        $region13: #{tpu_custom_call.1} parent=11 // pred_check
          %p523 = pneg %p63
        $region14: #{tpu_custom_call.1} parent=11 // pred_check_branch
          %525 = sbr.rel (%p523) target = $region16
        $region15: #{tpu_custom_call.1} parent=11 // pred_region
          %s527 = ssub.s32 32, 32
          %528 = vsyncadd [#allocation8], %s527
          %s530 = sshll.u32 [#allocation7], 4
          %s531 = int_to_ptr.vmem [resolvable:$true] %s530
          %533 = dma.hbm_to_vmem [thread:$0]  %s0, 32, %s531, [#allocation8]
        $region16: #{tpu_custom_call.1} parent=11 // pred_fallthru
          _
        // Predicated region
        $region17: #{tpu_custom_call.1} parent=11 // pred_check
          %p534 = pneg %p84
        $region18: #{tpu_custom_call.1} parent=11 // pred_check_branch
          %536 = sbr.rel (%p534) target = $region20
        $region19: #{tpu_custom_call.1} parent=11 // pred_region
          %s538 = ssub.s32 32, 32
          %539 = vsyncadd [#allocation11], %s538
          %s541 = sshll.u32 [#allocation10], 4
          %s542 = int_to_ptr.vmem [resolvable:$true] %s541
          %544 = dma.hbm_to_vmem [thread:$0]  %s1, 32, %s542, [#allocation11]
        $region20: #{tpu_custom_call.1} parent=11 // pred_fallthru
          _
        // Predicated region
        $region21: #{tpu_custom_call.1} parent=11 // pred_check
          %p545 = pneg %p105
        $region22: #{tpu_custom_call.1} parent=11 // pred_check_branch
          %547 = sbr.rel (%p545) target = $region24
        $region23: #{tpu_custom_call.1} parent=11 // pred_region
          %s549 = ssub.s32 256, 256
          %550 = vsyncadd [#allocation11], %s549
          %s551 = sshll.u32 [#allocation12], 4
          %s552 = int_to_ptr.vmem [resolvable:$true] %s551
          %557 = dma.hbm_to_vmem [thread:$0]  %s2, 256, %s552, [#allocation11], 128, 128, 8
        $region24: #{tpu_custom_call.1} parent=11 // pred_fallthru
          _
        // Predicated region
        $region25: #{tpu_custom_call.1} parent=11 // pred_check
          %p558 = pneg %p126
        $region26: #{tpu_custom_call.1} parent=11 // pred_check_branch
          %560 = sbr.rel (%p558) target = $region28
        $region27: #{tpu_custom_call.1} parent=11 // pred_region
          %s562 = ssub.s32 128, 128
          %563 = vsyncadd [#allocation14], %s562
          %s564 = sshll.u32 [#allocation13], 4
          %s565 = int_to_ptr.vmem [resolvable:$true] %s564
          %570 = dma.hbm_to_vmem [thread:$0]  %s3, 128, %s565, [#allocation14], 64, 64, 4
        $region28: #{tpu_custom_call.1} parent=11 // pred_fallthru
          _
        // Predicated region
        $region29: #{tpu_custom_call.1} parent=11 // pred_check
          %p571 = pneg %p147
        $region30: #{tpu_custom_call.1} parent=11 // pred_check_branch
          %573 = sbr.rel (%p571) target = $region32
        $region31: #{tpu_custom_call.1} parent=11 // pred_region
          %s575 = ssub.s32 32, 32
          %576 = vsyncadd [#allocation14], %s575
          %s578 = sshll.u32 [#allocation15], 4
          %s579 = int_to_ptr.vmem [resolvable:$true] %s578
          %581 = dma.hbm_to_vmem [thread:$0]  %s4, 32, %s579, [#allocation14]
        $region32: #{tpu_custom_call.1} parent=11 // pred_fallthru
          _
        // Predicated region
        $region33: #{tpu_custom_call.1} parent=11 // pred_check
          %p582 = pneg %p168
        $region34: #{tpu_custom_call.1} parent=11 // pred_check_branch
          %584 = sbr.rel (%p582) target = $region36
        $region35: #{tpu_custom_call.1} parent=11 // pred_region
          %s586 = ssub.s32 768, 768
          %587 = vsyncadd [#allocation17], %s586
          %s588 = sshll.u32 [#allocation16], 4
          %s589 = int_to_ptr.vmem [resolvable:$true] %s588
          %594 = dma.hbm_to_vmem [thread:$0]  %s5, 768, %s589, [#allocation17], 384, 384, 24
        $region36: #{tpu_custom_call.1} parent=11 // pred_fallthru
          _
        // Predicated region
        $region37: #{tpu_custom_call.1} parent=11 // pred_check
          %p595 = pneg %p189
        $region38: #{tpu_custom_call.1} parent=11 // pred_check_branch
          %597 = sbr.rel (%p595) target = $region40
        $region39: #{tpu_custom_call.1} parent=11 // pred_region
          _
        $region40: #{tpu_custom_call.1} parent=11 // pred_fallthru
          _
        // Predicated region
        $region41: #{tpu_custom_call.1} parent=11 // pred_check
          %p598 = pneg %p210
        $region42: #{tpu_custom_call.1} parent=11 // pred_check_branch
          %600 = sbr.rel (%p598) target = $region44
        $region43: #{tpu_custom_call.1} parent=11 // pred_region
          %s602 = ssub.s32 1536, 1536
          %603 = vsyncadd [#allocation17], %s602
          %s604 = sshll.u32 [#allocation18], 4
          %s605 = int_to_ptr.vmem [resolvable:$true] %s604
          %610 = dma.hbm_to_vmem [thread:$0]  %s7, 1536, %s605, [#allocation17], 384, 384, 24
        $region44: #{tpu_custom_call.1} parent=11 // pred_fallthru
          _
        // Predicated region
        $region45: #{tpu_custom_call.1} parent=11 // pred_check
          %p611 = pneg %p231
        $region46: #{tpu_custom_call.1} parent=11 // pred_check_branch
          %613 = sbr.rel (%p611) target = $region48
        $region47: #{tpu_custom_call.1} parent=11 // pred_region
          _
        $region48: #{tpu_custom_call.1} parent=11 // pred_fallthru
          _
        // Predicated region
        $region49: #{tpu_custom_call.1} parent=11 // pred_check
          %p614 = pneg %p252
        $region50: #{tpu_custom_call.1} parent=11 // pred_check_branch
          %616 = sbr.rel (%p614) target = $region52
        $region51: #{tpu_custom_call.1} parent=11 // pred_region
          %s618 = ssub.s32 512, 512
          %619 = vsyncadd [#allocation20], %s618
          %s620 = sshll.u32 [#allocation19], 4
          %s621 = int_to_ptr.vmem [resolvable:$true] %s620
          %626 = dma.hbm_to_vmem [thread:$0]  %s9, 512, %s621, [#allocation20], 128, 128, 8
        $region52: #{tpu_custom_call.1} parent=11 // pred_fallthru
          _
        // Predicated region
        $region53: #{tpu_custom_call.1} parent=11 // pred_check
          %p627 = pneg %p273
        $region54: #{tpu_custom_call.1} parent=11 // pred_check_branch
          %629 = sbr.rel (%p627) target = $region56
        $region55: #{tpu_custom_call.1} parent=11 // pred_region
          %s631 = ssub.s32 512, 512
          %632 = vsyncadd [#allocation20], %s631
          %s633 = sshll.u32 [#allocation21], 4
          %s634 = int_to_ptr.vmem [resolvable:$true] %s633
          %639 = dma.hbm_to_vmem [thread:$0]  %s10, 512, %s634, [#allocation20], 128, 128, 8
        $region56: #{tpu_custom_call.1} parent=11 // pred_fallthru
          _
        // Predicated region
        $region57: #{tpu_custom_call.1} parent=11 // pred_check
          %p640 = pneg %p294
        $region58: #{tpu_custom_call.1} parent=11 // pred_check_branch
          %642 = sbr.rel (%p640) target = $region60
        $region59: #{tpu_custom_call.1} parent=11 // pred_region
          _
        $region60: #{tpu_custom_call.1} parent=11 // pred_fallthru
          _
        // Predicated region
        $region61: #{tpu_custom_call.1} parent=11 // pred_check
          %p643 = pneg %p315
        $region62: #{tpu_custom_call.1} parent=11 // pred_check_branch
          %645 = sbr.rel (%p643) target = $region64
        $region63: #{tpu_custom_call.1} parent=11 // pred_region
          _
        $region64: #{tpu_custom_call.1} parent=11 // pred_fallthru
          _
        // Predicated region
        $region65: #{tpu_custom_call.1} parent=11 // pred_check
          %p646 = pneg %p336
        $region66: #{tpu_custom_call.1} parent=11 // pred_check_branch
          %648 = sbr.rel (%p646) target = $region68
        $region67: #{tpu_custom_call.1} parent=11 // pred_region
          _
        $region68: #{tpu_custom_call.1} parent=11 // pred_fallthru
          _
        // Predicated region
        $region69: #{tpu_custom_call.1} parent=11 // pred_check
          %p649 = pneg %p461
        $region70: #{tpu_custom_call.1} parent=11 // pred_check_branch
          %651 = sbr.rel (%p649) target = $region72
        $region71: #{tpu_custom_call.1} parent=11 // pred_region
          _
        $region72: #{tpu_custom_call.1} parent=11 // pred_fallthru
          _
      $region12: #{tpu_custom_call.1} parent=5 // pred_fallthru
        _
      %p652 = scmp.lt.s32.totalorder %s42, 2
      // Predicated region
      $region73: #{tpu_custom_call.1} parent=5 // pred_check
        %p653 = pneg %p652
      $region74: #{tpu_custom_call.1} parent=5 // pred_check_branch
        %655 = sbr.rel (%p653) target = $region76
      $region75: #{tpu_custom_call.1} parent=5 // pred_region
        // Predicated region
        $region77: #{tpu_custom_call.1} parent=75 // pred_check
          %p656 = pneg %p356
        $region78: #{tpu_custom_call.1} parent=75 // pred_check_branch
          %658 = sbr.rel (%p656) target = $region80
        $region79: #{tpu_custom_call.1} parent=75 // pred_region
          %s659 = sand.u32 %s42, 1
          %s660 = scalar_lea.sflag [#allocation23], %s659
          %s661 = sand.u32 %s346, 1
          %s662 = smul.addr %s661, 16
          %s663 = scalar_lea.vmem [#allocation22], %s662
          %s665 = ssub.s32 256, 256
          %666 = vsyncadd %s660, %s665
          %s667 = smul.addr %s42, 64
          %s668 = scalar_lea.hbm %s14, %s667
          %s669 = sshll.u32 %s663, 4
          %s670 = int_to_ptr.vmem [resolvable:$true] %s669
          %675 = dma.hbm_to_vmem [thread:$0]  %s668, 256, %s670, %s660, 128, 64, 4
        $region80: #{tpu_custom_call.1} parent=75 // pred_fallthru
          _
        // Predicated region
        $region81: #{tpu_custom_call.1} parent=75 // pred_check
          %p676 = pneg %p382
        $region82: #{tpu_custom_call.1} parent=75 // pred_check_branch
          %678 = sbr.rel (%p676) target = $region84
        $region83: #{tpu_custom_call.1} parent=75 // pred_region
          %s679 = sand.u32 %s42, 1
          %s680 = scalar_lea.sflag [#allocation23], %s679
          %s681 = sand.u32 %s372, 1
          %s682 = smul.addr %s681, 16
          %s683 = scalar_lea.vmem [#allocation24], %s682
          %s685 = ssub.s32 256, 256
          %686 = vsyncadd %s680, %s685
          %s687 = smul.addr %s42, 64
          %s688 = scalar_lea.hbm %s15, %s687
          %s689 = sshll.u32 %s683, 4
          %s690 = int_to_ptr.vmem [resolvable:$true] %s689
          %695 = dma.hbm_to_vmem [thread:$0]  %s688, 256, %s690, %s680, 128, 64, 4
        $region84: #{tpu_custom_call.1} parent=75 // pred_fallthru
          _
        // Predicated region
        $region85: #{tpu_custom_call.1} parent=75 // pred_check
          %p696 = pneg %p408
        $region86: #{tpu_custom_call.1} parent=75 // pred_check_branch
          %698 = sbr.rel (%p696) target = $region88
        $region87: #{tpu_custom_call.1} parent=75 // pred_region
          %s699 = sand.u32 %s398, 1
          %s700 = scalar_lea.sflag [#allocation26], %s699
          %s701 = sand.u32 %s398, 1
          %s702 = smul.addr %s701, 16
          %s703 = scalar_lea.vmem [#allocation25], %s702
          %s705 = ssub.s32 256, 256
          %706 = vsyncadd %s700, %s705
          %s707 = smul.addr %s42, 64
          %s708 = scalar_lea.hbm %s16, %s707
          %s709 = sshll.u32 %s703, 4
          %s710 = int_to_ptr.vmem [resolvable:$true] %s709
          %715 = dma.hbm_to_vmem [thread:$0]  %s708, 256, %s710, %s700, 128, 64, 4
        $region88: #{tpu_custom_call.1} parent=75 // pred_fallthru
          _
        // Predicated region
        $region89: #{tpu_custom_call.1} parent=75 // pred_check
          %p716 = pneg %p434
        $region90: #{tpu_custom_call.1} parent=75 // pred_check_branch
          %718 = sbr.rel (%p716) target = $region92
        $region91: #{tpu_custom_call.1} parent=75 // pred_region
          %p719 = scmp.lt.s32.totalorder %s42, 1
          %s720 = scalar_select %p719, %s42, 1
          %s721 = scalar_lea.vmem %s17, %s720
        $region92: #{tpu_custom_call.1} parent=75 // pred_fallthru
          _
      $region76: #{tpu_custom_call.1} parent=5 // pred_fallthru
        _
      %p722 = scmp.le.s32.totalorder 1, %s42
      %p723 = scmp.lt.s32.totalorder %s42, 3
      %p724 = pnand %p722, %p723
      %p725 = pneg %p724
      // Predicated region
      $region93: #{tpu_custom_call.1} parent=5 // pred_check
        _
      $region94: #{tpu_custom_call.1} parent=5 // pred_check_branch
        %727 = sbr.rel (%p724) target = $region96
      $region95: #{tpu_custom_call.1} parent=5 // pred_region
        %s728 = ssub.s32 %s42, 1
        // Predicated region
        $region97: #{tpu_custom_call.1} parent=95 // pred_check
          %p729 = pneg %p63
        $region98: #{tpu_custom_call.1} parent=95 // pred_check_branch
          %731 = sbr.rel (%p729) target = $region100
        $region99: #{tpu_custom_call.1} parent=95 // pred_region
          %732 = dma.done [#allocation8], 32
        $region100: #{tpu_custom_call.1} parent=95 // pred_fallthru
          _
        // Predicated region
        $region101: #{tpu_custom_call.1} parent=95 // pred_check
          %p733 = pneg %p84
        $region102: #{tpu_custom_call.1} parent=95 // pred_check_branch
          %735 = sbr.rel (%p733) target = $region104
        $region103: #{tpu_custom_call.1} parent=95 // pred_region
          %736 = dma.done [#allocation11], 32
        $region104: #{tpu_custom_call.1} parent=95 // pred_fallthru
          _
        // Predicated region
        $region105: #{tpu_custom_call.1} parent=95 // pred_check
          %p737 = pneg %p105
        $region106: #{tpu_custom_call.1} parent=95 // pred_check_branch
          %739 = sbr.rel (%p737) target = $region108
        $region107: #{tpu_custom_call.1} parent=95 // pred_region
          %740 = dma.done [#allocation11], 256
        $region108: #{tpu_custom_call.1} parent=95 // pred_fallthru
          _
        // Predicated region
        $region109: #{tpu_custom_call.1} parent=95 // pred_check
          %p741 = pneg %p126
        $region110: #{tpu_custom_call.1} parent=95 // pred_check_branch
          %743 = sbr.rel (%p741) target = $region112
        $region111: #{tpu_custom_call.1} parent=95 // pred_region
          %744 = dma.done [#allocation14], 128
        $region112: #{tpu_custom_call.1} parent=95 // pred_fallthru
          _
        // Predicated region
        $region113: #{tpu_custom_call.1} parent=95 // pred_check
          %p745 = pneg %p147
        $region114: #{tpu_custom_call.1} parent=95 // pred_check_branch
          %747 = sbr.rel (%p745) target = $region116
        $region115: #{tpu_custom_call.1} parent=95 // pred_region
          %748 = dma.done [#allocation14], 32
        $region116: #{tpu_custom_call.1} parent=95 // pred_fallthru
          _
        // Predicated region
        $region117: #{tpu_custom_call.1} parent=95 // pred_check
          %p749 = pneg %p168
        $region118: #{tpu_custom_call.1} parent=95 // pred_check_branch
          %751 = sbr.rel (%p749) target = $region120
        $region119: #{tpu_custom_call.1} parent=95 // pred_region
          %752 = dma.done [#allocation17], 768
        $region120: #{tpu_custom_call.1} parent=95 // pred_fallthru
          _
        // Predicated region
        $region121: #{tpu_custom_call.1} parent=95 // pred_check
          %p753 = pneg %p210
        $region122: #{tpu_custom_call.1} parent=95 // pred_check_branch
          %755 = sbr.rel (%p753) target = $region124
        $region123: #{tpu_custom_call.1} parent=95 // pred_region
          %756 = dma.done [#allocation17], 1536
        $region124: #{tpu_custom_call.1} parent=95 // pred_fallthru
          _
        // Predicated region
        $region125: #{tpu_custom_call.1} parent=95 // pred_check
          %p757 = pneg %p252
        $region126: #{tpu_custom_call.1} parent=95 // pred_check_branch
          %759 = sbr.rel (%p757) target = $region128
        $region127: #{tpu_custom_call.1} parent=95 // pred_region
          %760 = dma.done [#allocation20], 512
        $region128: #{tpu_custom_call.1} parent=95 // pred_fallthru
          _
        // Predicated region
        $region129: #{tpu_custom_call.1} parent=95 // pred_check
          %p761 = pneg %p273
        $region130: #{tpu_custom_call.1} parent=95 // pred_check_branch
          %763 = sbr.rel (%p761) target = $region132
        $region131: #{tpu_custom_call.1} parent=95 // pred_region
          %764 = dma.done [#allocation20], 512
        $region132: #{tpu_custom_call.1} parent=95 // pred_fallthru
          _
        %s765 = sand.u32 %s47, 1
        %s766 = scalar_lea.sflag [#allocation23], %s765
        %s767 = sand.u32 %s349, 1
        %s768 = smul.addr %s767, 16
        %s769 = scalar_lea.vmem [#allocation22], %s768
        // Predicated region
        $region133: #{tpu_custom_call.1} parent=95 // pred_check
          %p770 = pneg %p362
        $region134: #{tpu_custom_call.1} parent=95 // pred_check_branch
          %772 = sbr.rel (%p770) target = $region136
        $region135: #{tpu_custom_call.1} parent=95 // pred_region
          %773 = dma.done %s766, 256
        $region136: #{tpu_custom_call.1} parent=95 // pred_fallthru
          _
        %s774 = sand.u32 %s47, 1
        %s775 = scalar_lea.sflag [#allocation23], %s774
        %s776 = sand.u32 %s375, 1
        %s777 = smul.addr %s776, 16
        %s778 = scalar_lea.vmem [#allocation24], %s777
        // Predicated region
        $region137: #{tpu_custom_call.1} parent=95 // pred_check
          %p779 = pneg %p388
        $region138: #{tpu_custom_call.1} parent=95 // pred_check_branch
          %781 = sbr.rel (%p779) target = $region140
        $region139: #{tpu_custom_call.1} parent=95 // pred_region
          %782 = dma.done %s775, 256
        $region140: #{tpu_custom_call.1} parent=95 // pred_fallthru
          _
        %s783 = sand.u32 %s401, 1
        %s784 = scalar_lea.sflag [#allocation26], %s783
        %s785 = sand.u32 %s401, 1
        %s786 = smul.addr %s785, 16
        %s787 = scalar_lea.vmem [#allocation25], %s786
        // Predicated region
        $region141: #{tpu_custom_call.1} parent=95 // pred_check
          %p788 = pneg %p414
        $region142: #{tpu_custom_call.1} parent=95 // pred_check_branch
          %790 = sbr.rel (%p788) target = $region144
        $region143: #{tpu_custom_call.1} parent=95 // pred_region
          %791 = dma.done %s784, 256
        $region144: #{tpu_custom_call.1} parent=95 // pred_fallthru
          _
        %p792 = pneg %p63
        %p793 = pneg %p60
        %p794 = pneg %p84
        %p795 = pneg %p81
        %p796 = pneg %p105
        %p797 = pneg %p102
        %p798 = pneg %p126
        %p799 = pneg %p123
        %p800 = pneg %p147
        %p801 = pneg %p144
        %p802 = pneg %p168
        %p803 = pneg %p165
        %p804 = pneg %p189
        %p805 = pneg %p186
        %p806 = pneg %p210
        %p807 = pneg %p207
        %p808 = pneg %p231
        %p809 = pneg %p228
        %p810 = pneg %p252
        %p811 = pneg %p249
        %p812 = pneg %p273
        %p813 = pneg %p270
        %p814 = pneg %p294
        %p815 = pneg %p291
        %p816 = pneg %p315
        %p817 = pneg %p312
        %p818 = pneg %p336
        %p819 = pneg %p333
        %s820 = sand.u32 %s47, 1
        %s821 = scalar_lea.sflag [#allocation23], %s820
        %s822 = sand.u32 %s349, 1
        %s823 = smul.addr %s822, 16
        %s824 = scalar_lea.vmem [#allocation22], %s823
        %p825 = pneg %p362
        %p826 = pneg %p359
        %s827 = sand.u32 %s47, 1
        %s828 = scalar_lea.sflag [#allocation23], %s827
        %s829 = sand.u32 %s375, 1
        %s830 = smul.addr %s829, 16
        %s831 = scalar_lea.vmem [#allocation24], %s830
        %p832 = pneg %p388
        %p833 = pneg %p385
        %s834 = sand.u32 %s401, 1
        %s835 = scalar_lea.sflag [#allocation26], %s834
        %s836 = sand.u32 %s401, 1
        %s837 = smul.addr %s836, 16
        %s838 = scalar_lea.vmem [#allocation25], %s837
        %p839 = pneg %p414
        %p840 = pneg %p411
        %p841 = scmp.lt.s32.totalorder %s47, 1
        %s842 = scalar_select %p841, %s47, 1
        %s843 = scalar_lea.vmem %s17, %s842
        %p844 = pneg %p440
        %p845 = pneg %p437
        %p846 = pneg %p461
        %p847 = pneg %p458
        %p848 = pneg %p487
        %p849 = pneg %p484
        %s850 = sand.u32 %s474, 1
        %s851 = scalar_lea.sflag [#allocation9], %s850
        %s852 = sand.u32 %s474, 1
        %s853 = smul.addr %s852, 2
        %s854 = scalar_lea.vmem [#allocation27], %s853
        %p855 = pneg %p508
        %p856 = pneg %p505
        %p857 = scmp.lt.s32.totalorder %s47, 1
        %s858 = scalar_select %p857, %s47, 1
        %s859 = scalar_lea.vmem %s17, %s858
        %p861 = scmp.eq.s32.totalorder %s47, 0
        // Predicated region
        $region145: #{tpu_custom_call.1} parent=95 // pred_check
          %p862 = pneg %p861
        $region146: #{tpu_custom_call.1} parent=95 // pred_check_branch
          %864 = sbr.rel (%p862) target = $region148
        $region147: #{tpu_custom_call.1} parent=95 // pred_region
          %v865 = vld [vmem:[#allocation7] sm:$0x3]
          %v866 = vld [vmem:[#allocation10] sm:$0x3]
          %v867 = vld [vmem:[#allocation16] sm:$0xff]
          %v868 = vld [vmem:[#allocation16 + $0x8] sm:$0xff]
          %v869 = vld [vmem:[#allocation16 + $0x10] sm:$0xff]
          %v870 = vld [vmem:[#allocation16 + $0x18] sm:$0xff]
          %v871 = vld [vmem:[#allocation16 + $0x20] sm:$0xff]
          %v872 = vld [vmem:[#allocation16 + $0x28] sm:$0xff]
          %v873 = vld [vmem:[%s6] sm:$0x7]
          %v875 = vlaneseq
          %v876 = vshrl.u32 %v875, 7
          %v877 = vsub.s32 0, %v876
          %v878 = vrot.slane %v873, %v877
          %v879 = vlaneseq
          %v880 = vshrl.u32 %v879, 7
          %v881 = vsub.s32 1, %v880
          %v882 = vrot.slane %v873, %v881
          %v883 = vlaneseq
          %v884 = vshrl.u32 %v883, 7
          %v885 = vsub.s32 2, %v884
          %v886 = vrot.slane %v873, %v885
          %vm890 = vcmask 130048
          %v892 = vsel %vm890, %v865, 0
          %894 = vmatprep.subr.mxu0 0.0
          %895 = vmatpush1.msra.mxu0 0.0
          %896 = vmatprep.subr.mxu0 0.0
          %897 = vmatpush1.msra.mxu0 0.0
          %898 = vmatprep.subr.mxu0 0.0
          %899 = vmatpush1.msra.mxu0 0.0
          %900 = vmatprep.subr.mxu0 0.0
          %901 = vmatpush1.msra.mxu0 0.0
          %902 = vmatprep.subr.mxu0 0.0
          %903 = vmatpush1.msra.mxu0 0.0
          %904 = vmatprep.subr.mxu0 0.0
          %905 = vmatpush1.msra.mxu0 0.0
          %906 = vmatprep.subr.mxu0 0.0
          %907 = vmatpush1.msra.mxu0 0.0
          %908 = vmatprep.subr.mxu0 0.0
          %909 = vmatpush1.msra.mxu0 0.0
          %910 = vmatprep.subr.mxu0 0.0
          %911 = vmatpush1.msra.mxu0 0.0
          %912 = vmatprep.subr.mxu0 0.0
          %913 = vmatpush1.msra.mxu0 0.0
          %914 = vmatprep.subr.mxu0 0.0
          %915 = vmatpush1.msra.mxu0 0.0
          %916 = vmatprep.subr.mxu0 0.0
          %917 = vmatpush1.msra.mxu0 0.0
          %918 = vmatprep.subr.mxu0 0.0
          %919 = vmatpush1.msra.mxu0 0.0
          %920 = vmatprep.subr.mxu0 0.0
          %921 = vmatpush1.msra.mxu0 0.0
          %922 = vmatprep.subr.mxu0 %v871
          %923 = vmatpush1.msra.mxu0 %v870
          %924 = vmatprep.subr.mxu0 %v868
          %925 = vmatpush1.msra.mxu0 %v867
          %926 = vmatprep.subr.mxu0 0.0
          %927 = vmatpush2.msra.mxu0 0.0
          %928 = vmatprep.subr.mxu0 0.0
          %929 = vmatpush2.msra.mxu0 0.0
          %930 = vmatprep.subr.mxu0 0.0
          %931 = vmatpush2.msra.mxu0 0.0
          %932 = vmatprep.subr.mxu0 0.0
          %933 = vmatpush2.msra.mxu0 0.0
          %934 = vmatprep.subr.mxu0 0.0
          %935 = vmatpush2.msra.mxu0 0.0
          %936 = vmatprep.subr.mxu0 0.0
          %937 = vmatpush2.msra.mxu0 0.0
          %938 = vmatprep.subr.mxu0 0.0
          %939 = vmatpush2.msra.mxu0 0.0
          %940 = vmatprep.subr.mxu0 0.0
          %941 = vmatpush2.msra.mxu0 0.0
          %942 = vmatprep.subr.mxu0 0.0
          %943 = vmatpush2.msra.mxu0 0.0
          %944 = vmatprep.subr.mxu0 0.0
          %945 = vmatpush2.msra.mxu0 0.0
          %946 = vmatprep.subr.mxu0 0.0
          %947 = vmatpush2.msra.mxu0 0.0
          %948 = vmatprep.subr.mxu0 0.0
          %949 = vmatpush2.msra.mxu0 0.0
          %950 = vmatprep.subr.mxu0 0.0
          %951 = vmatpush2.msra.mxu0 0.0
          %952 = vmatprep.subr.mxu0 0.0
          %953 = vmatpush2.msra.mxu0 0.0
          %954 = vmatprep.subr.mxu0 0.0
          %955 = vmatpush2.msra.mxu0 0.0
          %956 = vmatprep.subr.mxu0 0.0
          %957 = vmatpush2.msra.mxu0 0.0
          %958 = vmatprep.mubr.f32.mxu0 0.0
          %959 = vmatmul.mubr.f32.gmra.mxu0 %v892
          %v960 = vpop.f32.mrf.mxu0
          %v961 = vadd.f32 %v878, %v960
          %v962 = vpop.f32.mrf.mxu0
          %v963 = vadd.f32 %v882, %v962
          %964 = vdwg.mxu0
          %965 = vmatprep.subr.mxu0 0.0
          %966 = vmatpush1.msra.mxu0 0.0
          %967 = vmatprep.subr.mxu0 0.0
          %968 = vmatpush1.msra.mxu0 0.0
          %969 = vmatprep.subr.mxu0 0.0
          %970 = vmatpush1.msra.mxu0 0.0
          %971 = vmatprep.subr.mxu0 0.0
          %972 = vmatpush1.msra.mxu0 0.0
          %973 = vmatprep.subr.mxu0 0.0
          %974 = vmatpush1.msra.mxu0 0.0
          %975 = vmatprep.subr.mxu0 0.0
          %976 = vmatpush1.msra.mxu0 0.0
          %977 = vmatprep.subr.mxu0 0.0
          %978 = vmatpush1.msra.mxu0 0.0
          %979 = vmatprep.subr.mxu0 0.0
          %980 = vmatpush1.msra.mxu0 0.0
          %981 = vmatprep.subr.mxu0 0.0
          %982 = vmatpush1.msra.mxu0 0.0
          %983 = vmatprep.subr.mxu0 0.0
          %984 = vmatpush1.msra.mxu0 0.0
          %985 = vmatprep.subr.mxu0 0.0
          %986 = vmatpush1.msra.mxu0 0.0
          %987 = vmatprep.subr.mxu0 0.0
          %988 = vmatpush1.msra.mxu0 0.0
          %989 = vmatprep.subr.mxu0 0.0
          %990 = vmatpush1.msra.mxu0 0.0
          %991 = vmatprep.subr.mxu0 0.0
          %992 = vmatpush1.msra.mxu0 0.0
          %993 = vmatprep.subr.mxu0 0.0
          %994 = vmatpush1.msra.mxu0 %v872
          %995 = vmatprep.subr.mxu0 0.0
          %996 = vmatpush1.msra.mxu0 %v869
          %997 = vmatprep.subr.mxu0 0.0
          %998 = vmatpush2.msra.mxu0 0.0
          %999 = vmatprep.subr.mxu0 0.0
          %1000 = vmatpush2.msra.mxu0 0.0
          %1001 = vmatprep.subr.mxu0 0.0
          %1002 = vmatpush2.msra.mxu0 0.0
          %1003 = vmatprep.subr.mxu0 0.0
          %1004 = vmatpush2.msra.mxu0 0.0
          %1005 = vmatprep.subr.mxu0 0.0
          %1006 = vmatpush2.msra.mxu0 0.0
          %1007 = vmatprep.subr.mxu0 0.0
          %1008 = vmatpush2.msra.mxu0 0.0
          %1009 = vmatprep.subr.mxu0 0.0
          %1010 = vmatpush2.msra.mxu0 0.0
          %1011 = vmatprep.subr.mxu0 0.0
          %1012 = vmatpush2.msra.mxu0 0.0
          %1013 = vmatprep.subr.mxu0 0.0
          %1014 = vmatpush2.msra.mxu0 0.0
          %1015 = vmatprep.subr.mxu0 0.0
          %1016 = vmatpush2.msra.mxu0 0.0
          %1017 = vmatprep.subr.mxu0 0.0
          %1018 = vmatpush2.msra.mxu0 0.0
          %1019 = vmatprep.subr.mxu0 0.0
          %1020 = vmatpush2.msra.mxu0 0.0
          %1021 = vmatprep.subr.mxu0 0.0
          %1022 = vmatpush2.msra.mxu0 0.0
          %1023 = vmatprep.subr.mxu0 0.0
          %1024 = vmatpush2.msra.mxu0 0.0
          %1025 = vmatprep.subr.mxu0 0.0
          %1026 = vmatpush2.msra.mxu0 0.0
          %1027 = vmatprep.subr.mxu0 0.0
          %1028 = vmatpush2.msra.mxu0 0.0
          %1029 = vmatprep.mubr.f32.mxu0 0.0
          %1030 = vmatmul.mubr.f32.gmra.mxu0 %v892
          %v1031 = vpop.f32.mrf.mxu0
          %v1032 = vadd.f32 %v886, %v1031
          %v1033 = vpop.f32.mrf.mxu0
          %1034 = vdwg.mxu0
          %v1035 = vld [vmem:[#allocation18] sm:$0xff]
          %v1036 = vld [vmem:[#allocation18 + $0x8] sm:$0xff]
          %v1037 = vld [vmem:[#allocation18 + $0x10] sm:$0xff]
          %v1038 = vld [vmem:[#allocation18 + $0x18] sm:$0xff]
          %v1039 = vld [vmem:[#allocation18 + $0x20] sm:$0xff]
          %v1040 = vld [vmem:[#allocation18 + $0x28] sm:$0xff]
          %v1041 = vld [vmem:[#allocation18 + $0x30] sm:$0xff]
          %v1042 = vld [vmem:[#allocation18 + $0x38] sm:$0xff]
          %v1043 = vld [vmem:[#allocation18 + $0x40] sm:$0xff]
          %v1044 = vld [vmem:[#allocation18 + $0x48] sm:$0xff]
          %v1045 = vld [vmem:[#allocation18 + $0x50] sm:$0xff]
          %v1046 = vld [vmem:[#allocation18 + $0x58] sm:$0xff]
          %v1047 = vld [vmem:[%s8] sm:$0x7]
          %v1049 = vlaneseq
          %v1050 = vshrl.u32 %v1049, 7
          %v1051 = vsub.s32 0, %v1050
          %v1052 = vrot.slane %v1047, %v1051
          %v1053 = vlaneseq
          %v1054 = vshrl.u32 %v1053, 7
          %v1055 = vsub.s32 1, %v1054
          %v1056 = vrot.slane %v1047, %v1055
          %v1057 = vlaneseq
          %v1058 = vshrl.u32 %v1057, 7
          %v1059 = vsub.s32 2, %v1058
          %v1060 = vrot.slane %v1047, %v1059
          %vm1064 = vcmask 261120
          %v1066 = vsel %vm1064, %v866, 0
          %1068 = vmatprep.subr.mxu0 0.0
          %1069 = vmatpush1.msra.mxu0 0.0
          %1070 = vmatprep.subr.mxu0 0.0
          %1071 = vmatpush1.msra.mxu0 0.0
          %1072 = vmatprep.subr.mxu0 0.0
          %1073 = vmatpush1.msra.mxu0 0.0
          %1074 = vmatprep.subr.mxu0 0.0
          %1075 = vmatpush1.msra.mxu0 0.0
          %1076 = vmatprep.subr.mxu0 0.0
          %1077 = vmatpush1.msra.mxu0 0.0
          %1078 = vmatprep.subr.mxu0 0.0
          %1079 = vmatpush1.msra.mxu0 0.0
          %1080 = vmatprep.subr.mxu0 0.0
          %1081 = vmatpush1.msra.mxu0 0.0
          %1082 = vmatprep.subr.mxu0 0.0
          %1083 = vmatpush1.msra.mxu0 0.0
          %1084 = vmatprep.subr.mxu0 0.0
          %1085 = vmatpush1.msra.mxu0 0.0
          %1086 = vmatprep.subr.mxu0 0.0
          %1087 = vmatpush1.msra.mxu0 0.0
          %1088 = vmatprep.subr.mxu0 0.0
          %1089 = vmatpush1.msra.mxu0 0.0
          %1090 = vmatprep.subr.mxu0 0.0
          %1091 = vmatpush1.msra.mxu0 0.0
          %1092 = vmatprep.subr.mxu0 %v1045
          %1093 = vmatpush1.msra.mxu0 %v1044
          %1094 = vmatprep.subr.mxu0 %v1042
          %1095 = vmatpush1.msra.mxu0 %v1041
          %1096 = vmatprep.subr.mxu0 %v1039
          %1097 = vmatpush1.msra.mxu0 %v1038
          %1098 = vmatprep.subr.mxu0 %v1036
          %1099 = vmatpush1.msra.mxu0 %v1035
          %1100 = vmatprep.subr.mxu0 0.0
          %1101 = vmatpush2.msra.mxu0 0.0
          %1102 = vmatprep.subr.mxu0 0.0
          %1103 = vmatpush2.msra.mxu0 0.0
          %1104 = vmatprep.subr.mxu0 0.0
          %1105 = vmatpush2.msra.mxu0 0.0
          %1106 = vmatprep.subr.mxu0 0.0
          %1107 = vmatpush2.msra.mxu0 0.0
          %1108 = vmatprep.subr.mxu0 0.0
          %1109 = vmatpush2.msra.mxu0 0.0
          %1110 = vmatprep.subr.mxu0 0.0
          %1111 = vmatpush2.msra.mxu0 0.0
          %1112 = vmatprep.subr.mxu0 0.0
          %1113 = vmatpush2.msra.mxu0 0.0
          %1114 = vmatprep.subr.mxu0 0.0
          %1115 = vmatpush2.msra.mxu0 0.0
          %1116 = vmatprep.subr.mxu0 0.0
          %1117 = vmatpush2.msra.mxu0 0.0
          %1118 = vmatprep.subr.mxu0 0.0
          %1119 = vmatpush2.msra.mxu0 0.0
          %1120 = vmatprep.subr.mxu0 0.0
          %1121 = vmatpush2.msra.mxu0 0.0
          %1122 = vmatprep.subr.mxu0 0.0
          %1123 = vmatpush2.msra.mxu0 0.0
          %1124 = vmatprep.subr.mxu0 0.0
          %1125 = vmatpush2.msra.mxu0 0.0
          %1126 = vmatprep.subr.mxu0 0.0
          %1127 = vmatpush2.msra.mxu0 0.0
          %1128 = vmatprep.subr.mxu0 0.0
          %1129 = vmatpush2.msra.mxu0 0.0
          %1130 = vmatprep.subr.mxu0 0.0
          %1131 = vmatpush2.msra.mxu0 0.0
          %1132 = vmatprep.mubr.f32.mxu0 0.0
          %1133 = vmatmul.mubr.f32.gmra.mxu0 %v1066
          %v1134 = vpop.f32.mrf.mxu0
          %v1135 = vadd.f32 %v1052, %v1134
          %v1136 = vpop.f32.mrf.mxu0
          %v1137 = vadd.f32 %v1056, %v1136
          %1138 = vdwg.mxu0
          %1139 = vmatprep.subr.mxu0 0.0
          %1140 = vmatpush1.msra.mxu0 0.0
          %1141 = vmatprep.subr.mxu0 0.0
          %1142 = vmatpush1.msra.mxu0 0.0
          %1143 = vmatprep.subr.mxu0 0.0
          %1144 = vmatpush1.msra.mxu0 0.0
          %1145 = vmatprep.subr.mxu0 0.0
          %1146 = vmatpush1.msra.mxu0 0.0
          %1147 = vmatprep.subr.mxu0 0.0
          %1148 = vmatpush1.msra.mxu0 0.0
          %1149 = vmatprep.subr.mxu0 0.0
          %1150 = vmatpush1.msra.mxu0 0.0
          %1151 = vmatprep.subr.mxu0 0.0
          %1152 = vmatpush1.msra.mxu0 0.0
          %1153 = vmatprep.subr.mxu0 0.0
          %1154 = vmatpush1.msra.mxu0 0.0
          %1155 = vmatprep.subr.mxu0 0.0
          %1156 = vmatpush1.msra.mxu0 0.0
          %1157 = vmatprep.subr.mxu0 0.0
          %1158 = vmatpush1.msra.mxu0 0.0
          %1159 = vmatprep.subr.mxu0 0.0
          %1160 = vmatpush1.msra.mxu0 0.0
          %1161 = vmatprep.subr.mxu0 0.0
          %1162 = vmatpush1.msra.mxu0 0.0
          %1163 = vmatprep.subr.mxu0 0.0
          %1164 = vmatpush1.msra.mxu0 %v1046
          %1165 = vmatprep.subr.mxu0 0.0
          %1166 = vmatpush1.msra.mxu0 %v1043
          %1167 = vmatprep.subr.mxu0 0.0
          %1168 = vmatpush1.msra.mxu0 %v1040
          %1169 = vmatprep.subr.mxu0 0.0
          %1170 = vmatpush1.msra.mxu0 %v1037
          %1171 = vmatprep.subr.mxu0 0.0
          %1172 = vmatpush2.msra.mxu0 0.0
          %1173 = vmatprep.subr.mxu0 0.0
          %1174 = vmatpush2.msra.mxu0 0.0
          %1175 = vmatprep.subr.mxu0 0.0
          %1176 = vmatpush2.msra.mxu0 0.0
          %1177 = vmatprep.subr.mxu0 0.0
          %1178 = vmatpush2.msra.mxu0 0.0
          %1179 = vmatprep.subr.mxu0 0.0
          %1180 = vmatpush2.msra.mxu0 0.0
          %1181 = vmatprep.subr.mxu0 0.0
          %1182 = vmatpush2.msra.mxu0 0.0
          %1183 = vmatprep.subr.mxu0 0.0
          %1184 = vmatpush2.msra.mxu0 0.0
          %1185 = vmatprep.subr.mxu0 0.0
          %1186 = vmatpush2.msra.mxu0 0.0
          %1187 = vmatprep.subr.mxu0 0.0
          %1188 = vmatpush2.msra.mxu0 0.0
          %1189 = vmatprep.subr.mxu0 0.0
          %1190 = vmatpush2.msra.mxu0 0.0
          %1191 = vmatprep.subr.mxu0 0.0
          %1192 = vmatpush2.msra.mxu0 0.0
          %1193 = vmatprep.subr.mxu0 0.0
          %1194 = vmatpush2.msra.mxu0 0.0
          %1195 = vmatprep.subr.mxu0 0.0
          %1196 = vmatpush2.msra.mxu0 0.0
          %1197 = vmatprep.subr.mxu0 0.0
          %1198 = vmatpush2.msra.mxu0 0.0
          %1199 = vmatprep.subr.mxu0 0.0
          %1200 = vmatpush2.msra.mxu0 0.0
          %1201 = vmatprep.subr.mxu0 0.0
          %1202 = vmatpush2.msra.mxu0 0.0
          %1203 = vmatprep.mubr.f32.mxu0 0.0
          %1204 = vmatmul.mubr.f32.gmra.mxu0 %v1066
          %v1205 = vpop.f32.mrf.mxu0
          %v1206 = vadd.f32 %v1060, %v1205
          %v1207 = vpop.f32.mrf.mxu0
          %1208 = vdwg.mxu0
          %v1209 = vadd.f32 %v961, %v1135
          %v1210 = vxor.u32 %v1209, 2147483648
          %v1211 = vmul.f32 %v1210, 1.442695
          %v1212 = vpow.pop %v1211
          %v1213 = vadd.f32 %v1212, 1.0
          %v1214 = vrcp.pop %v1213
          %v1215 = vmul.f32 1.0, %v1214
          %v1216 = vadd.f32 %v963, %v1137
          %v1217 = vxor.u32 %v1216, 2147483648
          %v1218 = vmul.f32 %v1217, 1.442695
          %v1219 = vpow.pop %v1218
          %v1220 = vadd.f32 %v1219, 1.0
          %v1221 = vrcp.pop %v1220
          %v1222 = vmul.f32 1.0, %v1221
          %v1223 = vmul.f32 %v1215, %v1206
          %v1224 = vadd.f32 %v1032, %v1223
          %v1225 = vtanh.pop %v1224
          %v1226 = vsub.f32 1.0, %v1222
          %v1227 = vmul.f32 %v1226, %v1225
          %v1228 = vmul.f32 %v1222, %v866
          %v1229 = vadd.f32 %v1227, %v1228
          %v1230 = vld [vmem:[%s18] sm:$0x1]
          %v1231 = vld [vmem:[#allocation12] sm:$0xff]
          %v1232 = vld [vmem:[#allocation12 + $0x8] sm:$0xff]
          %v1233 = vld [vmem:[#allocation19] sm:$0xff]
          %v1234 = vld [vmem:[#allocation19 + $0x8] sm:$0xff]
          %v1235 = vld [vmem:[#allocation19 + $0x10] sm:$0xff]
          %v1236 = vld [vmem:[#allocation19 + $0x18] sm:$0xff]
          %v1238 = vsel %vm1064, %v1229, 0
          %1240 = vmatprep.subr.mxu0 0.0
          %1241 = vmatpush1.msra.mxu0 0.0
          %1242 = vmatprep.subr.mxu0 0.0
          %1243 = vmatpush1.msra.mxu0 0.0
          %1244 = vmatprep.subr.mxu0 0.0
          %1245 = vmatpush1.msra.mxu0 0.0
          %1246 = vmatprep.subr.mxu0 0.0
          %1247 = vmatpush1.msra.mxu0 0.0
          %1248 = vmatprep.subr.mxu0 0.0
          %1249 = vmatpush1.msra.mxu0 0.0
          %1250 = vmatprep.subr.mxu0 0.0
          %1251 = vmatpush1.msra.mxu0 0.0
          %1252 = vmatprep.subr.mxu0 0.0
          %1253 = vmatpush1.msra.mxu0 0.0
          %1254 = vmatprep.subr.mxu0 0.0
          %1255 = vmatpush1.msra.mxu0 0.0
          %1256 = vmatprep.subr.mxu0 0.0
          %1257 = vmatpush1.msra.mxu0 0.0
          %1258 = vmatprep.subr.mxu0 0.0
          %1259 = vmatpush1.msra.mxu0 0.0
          %1260 = vmatprep.subr.mxu0 0.0
          %1261 = vmatpush1.msra.mxu0 0.0
          %1262 = vmatprep.subr.mxu0 0.0
          %1263 = vmatpush1.msra.mxu0 0.0
          %1264 = vmatprep.subr.mxu0 0.0
          %1265 = vmatpush1.msra.mxu0 %v1236
          %1266 = vmatprep.subr.mxu0 0.0
          %1267 = vmatpush1.msra.mxu0 %v1235
          %1268 = vmatprep.subr.mxu0 0.0
          %1269 = vmatpush1.msra.mxu0 %v1234
          %1270 = vmatprep.subr.mxu0 0.0
          %1271 = vmatpush1.msra.mxu0 %v1233
          %1272 = vmatprep.subr.mxu0 0.0
          %1273 = vmatpush2.msra.mxu0 0.0
          %1274 = vmatprep.subr.mxu0 0.0
          %1275 = vmatpush2.msra.mxu0 0.0
          %1276 = vmatprep.subr.mxu0 0.0
          %1277 = vmatpush2.msra.mxu0 0.0
          %1278 = vmatprep.subr.mxu0 0.0
          %1279 = vmatpush2.msra.mxu0 0.0
          %1280 = vmatprep.subr.mxu0 0.0
          %1281 = vmatpush2.msra.mxu0 0.0
          %1282 = vmatprep.subr.mxu0 0.0
          %1283 = vmatpush2.msra.mxu0 0.0
          %1284 = vmatprep.subr.mxu0 0.0
          %1285 = vmatpush2.msra.mxu0 0.0
          %1286 = vmatprep.subr.mxu0 0.0
          %1287 = vmatpush2.msra.mxu0 0.0
          %1288 = vmatprep.subr.mxu0 0.0
          %1289 = vmatpush2.msra.mxu0 0.0
          %1290 = vmatprep.subr.mxu0 0.0
          %1291 = vmatpush2.msra.mxu0 0.0
          %1292 = vmatprep.subr.mxu0 0.0
          %1293 = vmatpush2.msra.mxu0 0.0
          %1294 = vmatprep.subr.mxu0 0.0
          %1295 = vmatpush2.msra.mxu0 0.0
          %1296 = vmatprep.subr.mxu0 0.0
          %1297 = vmatpush2.msra.mxu0 0.0
          %1298 = vmatprep.subr.mxu0 0.0
          %1299 = vmatpush2.msra.mxu0 0.0
          %1300 = vmatprep.subr.mxu0 0.0
          %1301 = vmatpush2.msra.mxu0 0.0
          %1302 = vmatprep.subr.mxu0 0.0
          %1303 = vmatpush2.msra.mxu0 0.0
          %1304 = vmatprep.mubr.f32.mxu0 0.0
          %1305 = vmatmul.mubr.f32.gmra.mxu0 %v1238
          %v1306 = vpop.f32.mrf.mxu0
          %v1307 = vadd.f32 0.0, %v1306
          %v1308 = vpop.f32.mrf.mxu0
          %1309 = vdwg.mxu0
          %v1312 = vunpack.c.l.s4 1966171168
          %v1313 = vunpack.c.0.s8 %v1312
          %v1314 = vlaneseq
          %v1315 = vshrl.u32 %v1314, 7
          %v1316 = vsub.s32 %v1313, %v1315
          %v1317 = vrot.slane %v1307, %v1316
          %v1318 = vcombine.high %v1317, %v1317
          %v1320 = vunpack.c.l.s4 1966171168
          %v1321 = vunpack.c.0.s8 %v1320
          %v1322 = vlaneseq
          %v1323 = vshrl.u32 %v1322, 7
          %v1324 = vsub.s32 %v1321, %v1323
          %v1325 = vrot.slane %v1317, %v1324
          %v1327 = vunpack.c.l.s4 1966171168
          %v1328 = vunpack.c.0.s8 %v1327
          %v1329 = vlaneseq
          %v1330 = vshrl.u32 %v1329, 7
          %v1331 = vsub.s32 %v1328, %v1330
          %v1332 = vrot.slane %v1318, %v1331
          %v1333 = vsel %vm1064, %v1325, 0
          %v1336 = vsel %vm1064, %v1231, 0
          %1338 = vmatprep.subr.mxu0 0.0
          %1339 = vmatpush1.xpose.msra.mxu0 0.0
          %1340 = vmatprep.subr.mxu0 0.0
          %1341 = vmatpush1.xpose.msra.mxu0 0.0
          %1342 = vmatprep.subr.mxu0 0.0
          %1343 = vmatpush1.xpose.msra.mxu0 0.0
          %1344 = vmatprep.subr.mxu0 0.0
          %1345 = vmatpush1.xpose.msra.mxu0 0.0
          %1346 = vmatprep.subr.mxu0 0.0
          %1347 = vmatpush1.xpose.msra.mxu0 0.0
          %1348 = vmatprep.subr.mxu0 0.0
          %1349 = vmatpush1.xpose.msra.mxu0 0.0
          %1350 = vmatprep.subr.mxu0 0.0
          %1351 = vmatpush1.xpose.msra.mxu0 0.0
          %1352 = vmatprep.subr.mxu0 0.0
          %1353 = vmatpush1.xpose.msra.mxu0 0.0
          %1354 = vmatprep.subr.mxu0 0.0
          %1355 = vmatpush1.xpose.msra.mxu0 0.0
          %1356 = vmatprep.subr.mxu0 0.0
          %1357 = vmatpush1.xpose.msra.mxu0 0.0
          %1358 = vmatprep.subr.mxu0 0.0
          %1359 = vmatpush1.xpose.msra.mxu0 0.0
          %1360 = vmatprep.subr.mxu0 0.0
          %1361 = vmatpush1.xpose.msra.mxu0 0.0
          %1362 = vmatprep.subr.mxu0 0.0
          %1363 = vmatpush1.xpose.msra.mxu0 0.0
          %1364 = vmatprep.subr.mxu0 0.0
          %1365 = vmatpush1.xpose.msra.mxu0 0.0
          %1366 = vmatprep.subr.mxu0 0.0
          %1367 = vmatpush1.xpose.msra.mxu0 0.0
          %1368 = vmatprep.subr.mxu0 0.0
          %1369 = vmatpush1.xpose.msra.mxu0 %v1336
          %1370 = vmatprep.subr.mxu0 0.0
          %1371 = vmatpush2.xpose.msra.mxu0 0.0
          %1372 = vmatprep.subr.mxu0 0.0
          %1373 = vmatpush2.xpose.msra.mxu0 0.0
          %1374 = vmatprep.subr.mxu0 0.0
          %1375 = vmatpush2.xpose.msra.mxu0 0.0
          %1376 = vmatprep.subr.mxu0 0.0
          %1377 = vmatpush2.xpose.msra.mxu0 0.0
          %1378 = vmatprep.subr.mxu0 0.0
          %1379 = vmatpush2.xpose.msra.mxu0 0.0
          %1380 = vmatprep.subr.mxu0 0.0
          %1381 = vmatpush2.xpose.msra.mxu0 0.0
          %1382 = vmatprep.subr.mxu0 0.0
          %1383 = vmatpush2.xpose.msra.mxu0 0.0
          %1384 = vmatprep.subr.mxu0 0.0
          %1385 = vmatpush2.xpose.msra.mxu0 0.0
          %1386 = vmatprep.subr.mxu0 0.0
          %1387 = vmatpush2.xpose.msra.mxu0 0.0
          %1388 = vmatprep.subr.mxu0 0.0
          %1389 = vmatpush2.xpose.msra.mxu0 0.0
          %1390 = vmatprep.subr.mxu0 0.0
          %1391 = vmatpush2.xpose.msra.mxu0 0.0
          %1392 = vmatprep.subr.mxu0 0.0
          %1393 = vmatpush2.xpose.msra.mxu0 0.0
          %1394 = vmatprep.subr.mxu0 0.0
          %1395 = vmatpush2.xpose.msra.mxu0 0.0
          %1396 = vmatprep.subr.mxu0 0.0
          %1397 = vmatpush2.xpose.msra.mxu0 0.0
          %1398 = vmatprep.subr.mxu0 0.0
          %1399 = vmatpush2.xpose.msra.mxu0 0.0
          %1400 = vmatprep.subr.mxu0 0.0
          %1401 = vmatpush2.xpose.msra.mxu0 0.0
          %1402 = vmatprep.mubr.f32.mxu0 0.0
          %1403 = vmatmul.mubr.f32.gmra.mxu0 %v1333
          %v1404 = vpop.f32.mrf.mxu0
          %v1405 = vadd.f32 0.0, %v1404
          %v1406 = vpop.f32.mrf.mxu0
          %1407 = vdwg.mxu0
          %v1408 = vsel %vm1064, %v1332, 0
          %v1411 = vsel %vm1064, %v1232, 0
          %1413 = vmatprep.subr.mxu0 0.0
          %1414 = vmatpush1.xpose.msra.mxu0 0.0
          %1415 = vmatprep.subr.mxu0 0.0
          %1416 = vmatpush1.xpose.msra.mxu0 0.0
          %1417 = vmatprep.subr.mxu0 0.0
          %1418 = vmatpush1.xpose.msra.mxu0 0.0
          %1419 = vmatprep.subr.mxu0 0.0
          %1420 = vmatpush1.xpose.msra.mxu0 0.0
          %1421 = vmatprep.subr.mxu0 0.0
          %1422 = vmatpush1.xpose.msra.mxu0 0.0
          %1423 = vmatprep.subr.mxu0 0.0
          %1424 = vmatpush1.xpose.msra.mxu0 0.0
          %1425 = vmatprep.subr.mxu0 0.0
          %1426 = vmatpush1.xpose.msra.mxu0 0.0
          %1427 = vmatprep.subr.mxu0 0.0
          %1428 = vmatpush1.xpose.msra.mxu0 0.0
          %1429 = vmatprep.subr.mxu0 0.0
          %1430 = vmatpush1.xpose.msra.mxu0 0.0
          %1431 = vmatprep.subr.mxu0 0.0
          %1432 = vmatpush1.xpose.msra.mxu0 0.0
          %1433 = vmatprep.subr.mxu0 0.0
          %1434 = vmatpush1.xpose.msra.mxu0 0.0
          %1435 = vmatprep.subr.mxu0 0.0
          %1436 = vmatpush1.xpose.msra.mxu0 0.0
          %1437 = vmatprep.subr.mxu0 0.0
          %1438 = vmatpush1.xpose.msra.mxu0 0.0
          %1439 = vmatprep.subr.mxu0 0.0
          %1440 = vmatpush1.xpose.msra.mxu0 0.0
          %1441 = vmatprep.subr.mxu0 0.0
          %1442 = vmatpush1.xpose.msra.mxu0 0.0
          %1443 = vmatprep.subr.mxu0 0.0
          %1444 = vmatpush1.xpose.msra.mxu0 %v1411
          %1445 = vmatprep.subr.mxu0 0.0
          %1446 = vmatpush2.xpose.msra.mxu0 0.0
          %1447 = vmatprep.subr.mxu0 0.0
          %1448 = vmatpush2.xpose.msra.mxu0 0.0
          %1449 = vmatprep.subr.mxu0 0.0
          %1450 = vmatpush2.xpose.msra.mxu0 0.0
          %1451 = vmatprep.subr.mxu0 0.0
          %1452 = vmatpush2.xpose.msra.mxu0 0.0
          %1453 = vmatprep.subr.mxu0 0.0
          %1454 = vmatpush2.xpose.msra.mxu0 0.0
          %1455 = vmatprep.subr.mxu0 0.0
          %1456 = vmatpush2.xpose.msra.mxu0 0.0
          %1457 = vmatprep.subr.mxu0 0.0
          %1458 = vmatpush2.xpose.msra.mxu0 0.0
          %1459 = vmatprep.subr.mxu0 0.0
          %1460 = vmatpush2.xpose.msra.mxu0 0.0
          %1461 = vmatprep.subr.mxu0 0.0
          %1462 = vmatpush2.xpose.msra.mxu0 0.0
          %1463 = vmatprep.subr.mxu0 0.0
          %1464 = vmatpush2.xpose.msra.mxu0 0.0
          %1465 = vmatprep.subr.mxu0 0.0
          %1466 = vmatpush2.xpose.msra.mxu0 0.0
          %1467 = vmatprep.subr.mxu0 0.0
          %1468 = vmatpush2.xpose.msra.mxu0 0.0
          %1469 = vmatprep.subr.mxu0 0.0
          %1470 = vmatpush2.xpose.msra.mxu0 0.0
          %1471 = vmatprep.subr.mxu0 0.0
          %1472 = vmatpush2.xpose.msra.mxu0 0.0
          %1473 = vmatprep.subr.mxu0 0.0
          %1474 = vmatpush2.xpose.msra.mxu0 0.0
          %1475 = vmatprep.subr.mxu0 0.0
          %1476 = vmatpush2.xpose.msra.mxu0 0.0
          %1477 = vmatprep.mubr.f32.mxu0 0.0
          %1478 = vmatmul.mubr.f32.gmra.mxu0 %v1408
          %v1479 = vpop.f32.mrf.mxu0
          %v1480 = vadd.f32 0.0, %v1479
          %v1481 = vpop.f32.mrf.mxu0
          %1482 = vdwg.mxu0
          %v1484 = vlaneseq
          %v1485 = vshrl.u32 %v1484, 7
          %v1486 = vsub.s32 0, %v1485
          %v1487 = vrot.slane %v1230, %v1486
          %1488 = vset.pattern.permute.xlu0 0
          %1489 = vperm.xlu0 %1488, %v1487
          %v1490 = vpop.permute.xlu0 %1489
          %v1492 = vadd.f32 %v1405, %v1490
          %v1493 = vadd.f32 %v1480, %v1490
          %v1494 = vld [vmem:[#allocation15] sm:$0x3]
          %v1495 = vadd.f32 %v1494, 1e-31
          %v1496 = vlog2.pop %v1495
          %v1497 = vmul.f32 %v1496, 0.6931472
          %1498 = vset.pattern.permute.xlu0 2
          %1499 = vperm.xlu0 %1498, %v1487
          %v1500 = vpop.permute.xlu0 %1499
          %v1502 = vmul.f32 %v1500, %v1497
          %v1504 = vrot.slane %v1502, 1
          %v1507 = vadd.f32 %v1492, %v1502
          %v1508 = vadd.f32 %v1493, %v1504
          %v1511 = vrot.slane %v1508, 7
          %vm1512 = vcmask 1041409
          %v1513 = vsel %vm1512, %v1511, %v1507
          %vm1515 = vcmask 58368
          %v1516 = vsel %vm1515, %v1513, -inf
          %1517 = vmax.xlane.f32.xlu0 %v1516
          %v1518 = vpop.xlane.xlu0 %1517
          %v1520 = vrot.slane %v1518, 1
          %v1523 = vsub.f32 %v1507, %v1518
          %v1524 = vsub.f32 %v1508, %v1520
          %v1525 = vmul.f32 %v1523, 1.442695
          %v1526 = vpow.pop %v1525
          %v1527 = vmul.f32 %v1524, 1.442695
          %v1528 = vpow.pop %v1527
          %v1531 = vrot.slane %v1528, 7
          %v1532 = vsel %vm1512, %v1531, %v1526
          %v1534 = vsel %vm1515, %v1532, 0.0
          %1535 = vadd.xlane.f32.xlu0 %v1534
          %v1536 = vpop.xlane.xlu0 %1535
          %v1537 = vrcp.pop %v1536
          %v1539 = vrot.slane %v1537, 1
          %v1542 = vmul.f32 %v1526, %v1537
          %v1543 = vmul.f32 %v1528, %v1539
          %vm1544 = vcmask 64512
          %v1546 = vsel %vm1544, %v1542, 0
          %1548 = vmatprep.subr.mxu0 0.0
          %1549 = vmatpush1.msra.mxu0 0.0
          %1550 = vmatprep.subr.mxu0 0.0
          %1551 = vmatpush1.msra.mxu0 0.0
          %1552 = vmatprep.subr.mxu0 0.0
          %1553 = vmatpush1.msra.mxu0 0.0
          %1554 = vmatprep.subr.mxu0 0.0
          %1555 = vmatpush1.msra.mxu0 0.0
          %1556 = vmatprep.subr.mxu0 0.0
          %1557 = vmatpush1.msra.mxu0 0.0
          %1558 = vmatprep.subr.mxu0 0.0
          %1559 = vmatpush1.msra.mxu0 0.0
          %1560 = vmatprep.subr.mxu0 0.0
          %1561 = vmatpush1.msra.mxu0 0.0
          %1562 = vmatprep.subr.mxu0 0.0
          %1563 = vmatpush1.msra.mxu0 0.0
          %1564 = vmatprep.subr.mxu0 0.0
          %1565 = vmatpush1.msra.mxu0 0.0
          %1566 = vmatprep.subr.mxu0 0.0
          %1567 = vmatpush1.msra.mxu0 0.0
          %1568 = vmatprep.subr.mxu0 0.0
          %1569 = vmatpush1.msra.mxu0 0.0
          %1570 = vmatprep.subr.mxu0 0.0
          %1571 = vmatpush1.msra.mxu0 0.0
          %1572 = vmatprep.subr.mxu0 0.0
          %1573 = vmatpush1.msra.mxu0 0.0
          %1574 = vmatprep.subr.mxu0 0.0
          %1575 = vmatpush1.msra.mxu0 0.0
          %1576 = vmatprep.subr.mxu0 0.0
          %1577 = vmatpush1.msra.mxu0 0.0
          %1578 = vmatprep.subr.mxu0 0.0
          %1579 = vmatpush1.msra.mxu0 %v1231
          %1580 = vmatprep.subr.mxu0 0.0
          %1581 = vmatpush2.msra.mxu0 0.0
          %1582 = vmatprep.subr.mxu0 0.0
          %1583 = vmatpush2.msra.mxu0 0.0
          %1584 = vmatprep.subr.mxu0 0.0
          %1585 = vmatpush2.msra.mxu0 0.0
          %1586 = vmatprep.subr.mxu0 0.0
          %1587 = vmatpush2.msra.mxu0 0.0
          %1588 = vmatprep.subr.mxu0 0.0
          %1589 = vmatpush2.msra.mxu0 0.0
          %1590 = vmatprep.subr.mxu0 0.0
          %1591 = vmatpush2.msra.mxu0 0.0
          %1592 = vmatprep.subr.mxu0 0.0
          %1593 = vmatpush2.msra.mxu0 0.0
          %1594 = vmatprep.subr.mxu0 0.0
          %1595 = vmatpush2.msra.mxu0 0.0
          %1596 = vmatprep.subr.mxu0 0.0
          %1597 = vmatpush2.msra.mxu0 0.0
          %1598 = vmatprep.subr.mxu0 0.0
          %1599 = vmatpush2.msra.mxu0 0.0
          %1600 = vmatprep.subr.mxu0 0.0
          %1601 = vmatpush2.msra.mxu0 0.0
          %1602 = vmatprep.subr.mxu0 0.0
          %1603 = vmatpush2.msra.mxu0 0.0
          %1604 = vmatprep.subr.mxu0 0.0
          %1605 = vmatpush2.msra.mxu0 0.0
          %1606 = vmatprep.subr.mxu0 0.0
          %1607 = vmatpush2.msra.mxu0 0.0
          %1608 = vmatprep.subr.mxu0 0.0
          %1609 = vmatpush2.msra.mxu0 0.0
          %1610 = vmatprep.subr.mxu0 0.0
          %1611 = vmatpush2.msra.mxu0 0.0
          %1612 = vmatprep.mubr.f32.mxu0 0.0
          %1613 = vmatmul.mubr.f32.gmra.mxu0 %v1546
          %v1614 = vpop.f32.mrf.mxu0
          %v1615 = vadd.f32 0.0, %v1614
          %v1616 = vpop.f32.mrf.mxu0
          %1617 = vdwg.mxu0
          %v1619 = vsel %vm1544, %v1543, 0
          %1621 = vmatprep.subr.mxu0 0.0
          %1622 = vmatpush1.msra.mxu0 0.0
          %1623 = vmatprep.subr.mxu0 0.0
          %1624 = vmatpush1.msra.mxu0 0.0
          %1625 = vmatprep.subr.mxu0 0.0
          %1626 = vmatpush1.msra.mxu0 0.0
          %1627 = vmatprep.subr.mxu0 0.0
          %1628 = vmatpush1.msra.mxu0 0.0
          %1629 = vmatprep.subr.mxu0 0.0
          %1630 = vmatpush1.msra.mxu0 0.0
          %1631 = vmatprep.subr.mxu0 0.0
          %1632 = vmatpush1.msra.mxu0 0.0
          %1633 = vmatprep.subr.mxu0 0.0
          %1634 = vmatpush1.msra.mxu0 0.0
          %1635 = vmatprep.subr.mxu0 0.0
          %1636 = vmatpush1.msra.mxu0 0.0
          %1637 = vmatprep.subr.mxu0 0.0
          %1638 = vmatpush1.msra.mxu0 0.0
          %1639 = vmatprep.subr.mxu0 0.0
          %1640 = vmatpush1.msra.mxu0 0.0
          %1641 = vmatprep.subr.mxu0 0.0
          %1642 = vmatpush1.msra.mxu0 0.0
          %1643 = vmatprep.subr.mxu0 0.0
          %1644 = vmatpush1.msra.mxu0 0.0
          %1645 = vmatprep.subr.mxu0 0.0
          %1646 = vmatpush1.msra.mxu0 0.0
          %1647 = vmatprep.subr.mxu0 0.0
          %1648 = vmatpush1.msra.mxu0 0.0
          %1649 = vmatprep.subr.mxu0 0.0
          %1650 = vmatpush1.msra.mxu0 0.0
          %1651 = vmatprep.subr.mxu0 0.0
          %1652 = vmatpush1.msra.mxu0 %v1232
          %1653 = vmatprep.subr.mxu0 0.0
          %1654 = vmatpush2.msra.mxu0 0.0
          %1655 = vmatprep.subr.mxu0 0.0
          %1656 = vmatpush2.msra.mxu0 0.0
          %1657 = vmatprep.subr.mxu0 0.0
          %1658 = vmatpush2.msra.mxu0 0.0
          %1659 = vmatprep.subr.mxu0 0.0
          %1660 = vmatpush2.msra.mxu0 0.0
          %1661 = vmatprep.subr.mxu0 0.0
          %1662 = vmatpush2.msra.mxu0 0.0
          %1663 = vmatprep.subr.mxu0 0.0
          %1664 = vmatpush2.msra.mxu0 0.0
          %1665 = vmatprep.subr.mxu0 0.0
          %1666 = vmatpush2.msra.mxu0 0.0
          %1667 = vmatprep.subr.mxu0 0.0
          %1668 = vmatpush2.msra.mxu0 0.0
          %1669 = vmatprep.subr.mxu0 0.0
          %1670 = vmatpush2.msra.mxu0 0.0
          %1671 = vmatprep.subr.mxu0 0.0
          %1672 = vmatpush2.msra.mxu0 0.0
          %1673 = vmatprep.subr.mxu0 0.0
          %1674 = vmatpush2.msra.mxu0 0.0
          %1675 = vmatprep.subr.mxu0 0.0
          %1676 = vmatpush2.msra.mxu0 0.0
          %1677 = vmatprep.subr.mxu0 0.0
          %1678 = vmatpush2.msra.mxu0 0.0
          %1679 = vmatprep.subr.mxu0 0.0
          %1680 = vmatpush2.msra.mxu0 0.0
          %1681 = vmatprep.subr.mxu0 0.0
          %1682 = vmatpush2.msra.mxu0 0.0
          %1683 = vmatprep.subr.mxu0 0.0
          %1684 = vmatpush2.msra.mxu0 0.0
          %1685 = vmatprep.mubr.f32.mxu0 0.0
          %1686 = vmatmul.mubr.f32.gmra.mxu0 %v1619
          %v1687 = vpop.f32.mrf.mxu0
          %v1688 = vadd.f32 0.0, %v1687
          %v1689 = vpop.f32.mrf.mxu0
          %1690 = vdwg.mxu0
          %v1691 = vld [vmem:[#allocation13] sm:$0xf]
          %v1692 = vld [vmem:[#allocation13 + $0x4] sm:$0xf]
          %v1693 = vld [vmem:[#allocation21] sm:$0xff]
          %v1694 = vld [vmem:[#allocation21 + $0x8] sm:$0xff]
          %v1695 = vld [vmem:[#allocation21 + $0x10] sm:$0xff]
          %v1696 = vld [vmem:[#allocation21 + $0x18] sm:$0xff]
          %1697 = vmatprep.subr.mxu0 0.0
          %1698 = vmatpush1.msra.mxu0 0.0
          %1699 = vmatprep.subr.mxu0 0.0
          %1700 = vmatpush1.msra.mxu0 0.0
          %1701 = vmatprep.subr.mxu0 0.0
          %1702 = vmatpush1.msra.mxu0 0.0
          %1703 = vmatprep.subr.mxu0 0.0
          %1704 = vmatpush1.msra.mxu0 0.0
          %1705 = vmatprep.subr.mxu0 0.0
          %1706 = vmatpush1.msra.mxu0 0.0
          %1707 = vmatprep.subr.mxu0 0.0
          %1708 = vmatpush1.msra.mxu0 0.0
          %1709 = vmatprep.subr.mxu0 0.0
          %1710 = vmatpush1.msra.mxu0 0.0
          %1711 = vmatprep.subr.mxu0 0.0
          %1712 = vmatpush1.msra.mxu0 0.0
          %1713 = vmatprep.subr.mxu0 0.0
          %1714 = vmatpush1.msra.mxu0 0.0
          %1715 = vmatprep.subr.mxu0 0.0
          %1716 = vmatpush1.msra.mxu0 0.0
          %1717 = vmatprep.subr.mxu0 0.0
          %1718 = vmatpush1.msra.mxu0 0.0
          %1719 = vmatprep.subr.mxu0 0.0
          %1720 = vmatpush1.msra.mxu0 0.0
          %1721 = vmatprep.subr.mxu0 0.0
          %1722 = vmatpush1.msra.mxu0 %v1696
          %1723 = vmatprep.subr.mxu0 0.0
          %1724 = vmatpush1.msra.mxu0 %v1695
          %1725 = vmatprep.subr.mxu0 0.0
          %1726 = vmatpush1.msra.mxu0 %v1694
          %1727 = vmatprep.subr.mxu0 0.0
          %1728 = vmatpush1.msra.mxu0 %v1693
          %1729 = vmatprep.subr.mxu0 0.0
          %1730 = vmatpush2.msra.mxu0 0.0
          %1731 = vmatprep.subr.mxu0 0.0
          %1732 = vmatpush2.msra.mxu0 0.0
          %1733 = vmatprep.subr.mxu0 0.0
          %1734 = vmatpush2.msra.mxu0 0.0
          %1735 = vmatprep.subr.mxu0 0.0
          %1736 = vmatpush2.msra.mxu0 0.0
          %1737 = vmatprep.subr.mxu0 0.0
          %1738 = vmatpush2.msra.mxu0 0.0
          %1739 = vmatprep.subr.mxu0 0.0
          %1740 = vmatpush2.msra.mxu0 0.0
          %1741 = vmatprep.subr.mxu0 0.0
          %1742 = vmatpush2.msra.mxu0 0.0
          %1743 = vmatprep.subr.mxu0 0.0
          %1744 = vmatpush2.msra.mxu0 0.0
          %1745 = vmatprep.subr.mxu0 0.0
          %1746 = vmatpush2.msra.mxu0 0.0
          %1747 = vmatprep.subr.mxu0 0.0
          %1748 = vmatpush2.msra.mxu0 0.0
          %1749 = vmatprep.subr.mxu0 0.0
          %1750 = vmatpush2.msra.mxu0 0.0
          %1751 = vmatprep.subr.mxu0 0.0
          %1752 = vmatpush2.msra.mxu0 0.0
          %1753 = vmatprep.subr.mxu0 0.0
          %1754 = vmatpush2.msra.mxu0 0.0
          %1755 = vmatprep.subr.mxu0 0.0
          %1756 = vmatpush2.msra.mxu0 0.0
          %1757 = vmatprep.subr.mxu0 0.0
          %1758 = vmatpush2.msra.mxu0 0.0
          %1759 = vmatprep.subr.mxu0 0.0
          %1760 = vmatpush2.msra.mxu0 0.0
          %1761 = vmatprep.mubr.f32.mxu0 0.0
          %1762 = vmatmul.mubr.f32.gmra.mxu0 %v1238
          %v1763 = vpop.f32.mrf.mxu0
          %v1764 = vadd.f32 0.0, %v1763
          %v1765 = vpop.f32.mrf.mxu0
          %1766 = vdwg.mxu0
          %v1769 = vunpack.c.l.s4 1966171168
          %v1770 = vunpack.c.0.s8 %v1769
          %v1771 = vlaneseq
          %v1772 = vshrl.u32 %v1771, 7
          %v1773 = vsub.s32 %v1770, %v1772
          %v1774 = vrot.slane %v1764, %v1773
          %v1775 = vcombine.high %v1774, %v1774
          %v1777 = vunpack.c.l.s4 1966171168
          %v1778 = vunpack.c.0.s8 %v1777
          %v1779 = vlaneseq
          %v1780 = vshrl.u32 %v1779, 7
          %v1781 = vsub.s32 %v1778, %v1780
          %v1782 = vrot.slane %v1774, %v1781
          %v1784 = vunpack.c.l.s4 1966171168
          %v1785 = vunpack.c.0.s8 %v1784
          %v1786 = vlaneseq
          %v1787 = vshrl.u32 %v1786, 7
          %v1788 = vsub.s32 %v1785, %v1787
          %v1789 = vrot.slane %v1775, %v1788
          %v1790 = vsel %vm1064, %v1782, 0
          %v1793 = vsel %vm1064, %v1691, 0
          %1795 = vmatprep.subr.mxu0 0.0
          %1796 = vmatpush1.xpose.msra.mxu0 0.0
          %1797 = vmatprep.subr.mxu0 0.0
          %1798 = vmatpush1.xpose.msra.mxu0 0.0
          %1799 = vmatprep.subr.mxu0 0.0
          %1800 = vmatpush1.xpose.msra.mxu0 0.0
          %1801 = vmatprep.subr.mxu0 0.0
          %1802 = vmatpush1.xpose.msra.mxu0 0.0
          %1803 = vmatprep.subr.mxu0 0.0
          %1804 = vmatpush1.xpose.msra.mxu0 0.0
          %1805 = vmatprep.subr.mxu0 0.0
          %1806 = vmatpush1.xpose.msra.mxu0 0.0
          %1807 = vmatprep.subr.mxu0 0.0
          %1808 = vmatpush1.xpose.msra.mxu0 0.0
          %1809 = vmatprep.subr.mxu0 0.0
          %1810 = vmatpush1.xpose.msra.mxu0 0.0
          %1811 = vmatprep.subr.mxu0 0.0
          %1812 = vmatpush1.xpose.msra.mxu0 0.0
          %1813 = vmatprep.subr.mxu0 0.0
          %1814 = vmatpush1.xpose.msra.mxu0 0.0
          %1815 = vmatprep.subr.mxu0 0.0
          %1816 = vmatpush1.xpose.msra.mxu0 0.0
          %1817 = vmatprep.subr.mxu0 0.0
          %1818 = vmatpush1.xpose.msra.mxu0 0.0
          %1819 = vmatprep.subr.mxu0 0.0
          %1820 = vmatpush1.xpose.msra.mxu0 0.0
          %1821 = vmatprep.subr.mxu0 0.0
          %1822 = vmatpush1.xpose.msra.mxu0 0.0
          %1823 = vmatprep.subr.mxu0 0.0
          %1824 = vmatpush1.xpose.msra.mxu0 0.0
          %1825 = vmatprep.subr.mxu0 0.0
          %1826 = vmatpush1.xpose.msra.mxu0 %v1793
          %1827 = vmatprep.subr.mxu0 0.0
          %1828 = vmatpush2.xpose.msra.mxu0 0.0
          %1829 = vmatprep.subr.mxu0 0.0
          %1830 = vmatpush2.xpose.msra.mxu0 0.0
          %1831 = vmatprep.subr.mxu0 0.0
          %1832 = vmatpush2.xpose.msra.mxu0 0.0
          %1833 = vmatprep.subr.mxu0 0.0
          %1834 = vmatpush2.xpose.msra.mxu0 0.0
          %1835 = vmatprep.subr.mxu0 0.0
          %1836 = vmatpush2.xpose.msra.mxu0 0.0
          %1837 = vmatprep.subr.mxu0 0.0
          %1838 = vmatpush2.xpose.msra.mxu0 0.0
          %1839 = vmatprep.subr.mxu0 0.0
          %1840 = vmatpush2.xpose.msra.mxu0 0.0
          %1841 = vmatprep.subr.mxu0 0.0
          %1842 = vmatpush2.xpose.msra.mxu0 0.0
          %1843 = vmatprep.subr.mxu0 0.0
          %1844 = vmatpush2.xpose.msra.mxu0 0.0
          %1845 = vmatprep.subr.mxu0 0.0
          %1846 = vmatpush2.xpose.msra.mxu0 0.0
          %1847 = vmatprep.subr.mxu0 0.0
          %1848 = vmatpush2.xpose.msra.mxu0 0.0
          %1849 = vmatprep.subr.mxu0 0.0
          %1850 = vmatpush2.xpose.msra.mxu0 0.0
          %1851 = vmatprep.subr.mxu0 0.0
          %1852 = vmatpush2.xpose.msra.mxu0 0.0
          %1853 = vmatprep.subr.mxu0 0.0
          %1854 = vmatpush2.xpose.msra.mxu0 0.0
          %1855 = vmatprep.subr.mxu0 0.0
          %1856 = vmatpush2.xpose.msra.mxu0 0.0
          %1857 = vmatprep.subr.mxu0 0.0
          %1858 = vmatpush2.xpose.msra.mxu0 0.0
          %1859 = vmatprep.mubr.f32.mxu0 0.0
          %1860 = vmatmul.mubr.f32.gmra.mxu0 %v1790
          %v1861 = vpop.f32.mrf.mxu0
          %v1862 = vadd.f32 0.0, %v1861
          %v1863 = vpop.f32.mrf.mxu0
          %1864 = vdwg.mxu0
          %v1865 = vsel %vm1064, %v1789, 0
          %v1868 = vsel %vm1064, %v1692, 0
          %1870 = vmatprep.subr.mxu0 0.0
          %1871 = vmatpush1.xpose.msra.mxu0 0.0
          %1872 = vmatprep.subr.mxu0 0.0
          %1873 = vmatpush1.xpose.msra.mxu0 0.0
          %1874 = vmatprep.subr.mxu0 0.0
          %1875 = vmatpush1.xpose.msra.mxu0 0.0
          %1876 = vmatprep.subr.mxu0 0.0
          %1877 = vmatpush1.xpose.msra.mxu0 0.0
          %1878 = vmatprep.subr.mxu0 0.0
          %1879 = vmatpush1.xpose.msra.mxu0 0.0
          %1880 = vmatprep.subr.mxu0 0.0
          %1881 = vmatpush1.xpose.msra.mxu0 0.0
          %1882 = vmatprep.subr.mxu0 0.0
          %1883 = vmatpush1.xpose.msra.mxu0 0.0
          %1884 = vmatprep.subr.mxu0 0.0
          %1885 = vmatpush1.xpose.msra.mxu0 0.0
          %1886 = vmatprep.subr.mxu0 0.0
          %1887 = vmatpush1.xpose.msra.mxu0 0.0
          %1888 = vmatprep.subr.mxu0 0.0
          %1889 = vmatpush1.xpose.msra.mxu0 0.0
          %1890 = vmatprep.subr.mxu0 0.0
          %1891 = vmatpush1.xpose.msra.mxu0 0.0
          %1892 = vmatprep.subr.mxu0 0.0
          %1893 = vmatpush1.xpose.msra.mxu0 0.0
          %1894 = vmatprep.subr.mxu0 0.0
          %1895 = vmatpush1.xpose.msra.mxu0 0.0
          %1896 = vmatprep.subr.mxu0 0.0
          %1897 = vmatpush1.xpose.msra.mxu0 0.0
          %1898 = vmatprep.subr.mxu0 0.0
          %1899 = vmatpush1.xpose.msra.mxu0 0.0
          %1900 = vmatprep.subr.mxu0 0.0
          %1901 = vmatpush1.xpose.msra.mxu0 %v1868
          %1902 = vmatprep.subr.mxu0 0.0
          %1903 = vmatpush2.xpose.msra.mxu0 0.0
          %1904 = vmatprep.subr.mxu0 0.0
          %1905 = vmatpush2.xpose.msra.mxu0 0.0
          %1906 = vmatprep.subr.mxu0 0.0
          %1907 = vmatpush2.xpose.msra.mxu0 0.0
          %1908 = vmatprep.subr.mxu0 0.0
          %1909 = vmatpush2.xpose.msra.mxu0 0.0
          %1910 = vmatprep.subr.mxu0 0.0
          %1911 = vmatpush2.xpose.msra.mxu0 0.0
          %1912 = vmatprep.subr.mxu0 0.0
          %1913 = vmatpush2.xpose.msra.mxu0 0.0
          %1914 = vmatprep.subr.mxu0 0.0
          %1915 = vmatpush2.xpose.msra.mxu0 0.0
          %1916 = vmatprep.subr.mxu0 0.0
          %1917 = vmatpush2.xpose.msra.mxu0 0.0
          %1918 = vmatprep.subr.mxu0 0.0
          %1919 = vmatpush2.xpose.msra.mxu0 0.0
          %1920 = vmatprep.subr.mxu0 0.0
          %1921 = vmatpush2.xpose.msra.mxu0 0.0
          %1922 = vmatprep.subr.mxu0 0.0
          %1923 = vmatpush2.xpose.msra.mxu0 0.0
          %1924 = vmatprep.subr.mxu0 0.0
          %1925 = vmatpush2.xpose.msra.mxu0 0.0
          %1926 = vmatprep.subr.mxu0 0.0
          %1927 = vmatpush2.xpose.msra.mxu0 0.0
          %1928 = vmatprep.subr.mxu0 0.0
          %1929 = vmatpush2.xpose.msra.mxu0 0.0
          %1930 = vmatprep.subr.mxu0 0.0
          %1931 = vmatpush2.xpose.msra.mxu0 0.0
          %1932 = vmatprep.subr.mxu0 0.0
          %1933 = vmatpush2.xpose.msra.mxu0 0.0
          %1934 = vmatprep.mubr.f32.mxu0 0.0
          %1935 = vmatmul.mubr.f32.gmra.mxu0 %v1865
          %v1936 = vpop.f32.mrf.mxu0
          %v1937 = vadd.f32 0.0, %v1936
          %v1938 = vpop.f32.mrf.mxu0
          %1939 = vdwg.mxu0
          %1940 = vset.pattern.permute.xlu0 1
          %1941 = vperm.xlu0 %1940, %v1487
          %v1942 = vpop.permute.xlu0 %1941
          %v1944 = vadd.f32 %v1862, %v1942
          %v1945 = vadd.f32 %v1937, %v1942
          %v1948 = vrot.slane %v1945, 7
          %v1949 = vsel %vm1512, %v1948, %v1944
          %vm1951 = vcmask 25600
          %v1952 = vsel %vm1951, %v1949, -inf
          %1953 = vmax.xlane.f32.xlu0 %v1952
          %v1954 = vpop.xlane.xlu0 %1953
          %v1956 = vrot.slane %v1954, 1
          %v1959 = vsub.f32 %v1944, %v1954
          %v1960 = vsub.f32 %v1945, %v1956
          %v1961 = vmul.f32 %v1959, 1.442695
          %v1962 = vpow.pop %v1961
          %v1963 = vmul.f32 %v1960, 1.442695
          %v1964 = vpow.pop %v1963
          %v1967 = vrot.slane %v1964, 7
          %v1968 = vsel %vm1512, %v1967, %v1962
          %v1970 = vsel %vm1951, %v1968, 0.0
          %1971 = vadd.xlane.f32.xlu0 %v1970
          %v1972 = vpop.xlane.xlu0 %1971
          %v1973 = vrcp.pop %v1972
          %v1975 = vrot.slane %v1973, 1
          %v1978 = vmul.f32 %v1962, %v1973
          %v1979 = vmul.f32 %v1964, %v1975
          %vm1980 = vcmask 31744
          %v1982 = vsel %vm1980, %v1978, 0
          %vm1984 = vcmask 1043456
          %v1985 = vsel %vm1984, %v1691, 0
          %1987 = vmatprep.subr.mxu0 0.0
          %1988 = vmatpush1.msra.mxu0 0.0
          %1989 = vmatprep.subr.mxu0 0.0
          %1990 = vmatpush1.msra.mxu0 0.0
          %1991 = vmatprep.subr.mxu0 0.0
          %1992 = vmatpush1.msra.mxu0 0.0
          %1993 = vmatprep.subr.mxu0 0.0
          %1994 = vmatpush1.msra.mxu0 0.0
          %1995 = vmatprep.subr.mxu0 0.0
          %1996 = vmatpush1.msra.mxu0 0.0
          %1997 = vmatprep.subr.mxu0 0.0
          %1998 = vmatpush1.msra.mxu0 0.0
          %1999 = vmatprep.subr.mxu0 0.0
          %2000 = vmatpush1.msra.mxu0 0.0
          %2001 = vmatprep.subr.mxu0 0.0
          %2002 = vmatpush1.msra.mxu0 0.0
          %2003 = vmatprep.subr.mxu0 0.0
          %2004 = vmatpush1.msra.mxu0 0.0
          %2005 = vmatprep.subr.mxu0 0.0
          %2006 = vmatpush1.msra.mxu0 0.0
          %2007 = vmatprep.subr.mxu0 0.0
          %2008 = vmatpush1.msra.mxu0 0.0
          %2009 = vmatprep.subr.mxu0 0.0
          %2010 = vmatpush1.msra.mxu0 0.0
          %2011 = vmatprep.subr.mxu0 0.0
          %2012 = vmatpush1.msra.mxu0 0.0
          %2013 = vmatprep.subr.mxu0 0.0
          %2014 = vmatpush1.msra.mxu0 0.0
          %2015 = vmatprep.subr.mxu0 0.0
          %2016 = vmatpush1.msra.mxu0 0.0
          %2017 = vmatprep.subr.mxu0 0.0
          %2018 = vmatpush1.msra.mxu0 %v1985
          %2019 = vmatprep.subr.mxu0 0.0
          %2020 = vmatpush2.msra.mxu0 0.0
          %2021 = vmatprep.subr.mxu0 0.0
          %2022 = vmatpush2.msra.mxu0 0.0
          %2023 = vmatprep.subr.mxu0 0.0
          %2024 = vmatpush2.msra.mxu0 0.0
          %2025 = vmatprep.subr.mxu0 0.0
          %2026 = vmatpush2.msra.mxu0 0.0
          %2027 = vmatprep.subr.mxu0 0.0
          %2028 = vmatpush2.msra.mxu0 0.0
          %2029 = vmatprep.subr.mxu0 0.0
          %2030 = vmatpush2.msra.mxu0 0.0
          %2031 = vmatprep.subr.mxu0 0.0
          %2032 = vmatpush2.msra.mxu0 0.0
          %2033 = vmatprep.subr.mxu0 0.0
          %2034 = vmatpush2.msra.mxu0 0.0
          %2035 = vmatprep.subr.mxu0 0.0
          %2036 = vmatpush2.msra.mxu0 0.0
          %2037 = vmatprep.subr.mxu0 0.0
          %2038 = vmatpush2.msra.mxu0 0.0
          %2039 = vmatprep.subr.mxu0 0.0
          %2040 = vmatpush2.msra.mxu0 0.0
          %2041 = vmatprep.subr.mxu0 0.0
          %2042 = vmatpush2.msra.mxu0 0.0
          %2043 = vmatprep.subr.mxu0 0.0
          %2044 = vmatpush2.msra.mxu0 0.0
          %2045 = vmatprep.subr.mxu0 0.0
          %2046 = vmatpush2.msra.mxu0 0.0
          %2047 = vmatprep.subr.mxu0 0.0
          %2048 = vmatpush2.msra.mxu0 0.0
          %2049 = vmatprep.subr.mxu0 0.0
          %2050 = vmatpush2.msra.mxu0 0.0
          %2051 = vmatprep.mubr.f32.mxu0 0.0
          %2052 = vmatmul.mubr.f32.gmra.mxu0 %v1982
          %v2053 = vpop.f32.mrf.mxu0
          %v2054 = vadd.f32 0.0, %v2053
          %v2055 = vpop.f32.mrf.mxu0
          %2056 = vdwg.mxu0
          %v2058 = vsel %vm1980, %v1979, 0
          %v2060 = vsel %vm1984, %v1692, 0
          %2062 = vmatprep.subr.mxu0 0.0
          %2063 = vmatpush1.msra.mxu0 0.0
          %2064 = vmatprep.subr.mxu0 0.0
          %2065 = vmatpush1.msra.mxu0 0.0
          %2066 = vmatprep.subr.mxu0 0.0
          %2067 = vmatpush1.msra.mxu0 0.0
          %2068 = vmatprep.subr.mxu0 0.0
          %2069 = vmatpush1.msra.mxu0 0.0
          %2070 = vmatprep.subr.mxu0 0.0
          %2071 = vmatpush1.msra.mxu0 0.0
          %2072 = vmatprep.subr.mxu0 0.0
          %2073 = vmatpush1.msra.mxu0 0.0
          %2074 = vmatprep.subr.mxu0 0.0
          %2075 = vmatpush1.msra.mxu0 0.0
          %2076 = vmatprep.subr.mxu0 0.0
          %2077 = vmatpush1.msra.mxu0 0.0
          %2078 = vmatprep.subr.mxu0 0.0
          %2079 = vmatpush1.msra.mxu0 0.0
          %2080 = vmatprep.subr.mxu0 0.0
          %2081 = vmatpush1.msra.mxu0 0.0
          %2082 = vmatprep.subr.mxu0 0.0
          %2083 = vmatpush1.msra.mxu0 0.0
          %2084 = vmatprep.subr.mxu0 0.0
          %2085 = vmatpush1.msra.mxu0 0.0
          %2086 = vmatprep.subr.mxu0 0.0
          %2087 = vmatpush1.msra.mxu0 0.0
          %2088 = vmatprep.subr.mxu0 0.0
          %2089 = vmatpush1.msra.mxu0 0.0
          %2090 = vmatprep.subr.mxu0 0.0
          %2091 = vmatpush1.msra.mxu0 0.0
          %2092 = vmatprep.subr.mxu0 0.0
          %2093 = vmatpush1.msra.mxu0 %v2060
          %2094 = vmatprep.subr.mxu0 0.0
          %2095 = vmatpush2.msra.mxu0 0.0
          %2096 = vmatprep.subr.mxu0 0.0
          %2097 = vmatpush2.msra.mxu0 0.0
          %2098 = vmatprep.subr.mxu0 0.0
          %2099 = vmatpush2.msra.mxu0 0.0
          %2100 = vmatprep.subr.mxu0 0.0
          %2101 = vmatpush2.msra.mxu0 0.0
          %2102 = vmatprep.subr.mxu0 0.0
          %2103 = vmatpush2.msra.mxu0 0.0
          %2104 = vmatprep.subr.mxu0 0.0
          %2105 = vmatpush2.msra.mxu0 0.0
          %2106 = vmatprep.subr.mxu0 0.0
          %2107 = vmatpush2.msra.mxu0 0.0
          %2108 = vmatprep.subr.mxu0 0.0
          %2109 = vmatpush2.msra.mxu0 0.0
          %2110 = vmatprep.subr.mxu0 0.0
          %2111 = vmatpush2.msra.mxu0 0.0
          %2112 = vmatprep.subr.mxu0 0.0
          %2113 = vmatpush2.msra.mxu0 0.0
          %2114 = vmatprep.subr.mxu0 0.0
          %2115 = vmatpush2.msra.mxu0 0.0
          %2116 = vmatprep.subr.mxu0 0.0
          %2117 = vmatpush2.msra.mxu0 0.0
          %2118 = vmatprep.subr.mxu0 0.0
          %2119 = vmatpush2.msra.mxu0 0.0
          %2120 = vmatprep.subr.mxu0 0.0
          %2121 = vmatpush2.msra.mxu0 0.0
          %2122 = vmatprep.subr.mxu0 0.0
          %2123 = vmatpush2.msra.mxu0 0.0
          %2124 = vmatprep.subr.mxu0 0.0
          %2125 = vmatpush2.msra.mxu0 0.0
          %2126 = vmatprep.mubr.f32.mxu0 0.0
          %2127 = vmatmul.mubr.f32.gmra.mxu0 %v2058
          %v2128 = vpop.f32.mrf.mxu0
          %v2129 = vadd.f32 0.0, %v2128
          %v2130 = vpop.f32.mrf.mxu0
          %2131 = vdwg.mxu0
          %v2132 = vld [vmem:[%s11] sm:$0x1]
          %v2134 = vlaneseq
          %v2135 = vshrl.u32 %v2134, 7
          %v2136 = vsub.s32 0, %v2135
          %v2137 = vrot.slane %v2132, %v2136
          %v2139 = vmul.f32 %v1229, %v2137
          %vm2140 = vcmask 254976
          %v2141 = vsel %vm2140, %v2139, 0.0
          %2142 = vadd.xlane.f32.xlu0 %v2141
          %v2143 = vpop.xlane.xlu0 %2142
          %v2144 = vld [vmem:[%s12] sm:$0x1]
          %v2146 = vlaneseq
          %v2147 = vshrl.u32 %v2146, 7
          %v2148 = vsub.s32 0, %v2147
          %v2149 = vrot.slane %v2144, %v2148
          %v2151 = vmul.f32 %v1615, %v2149
          %v2152 = vmul.f32 %v1688, %v2149
          %v2155 = vrot.slane %v2152, 7
          %v2156 = vsel %vm1512, %v2155, %v2151
          %v2158 = vsel %vm2140, %v2156, 0.0
          %2159 = vadd.xlane.f32.xlu0 %v2158
          %v2160 = vpop.xlane.xlu0 %2159
          %v2161 = vadd.f32 %v2143, %v2160
          %v2162 = vld [vmem:[%s13] sm:$0x1]
          %v2164 = vlaneseq
          %v2165 = vshrl.u32 %v2164, 7
          %v2166 = vsub.s32 0, %v2165
          %v2167 = vrot.slane %v2162, %v2166
          %v2169 = vmul.f32 %v2054, %v2167
          %v2170 = vmul.f32 %v2129, %v2167
          %v2173 = vrot.slane %v2170, 7
          %v2174 = vsel %vm1512, %v2173, %v2169
          %v2176 = vsel %vm2140, %v2174, 0.0
          %2177 = vadd.xlane.f32.xlu0 %v2176
          %v2178 = vpop.xlane.xlu0 %2177
          %v2179 = vadd.f32 %v2161, %v2178
          %v2181 = vadd.f32 %v2179, %v1487
          %v2182 = vxor.u32 %v2181, 2147483648
          %v2183 = vmul.f32 %v2182, 1.442695
          %v2184 = vpow.pop %v2183
          %v2185 = vadd.f32 %v2184, 1.0
          %v2186 = vrcp.pop %v2185
          %v2187 = vmul.f32 1.0, %v2186
          %2188 = vst.msk [vmem:[#allocation2] sm:$0x3] %vm2140, %v1229
          %v2191 = vrot.slane %v1688, 7
          %v2192 = vsel %vm1512, %v2191, %v1615
          %2194 = vst.msk [vmem:[#allocation3] sm:$0x3] %vm2140, %v2192
          %v2197 = vrot.slane %v2129, 7
          %v2198 = vsel %vm1512, %v2197, %v2054
          %2200 = vst.msk [vmem:[#allocation4] sm:$0x3] %vm2140, %v2198
          %vm2201 = vcmask 1024
          %2202 = vst.msk [vmem:[#allocation5] sm:$0x3] %vm2201, -1e+30
          %2203 = vst.msk [vmem:[#allocation6] sm:$0x3] %vm2201, 0.0
          %2204 = vst [vmem:[#allocation28] sm:$0x3] 0.0
          %2206 = vrot.lane.b32.xlu0 %v2187, 127
          %v2207 = vpop.permute.xlu0 %2206
          %vm2209 = vcmask 17424
          %2210 = vst.msk [vmem:[#allocation28] sm:$0x3] %vm2209, %v2207
          %2211 = vrot.lane.b32.xlu0 %v1229, 8
          %v2212 = vpop.permute.xlu0 %2211
          %vm2214 = vcmask 320576
          %2215 = vst.msk [vmem:[#allocation28] sm:$0x3] %vm2214, %v2212
          %v2216 = vrot.slane %v1543, 7
          %v2217 = vsel %vm1512, %v2216, %v1542
          %2218 = vrot.lane.b32.xlu0 %v2217, 40
          %v2219 = vpop.permute.xlu0 %2218
          %vm2221 = vcmask 386368
          %2222 = vst.msk [vmem:[#allocation28] sm:$0x3] %vm2221, %v2219
        $region148: #{tpu_custom_call.1} parent=95 // pred_fallthru
          _
        %v2223 = vld [vmem:[#allocation2] sm:$0x3]
        %v2224 = vpack.c.bf16 %v2223, %v2223
        %v2225 = vld [vmem:[#allocation3] sm:$0x3]
        %v2226 = vpack.c.bf16 %v2225, %v2225
        %v2227 = vld [vmem:[#allocation4] sm:$0x3]
        %v2228 = vpack.c.bf16 %v2227, %v2227
        %v2229 = vld [vmem:[%s769] sm:$0xf]
        %v2230 = vld [vmem:[%s769 + $0x4] sm:$0xf]
        %v2231 = vld [vmem:[%s769 + $0x8] sm:$0xf]
        %v2232 = vld [vmem:[%s769 + $0xc] sm:$0xf]
        %v2233 = vld [vmem:[%s778] sm:$0xf]
        %v2234 = vld [vmem:[%s778 + $0x4] sm:$0xf]
        %v2235 = vld [vmem:[%s778 + $0x8] sm:$0xf]
        %v2236 = vld [vmem:[%s778 + $0xc] sm:$0xf]
        %v2241 = vunpack.c.l.b16 %v2233
        %v2242 = vunpack.c.l.b16 %v2234
        %v2243 = vunpack.c.l.b16 %v2235
        %v2244 = vunpack.c.l.b16 %v2236
        %v2245 = vpack.c.b16 %v2242, %v2241
        %v2246 = vpack.c.b16 %v2244, %v2243
        %vm2249 = vcmask 261120
        %v2251 = vsel %vm2249, %v2226, 0
        %2253 = vmatprep.subr.bf16.mxu0 0
        %2254 = vmatpush1.bf16.msra.mxu0 0
        %2255 = vmatprep.subr.bf16.mxu0 0
        %2256 = vmatpush1.bf16.msra.mxu0 0
        %2257 = vmatprep.subr.bf16.mxu0 0
        %2258 = vmatpush1.bf16.msra.mxu0 0
        %2259 = vmatprep.subr.bf16.mxu0 0
        %2260 = vmatpush1.bf16.msra.mxu0 0
        %2261 = vmatprep.subr.bf16.mxu0 0
        %2262 = vmatpush1.bf16.msra.mxu0 0
        %2263 = vmatprep.subr.bf16.mxu0 0
        %2264 = vmatpush1.bf16.msra.mxu0 0
        %2265 = vmatprep.subr.bf16.mxu0 0
        %2266 = vmatpush1.bf16.msra.mxu0 %v2246
        %2267 = vmatprep.subr.bf16.mxu0 0
        %2268 = vmatpush1.bf16.msra.mxu0 %v2245
        %2269 = vmatprep.subr.bf16.mxu0 0
        %2270 = vmatpush2.bf16.msra.mxu0 0
        %2271 = vmatprep.subr.bf16.mxu0 0
        %2272 = vmatpush2.bf16.msra.mxu0 0
        %2273 = vmatprep.subr.bf16.mxu0 0
        %2274 = vmatpush2.bf16.msra.mxu0 0
        %2275 = vmatprep.subr.bf16.mxu0 0
        %2276 = vmatpush2.bf16.msra.mxu0 0
        %2277 = vmatprep.subr.bf16.mxu0 0
        %2278 = vmatpush2.bf16.msra.mxu0 0
        %2279 = vmatprep.subr.bf16.mxu0 0
        %2280 = vmatpush2.bf16.msra.mxu0 0
        %2281 = vmatprep.subr.bf16.mxu0 0
        %2282 = vmatpush2.bf16.msra.mxu0 0
        %2283 = vmatprep.subr.bf16.mxu0 0
        %2284 = vmatpush2.bf16.msra.mxu0 0
        %2285 = vmatprep.mubr.bf16.mxu0 0
        %2286 = vmatmul.mubr.bf16.gmra.mxu0 %v2251
        %v2287 = vpop.f32.mrf.mxu0
        %v2288 = vadd.f32 0.0, %v2287
        %v2289 = vpop.f32.mrf.mxu0
        %v2290 = vpop.f32.mrf.mxu0
        %v2291 = vpop.f32.mrf.mxu0
        %2292 = vdwg.mxu0
        %v2297 = vunpack.c.l.b16 %v2229
        %v2298 = vunpack.c.l.b16 %v2230
        %v2299 = vunpack.c.l.b16 %v2231
        %v2300 = vunpack.c.l.b16 %v2232
        %v2301 = vpack.c.b16 %v2298, %v2297
        %v2302 = vpack.c.b16 %v2300, %v2299
        %v2306 = vsel %vm2249, %v2224, 0
        %2308 = vmatprep.subr.bf16.mxu0 0
        %2309 = vmatpush1.bf16.msra.mxu0 0
        %2310 = vmatprep.subr.bf16.mxu0 0
        %2311 = vmatpush1.bf16.msra.mxu0 0
        %2312 = vmatprep.subr.bf16.mxu0 0
        %2313 = vmatpush1.bf16.msra.mxu0 0
        %2314 = vmatprep.subr.bf16.mxu0 0
        %2315 = vmatpush1.bf16.msra.mxu0 0
        %2316 = vmatprep.subr.bf16.mxu0 0
        %2317 = vmatpush1.bf16.msra.mxu0 0
        %2318 = vmatprep.subr.bf16.mxu0 0
        %2319 = vmatpush1.bf16.msra.mxu0 0
        %2320 = vmatprep.subr.bf16.mxu0 0
        %2321 = vmatpush1.bf16.msra.mxu0 %v2302
        %2322 = vmatprep.subr.bf16.mxu0 0
        %2323 = vmatpush1.bf16.msra.mxu0 %v2301
        %2324 = vmatprep.subr.bf16.mxu0 0
        %2325 = vmatpush2.bf16.msra.mxu0 0
        %2326 = vmatprep.subr.bf16.mxu0 0
        %2327 = vmatpush2.bf16.msra.mxu0 0
        %2328 = vmatprep.subr.bf16.mxu0 0
        %2329 = vmatpush2.bf16.msra.mxu0 0
        %2330 = vmatprep.subr.bf16.mxu0 0
        %2331 = vmatpush2.bf16.msra.mxu0 0
        %2332 = vmatprep.subr.bf16.mxu0 0
        %2333 = vmatpush2.bf16.msra.mxu0 0
        %2334 = vmatprep.subr.bf16.mxu0 0
        %2335 = vmatpush2.bf16.msra.mxu0 0
        %2336 = vmatprep.subr.bf16.mxu0 0
        %2337 = vmatpush2.bf16.msra.mxu0 0
        %2338 = vmatprep.subr.bf16.mxu0 0
        %2339 = vmatpush2.bf16.msra.mxu0 0
        %2340 = vmatprep.mubr.bf16.mxu0 0
        %2341 = vmatmul.mubr.bf16.gmra.mxu0 %v2306
        %v2342 = vpop.f32.mrf.mxu0
        %v2343 = vadd.f32 %v2288, %v2342
        %v2344 = vpop.f32.mrf.mxu0
        %v2345 = vpop.f32.mrf.mxu0
        %v2346 = vpop.f32.mrf.mxu0
        %2347 = vdwg.mxu0
        %v2348 = vld [vmem:[%s787] sm:$0xf]
        %v2349 = vld [vmem:[%s787 + $0x4] sm:$0xf]
        %v2350 = vld [vmem:[%s787 + $0x8] sm:$0xf]
        %v2351 = vld [vmem:[%s787 + $0xc] sm:$0xf]
        %v2356 = vunpack.c.l.b16 %v2348
        %v2357 = vunpack.c.l.b16 %v2349
        %v2358 = vunpack.c.l.b16 %v2350
        %v2359 = vunpack.c.l.b16 %v2351
        %v2360 = vpack.c.b16 %v2357, %v2356
        %v2361 = vpack.c.b16 %v2359, %v2358
        %v2365 = vsel %vm2249, %v2228, 0
        %2367 = vmatprep.subr.bf16.mxu0 0
        %2368 = vmatpush1.bf16.msra.mxu0 0
        %2369 = vmatprep.subr.bf16.mxu0 0
        %2370 = vmatpush1.bf16.msra.mxu0 0
        %2371 = vmatprep.subr.bf16.mxu0 0
        %2372 = vmatpush1.bf16.msra.mxu0 0
        %2373 = vmatprep.subr.bf16.mxu0 0
        %2374 = vmatpush1.bf16.msra.mxu0 0
        %2375 = vmatprep.subr.bf16.mxu0 0
        %2376 = vmatpush1.bf16.msra.mxu0 0
        %2377 = vmatprep.subr.bf16.mxu0 0
        %2378 = vmatpush1.bf16.msra.mxu0 0
        %2379 = vmatprep.subr.bf16.mxu0 0
        %2380 = vmatpush1.bf16.msra.mxu0 %v2361
        %2381 = vmatprep.subr.bf16.mxu0 0
        %2382 = vmatpush1.bf16.msra.mxu0 %v2360
        %2383 = vmatprep.subr.bf16.mxu0 0
        %2384 = vmatpush2.bf16.msra.mxu0 0
        %2385 = vmatprep.subr.bf16.mxu0 0
        %2386 = vmatpush2.bf16.msra.mxu0 0
        %2387 = vmatprep.subr.bf16.mxu0 0
        %2388 = vmatpush2.bf16.msra.mxu0 0
        %2389 = vmatprep.subr.bf16.mxu0 0
        %2390 = vmatpush2.bf16.msra.mxu0 0
        %2391 = vmatprep.subr.bf16.mxu0 0
        %2392 = vmatpush2.bf16.msra.mxu0 0
        %2393 = vmatprep.subr.bf16.mxu0 0
        %2394 = vmatpush2.bf16.msra.mxu0 0
        %2395 = vmatprep.subr.bf16.mxu0 0
        %2396 = vmatpush2.bf16.msra.mxu0 0
        %2397 = vmatprep.subr.bf16.mxu0 0
        %2398 = vmatpush2.bf16.msra.mxu0 0
        %2399 = vmatprep.mubr.bf16.mxu0 0
        %2400 = vmatmul.mubr.bf16.gmra.mxu0 %v2365
        %v2401 = vpop.f32.mrf.mxu0
        %v2402 = vadd.f32 0.0, %v2401
        %v2403 = vpop.f32.mrf.mxu0
        %v2404 = vpop.f32.mrf.mxu0
        %v2405 = vpop.f32.mrf.mxu0
        %2406 = vdwg.mxu0
        %v2407 = vadd.f32 %v2343, %v2402
        %v2408 = vld [vmem:[%s859] sm:$0x1]
        %v2410 = vlaneseq
        %v2411 = vshrl.u32 %v2410, 7
        %v2412 = vsub.s32 0, %v2411
        %v2413 = vrot.slane %v2408, %v2412
        %v2415 = vadd.f32 %v2407, %v2413
        %2416 = vst [vmem:[%s854] sm:$0x3] %v2415
        %vm2417 = vcmask 1041408
        %v2418 = vsel %vm2417, %v2415, -inf
        %2419 = vmax.xlane.f32.xlu0 %v2418
        %v2420 = vpop.xlane.xlu0 %2419
        %v2421 = vld [vmem:[#allocation5] sm:$0x3]
        %v2422 = vmax.f32 %v2421, %v2420
        %v2423 = vld [vmem:[#allocation6] sm:$0x3]
        %v2424 = vsub.f32 %v2421, %v2422
        %v2425 = vmul.f32 %v2424, 1.442695
        %v2426 = vpow.pop %v2425
        %v2427 = vmul.f32 %v2423, %v2426
        %2429 = vset.pattern.permute.xlu0 0
        %2430 = vperm.xlu0 %2429, %v2422
        %v2431 = vpop.permute.xlu0 %2430
        %v2433 = vsub.f32 %v2415, %v2431
        %v2434 = vmul.f32 %v2433, 1.442695
        %v2435 = vpow.pop %v2434
        %v2436 = vsel %vm2417, %v2435, 0.0
        %2437 = vadd.xlane.f32.xlu0 %v2436
        %v2438 = vpop.xlane.xlu0 %2437
        %v2439 = vadd.f32 %v2427, %v2438
        %vm2440 = vcmask 1024
        %2441 = vst.msk [vmem:[#allocation6] sm:$0x3] %vm2440, %v2439
        %2442 = vst.msk [vmem:[#allocation5] sm:$0x3] %vm2440, %v2422
        %p2443 = scmp.eq.s32.totalorder %s47, 1
        // Predicated region
        $region149: #{tpu_custom_call.1} parent=95 // pred_check
          %p2444 = pneg %p2443
        $region150: #{tpu_custom_call.1} parent=95 // pred_check_branch
          %2446 = sbr.rel (%p2444) target = $region152
        $region151: #{tpu_custom_call.1} parent=95 // pred_region
          %v2447 = vld [vmem:[#allocation5] sm:$0x3]
          %2448 = vst.msk [vmem:[#allocation28] sm:$0x3] %vm2440, %v2447
          %v2449 = vld [vmem:[#allocation6] sm:$0x3]
          %2451 = vrot.lane.b32.xlu0 %v2449, 1
          %v2452 = vpop.permute.xlu0 %2451
          %vm2454 = vcmask 9224
          %2455 = vst.msk [vmem:[#allocation28] sm:$0x3] %vm2454, %v2452
        $region152: #{tpu_custom_call.1} parent=95 // pred_fallthru
          _
        %s2456 = sand.u32 %s474, 1
        %s2457 = scalar_lea.sflag [#allocation9], %s2456
        %s2458 = sand.u32 %s474, 1
        %s2459 = smul.addr %s2458, 2
        %s2460 = scalar_lea.vmem [#allocation27], %s2459
        // Predicated region
        $region153: #{tpu_custom_call.1} parent=95 // pred_check
          %p2461 = pneg %p484
        $region154: #{tpu_custom_call.1} parent=95 // pred_check_branch
          %2463 = sbr.rel (%p2461) target = $region156
        $region155: #{tpu_custom_call.1} parent=95 // pred_region
          %s2465 = ssub.s32 32, 32
          %2466 = vsyncadd %s2457, %s2465
          %s2467 = smul.addr %s47, 32
          %s2468 = scalar_lea.hbm %s19, %s2467
          %s2470 = sshll.u32 %s2460, 4
          %s2471 = int_to_ptr.vmem [resolvable:$true] %s2470
          %2473 = dma.vmem_to_hbm [thread:$0]  %s2471, 32, %s2468, %s2457
        $region156: #{tpu_custom_call.1} parent=95 // pred_fallthru
          _
        // Predicated region
        $region157: #{tpu_custom_call.1} parent=95 // pred_check
          %p2474 = pneg %p505
        $region158: #{tpu_custom_call.1} parent=95 // pred_check_branch
          %2476 = sbr.rel (%p2474) target = $region160
        $region159: #{tpu_custom_call.1} parent=95 // pred_region
          %s2478 = ssub.s32 32, 32
          %2479 = vsyncadd [#allocation29], %s2478
          %s2481 = sshll.u32 [#allocation28], 4
          %s2482 = int_to_ptr.vmem [resolvable:$true] %s2481
          %2484 = dma.vmem_to_hbm [thread:$0]  %s2482, 32, %s20, [#allocation29]
        $region160: #{tpu_custom_call.1} parent=95 // pred_fallthru
          _
        // Predicated region
        $region161: #{tpu_custom_call.1} parent=95 // pred_check
          %p2485 = pneg %p505
        $region162: #{tpu_custom_call.1} parent=95 // pred_check_branch
          %2487 = sbr.rel (%p2485) target = $region164
        $region163: #{tpu_custom_call.1} parent=95 // pred_region
          %2488 = dma.done [#allocation29], 32
        $region164: #{tpu_custom_call.1} parent=95 // pred_fallthru
          _
      $region96: #{tpu_custom_call.1} parent=5 // pred_fallthru
        _
      %p2489 = scmp.le.s32.totalorder 2, %s42
      // Predicated region
      $region165: #{tpu_custom_call.1} parent=5 // pred_check
        %p2490 = pneg %p2489
      $region166: #{tpu_custom_call.1} parent=5 // pred_check_branch
        %2492 = sbr.rel (%p2490) target = $region168
      $region167: #{tpu_custom_call.1} parent=5 // pred_region
        %s2493 = ssub.s32 %s42, 2
        // Predicated region
        $region169: #{tpu_custom_call.1} parent=167 // pred_check
          %p2494 = pneg %p490
        $region170: #{tpu_custom_call.1} parent=167 // pred_check_branch
          %2496 = sbr.rel (%p2494) target = $region172
        $region171: #{tpu_custom_call.1} parent=167 // pred_region
          %s2497 = sand.u32 %s475, 1
          %s2498 = scalar_lea.sflag [#allocation9], %s2497
          %s2499 = sand.u32 %s475, 1
          %s2500 = smul.addr %s2499, 2
          %s2501 = scalar_lea.vmem [#allocation27], %s2500
          %2502 = dma.done %s2498, 32
        $region172: #{tpu_custom_call.1} parent=167 // pred_fallthru
          _
      $region168: #{tpu_custom_call.1} parent=5 // pred_fallthru
        _
    $region6: #{tpu_custom_call.1} parent=1 // loop_footer
      %s46 = sadd.s32 1, %s42
    $region7: #{tpu_custom_call.1} parent=1 // loop_footer_branch
      %41 = sbr.rel target = $region3
    $region8: #{tpu_custom_call.1} parent=1 // loop_exit
      _
    %2503 = vsyncpa [#allocation8], 1
    %s2504 = scalar_lea.sflag [#allocation8], 1
    %2505 = vsyncpa %s2504, 1
    %2506 = vsyncpa [#allocation11], 1
    %2507 = vsyncpa [#allocation14], 1
    %2508 = vsyncpa [#allocation17], 1
    %2509 = vsyncpa [#allocation20], 1
    %2510 = vsyncpa [#allocation23], 1
    %s2511 = scalar_lea.sflag [#allocation23], 1
    %2512 = vsyncpa %s2511, 1
    %2513 = vsyncpa [#allocation26], 1
    %s2514 = scalar_lea.sflag [#allocation26], 1
    %2515 = vsyncpa %s2514, 1
    %2516 = vsyncpa [#allocation9], 1
    %s2517 = scalar_lea.sflag [#allocation9], 1
    %2518 = vsyncpa %s2517, 1
    %2519 = vsyncpa [#allocation29], 1

</llo_original>
